<compile_context>
chip_gen: v7x
topology: tpu7x:2x2x1
jax: 0.10.0
libtpu: 0.0.40
codegen_flags: <defaults>
</compile_context>

<pallas_src>
import jax
import jax.numpy as jnp
import numpy as np
from jax.experimental import pallas as pl
from jax.experimental.pallas import tpu as pltpu

D_MODEL = 64
N_HEADS = 4
HEAD_DIM = D_MODEL // N_HEADS   # 16
D_FF = 2048                      # nn.TransformerEncoderLayer default
N_LAYERS = 2
LN_EPS = 1e-5


def _layer_norm(x, gamma, beta):
    mean = jnp.mean(x, axis=-1, keepdims=True)
    var = jnp.mean(jnp.square(x - mean), axis=-1, keepdims=True)
    return (x - mean) * jax.lax.rsqrt(var + LN_EPS) * gamma + beta


def transformer_kernel(x_ref, w_in_ref, b_in_ref,
                       wqkv_ref, bqkv_ref, wo_ref, bo_ref,
                       ln1_g_ref, ln1_b_ref, ln2_g_ref, ln2_b_ref,
                       w1_ref, b1_ref, w2_ref, b2_ref,
                       w_out_ref, b_out_ref,
                       o_ref):
    # input projection: (B, D_in) @ (D_in, 64) + (1, 64)   [bf16 MXU, f32 acc]
    h = jnp.dot(x_ref[...].astype(jnp.bfloat16), w_in_ref[...],
                preferred_element_type=jnp.float32) + b_in_ref[...]
    scale = 1.0 / (HEAD_DIM ** 0.5)

    for l in range(N_LAYERS):
        # ---- multi-head self attention (post-norm, dropout = identity) ----
        # fused QKV: one (B,64)@(64,192) matmul, then static lane slices.
        qkv = jnp.dot(h.astype(jnp.bfloat16), wqkv_ref[l],
                      preferred_element_type=jnp.float32) + bqkv_ref[l]
        heads = []
        for hh in range(N_HEADS):
            q_h = qkv[:, hh * HEAD_DIM:(hh + 1) * HEAD_DIM]
            k_h = qkv[:, D_MODEL + hh * HEAD_DIM:D_MODEL + (hh + 1) * HEAD_DIM]
            v_h = qkv[:, 2 * D_MODEL + hh * HEAD_DIM:
                         2 * D_MODEL + (hh + 1) * HEAD_DIM]
            s = jnp.dot(q_h, k_h.T, preferred_element_type=jnp.float32) * scale
            s = s - jnp.max(s, axis=-1, keepdims=True)
            p = jnp.exp(s)
            p = p * pl.reciprocal(jnp.sum(p, axis=-1, keepdims=True),
                                  approx=True)
            heads.append(jnp.dot(p, v_h, preferred_element_type=jnp.float32))
        # single output projection over concatenated heads: (B,64)@(64,64)
        attn_cat = jnp.concatenate(heads, axis=-1)
        attn = jnp.dot(attn_cat.astype(jnp.bfloat16), wo_ref[l],
                       preferred_element_type=jnp.float32) + bo_ref[l]
        h = _layer_norm(h + attn, ln1_g_ref[l], ln1_b_ref[l])

        # ---- feed forward: linear1 -> relu -> linear2 ----
        ff = jnp.dot(h.astype(jnp.bfloat16), w1_ref[l],
                     preferred_element_type=jnp.float32) + b1_ref[l]
        ff = jnp.maximum(ff, 0.0)
        ff = jnp.dot(ff.astype(jnp.bfloat16), w2_ref[l],
                     preferred_element_type=jnp.float32) + b2_ref[l]
        h = _layer_norm(h + ff, ln2_g_ref[l], ln2_b_ref[l])

    # output projection
    o_ref[...] = jnp.dot(h.astype(jnp.bfloat16), w_out_ref[...],
                         preferred_element_type=jnp.float32) + b_out_ref[...]


def transformer_baseline_pallas(x, kp):
    """kp: dict of kernel-layout parameters (see _to_kernel_params)."""
    B, in_dim = x.shape
    out_dim = kp["w_out"].shape[1]
    args = (x, kp["w_in"], kp["b_in"],
            kp["wqkv"], kp["bqkv"], kp["wo"], kp["bo"],
            kp["ln1_g"], kp["ln1_b"], kp["ln2_g"], kp["ln2_b"],
            kp["w1"], kp["b1"], kp["w2"], kp["b2"],
            kp["w_out"], kp["b_out"])
    vmem = lambda: pl.BlockSpec(memory_space=pltpu.MemorySpace.VMEM)

    # advisory cost estimate for XLA's scheduler
    per_layer_flops = (2 * B * D_MODEL * (3 * D_MODEL)          # fused QKV
                       + N_HEADS * 2 * (2 * B * B * HEAD_DIM)   # scores + p@v
                       + 2 * B * D_MODEL * D_MODEL              # out proj
                       + 2 * (2 * B * D_MODEL * D_FF))          # FFN
    flops = (2 * B * in_dim * D_MODEL + N_LAYERS * per_layer_flops
             + 2 * B * D_MODEL * out_dim)
    transcendentals = N_LAYERS * (N_HEADS * B * B + 4 * B)
    bytes_accessed = (sum(int(np.prod(a.shape)) * a.dtype.itemsize for a in args)
                      + B * out_dim * 4)

    return pl.pallas_call(
        transformer_kernel,
        out_shape=jax.ShapeDtypeStruct((B, out_dim), jnp.float32),
        in_specs=[vmem() for _ in args],
        out_specs=vmem(),
        cost_estimate=pl.CostEstimate(flops=flops,
                                      transcendentals=transcendentals,
                                      bytes_accessed=bytes_accessed),
    )(*args)


# ----------------------- parameter construction ---------------------------

def init_pytorch_layout_params(key, input_dim, output_dim):
    """Deterministic params in the same layout PyTorch stores them."""
    ks = iter(jax.random.split(key, 64))

    def lin(k, out_f, in_f):
        bound = 1.0 / np.sqrt(in_f)
        kw, kb = jax.random.split(k)
        w = jax.random.uniform(kw, (out_f, in_f), jnp.float32, -bound, bound)
        b = jax.random.uniform(kb, (out_f,), jnp.float32, -bound, bound)
        return w, b

    in_w, in_b = lin(next(ks), D_MODEL, input_dim)
    layers = []
    for _ in range(N_LAYERS):
        in_proj_w, in_proj_b = lin(next(ks), 3 * D_MODEL, D_MODEL)
        out_proj_w, out_proj_b = lin(next(ks), D_MODEL, D_MODEL)
        lin1_w, lin1_b = lin(next(ks), D_FF, D_MODEL)
        lin2_w, lin2_b = lin(next(ks), D_MODEL, D_FF)
        layers.append(dict(
            in_proj_w=in_proj_w, in_proj_b=in_proj_b,
            out_proj_w=out_proj_w, out_proj_b=out_proj_b,
            lin1_w=lin1_w, lin1_b=lin1_b, lin2_w=lin2_w, lin2_b=lin2_b,
            ln1_w=jnp.ones((D_MODEL,), jnp.float32),
            ln1_b=jnp.zeros((D_MODEL,), jnp.float32),
            ln2_w=jnp.ones((D_MODEL,), jnp.float32),
            ln2_b=jnp.zeros((D_MODEL,), jnp.float32),
        ))
    out_w, out_b = lin(next(ks), output_dim, D_MODEL)
    return dict(in_w=in_w, in_b=in_b, layers=layers, out_w=out_w, out_b=out_b)


def _to_kernel_params(pt):
    """PyTorch-layout -> kernel layouts: fused QKV, transposed, bf16 weights."""
    bf = lambda a: a.astype(jnp.bfloat16)
    wqkv, bqkv, wo, bo = [], [], [], []
    ln1g, ln1b, ln2g, ln2b, w1, b1, w2, b2 = [], [], [], [], [], [], [], []
    for p in pt["layers"]:
        wqkv.append(bf(p["in_proj_w"].T))                  # (64, 192)
        bqkv.append(p["in_proj_b"].reshape(1, -1))         # (1, 192)
        wo.append(bf(p["out_proj_w"].T))                   # (64, 64)
        bo.append(p["out_proj_b"].reshape(1, -1))
        ln1g.append(p["ln1_w"].reshape(1, -1)); ln1b.append(p["ln1_b"].reshape(1, -1))
        ln2g.append(p["ln2_w"].reshape(1, -1)); ln2b.append(p["ln2_b"].reshape(1, -1))
        w1.append(bf(p["lin1_w"].T)); b1.append(p["lin1_b"].reshape(1, -1))
        w2.append(bf(p["lin2_w"].T)); b2.append(p["lin2_b"].reshape(1, -1))

    st = jnp.stack
    return dict(
        w_in=bf(pt["in_w"].T), b_in=pt["in_b"].reshape(1, -1),
        wqkv=st(wqkv), bqkv=st(bqkv), wo=st(wo), bo=st(bo),
        ln1_g=st(ln1g), ln1_b=st(ln1b), ln2_g=st(ln2g), ln2_b=st(ln2b),
        w1=st(w1), b1=st(b1), w2=st(w2), b2=st(b2),
        w_out=bf(pt["out_w"].T), b_out=pt["out_b"].reshape(1, -1),
    )


# ----------------------- pure-JAX reference (PyTorch semantics, f32) ------

def reference_forward(x, pt):
    h = x @ pt["in_w"].T + pt["in_b"]
    for p in pt["layers"]:
        W, b = p["in_proj_w"], p["in_proj_b"]
        q = h @ W[0:D_MODEL].T + b[0:D_MODEL]
        k = h @ W[D_MODEL:2 * D_MODEL].T + b[D_MODEL:2 * D_MODEL]
        v = h @ W[2 * D_MODEL:].T + b[2 * D_MODEL:]
        heads = []
        for hh in range(N_HEADS):
            sl = slice(hh * HEAD_DIM, (hh + 1) * HEAD_DIM)
            s = (q[:, sl] @ k[:, sl].T) / np.sqrt(HEAD_DIM)
            a = jax.nn.softmax(s, axis=-1)
            heads.append(a @ v[:, sl])
        attn = jnp.concatenate(heads, -1) @ p["out_proj_w"].T + p["out_proj_b"]
        h = _layer_norm(h + attn, p["ln1_w"], p["ln1_b"])
        ff = jnp.maximum(h @ p["lin1_w"].T + p["lin1_b"], 0.0)
        ff = ff @ p["lin2_w"].T + p["lin2_b"]
        h = _layer_norm(h + ff, p["ln2_w"], p["ln2_b"])
    return h @ pt["out_w"].T + pt["out_b"]


if __name__ == "__main__":
    B, INPUT_DIM, OUTPUT_DIM = 8, 32, 3

    key = jax.random.PRNGKey(0)
    kx, kp = jax.random.split(key)
    x = jax.random.normal(kx, (B, INPUT_DIM), jnp.float32)

    pt_params = init_pytorch_layout_params(kp, INPUT_DIM, OUTPUT_DIM)
    kernel_params = _to_kernel_params(pt_params)

    out = transformer_baseline_pallas(x, kernel_params)
    out = jax.block_until_ready(out)

    ref = jax.block_until_ready(reference_forward(x, pt_params))
    assert out.shape == (B, OUTPUT_DIM)
    # bf16 matmul operands (f32 accumulation) -> relaxed tolerance vs f32 ref.
    np.testing.assert_allclose(np.asarray(out), np.asarray(ref),
                               rtol=5e-2, atol=5e-2)
    print("KERNEL_OK")
</pallas_src>

<mosaic_0001>
module attributes {stable_mosaic.version = 11 : i64} {
  func.func @transformer_kernel(%arg0: memref<8x32xf32, #tpu.memory_space<vmem>>, %arg1: memref<32x64xbf16, #tpu.memory_space<vmem>>, %arg2: memref<1x64xf32, #tpu.memory_space<vmem>>, %arg3: memref<2x64x192xbf16, #tpu.memory_space<vmem>>, %arg4: memref<2x1x192xf32, #tpu.memory_space<vmem>>, %arg5: memref<2x64x64xbf16, #tpu.memory_space<vmem>>, %arg6: memref<2x1x64xf32, #tpu.memory_space<vmem>>, %arg7: memref<2x1x64xf32, #tpu.memory_space<vmem>>, %arg8: memref<2x1x64xf32, #tpu.memory_space<vmem>>, %arg9: memref<2x1x64xf32, #tpu.memory_space<vmem>>, %arg10: memref<2x1x64xf32, #tpu.memory_space<vmem>>, %arg11: memref<2x64x2048xbf16, #tpu.memory_space<vmem>>, %arg12: memref<2x1x2048xf32, #tpu.memory_space<vmem>>, %arg13: memref<2x2048x64xbf16, #tpu.memory_space<vmem>>, %arg14: memref<2x1x64xf32, #tpu.memory_space<vmem>>, %arg15: memref<64x3xbf16, #tpu.memory_space<vmem>>, %arg16: memref<1x3xf32, #tpu.memory_space<vmem>>, %arg17: memref<8x3xf32, #tpu.memory_space<vmem>>) attributes {dimension_semantics = [], scalar_prefetch = 0 : i64, scratch_operands = 0 : i64, tpu.core_type = #tpu.core_type<tc>} {
    %c0 = arith.constant 0 : index
    %c0_0 = arith.constant 0 : index
    %0 = vector.load %arg0[%c0, %c0_0] : memref<8x32xf32, #tpu.memory_space<vmem>>, vector<8x32xf32>
    %1 = arith.truncf %0 : vector<8x32xf32> to vector<8x32xbf16>
    %c0_1 = arith.constant 0 : index
    %c0_2 = arith.constant 0 : index
    %2 = vector.load %arg1[%c0_1, %c0_2] : memref<32x64xbf16, #tpu.memory_space<vmem>>, vector<32x64xbf16>
    %cst = arith.constant dense<0.000000e+00> : vector<8x64xf32>
    %3 = tpu.matmul %1, %2, %cst {dimension_numbers = #tpu.dot_dimension_numbers<[1], [0], [0], [1], [0, 0, 1, 1], [], []>} : vector<8x32xbf16>, vector<32x64xbf16>, vector<8x64xf32> -> vector<8x64xf32>
    %c0_3 = arith.constant 0 : index
    %c0_4 = arith.constant 0 : index
    %4 = vector.load %arg2[%c0_3, %c0_4] : memref<1x64xf32, #tpu.memory_space<vmem>>, vector<1x64xf32>
    %5 = vector.broadcast %4 : vector<1x64xf32> to vector<8x64xf32>
    %6 = arith.addf %3, %5 : vector<8x64xf32>
    %7 = arith.truncf %6 : vector<8x64xf32> to vector<8x64xbf16>
    %c0_5 = arith.constant 0 : index
    %c0_6 = arith.constant 0 : index
    %c0_7 = arith.constant 0 : index
    %8 = vector.load %arg3[%c0_5, %c0_6, %c0_7] : memref<2x64x192xbf16, #tpu.memory_space<vmem>>, vector<1x64x192xbf16>
    %9 = vector.shape_cast %8 : vector<1x64x192xbf16> to vector<64x192xbf16>
    %cst_8 = arith.constant dense<0.000000e+00> : vector<8x192xf32>
    %10 = tpu.matmul %7, %9, %cst_8 {dimension_numbers = #tpu.dot_dimension_numbers<[1], [0], [0], [1], [0, 0, 1, 1], [], []>} : vector<8x64xbf16>, vector<64x192xbf16>, vector<8x192xf32> -> vector<8x192xf32>
    %c0_9 = arith.constant 0 : index
    %c0_10 = arith.constant 0 : index
    %c0_11 = arith.constant 0 : index
    %11 = vector.load %arg4[%c0_9, %c0_10, %c0_11] : memref<2x1x192xf32, #tpu.memory_space<vmem>>, vector<1x1x192xf32>
    %12 = vector.shape_cast %11 : vector<1x1x192xf32> to vector<1x192xf32>
    %13 = vector.broadcast %12 : vector<1x192xf32> to vector<8x192xf32>
    %14 = arith.addf %10, %13 : vector<8x192xf32>
    %15 = vector.extract_strided_slice %14 {offsets = [0, 0], sizes = [8, 16], strides = [1, 1]} : vector<8x192xf32> to vector<8x16xf32>
    %16 = vector.extract_strided_slice %14 {offsets = [0, 64], sizes = [8, 16], strides = [1, 1]} : vector<8x192xf32> to vector<8x16xf32>
    %17 = vector.extract_strided_slice %14 {offsets = [0, 128], sizes = [8, 16], strides = [1, 1]} : vector<8x192xf32> to vector<8x16xf32>
    %18 = tpu.transpose %16, [1, 0] : vector<8x16xf32> -> vector<16x8xf32>
    %cst_12 = arith.constant dense<0.000000e+00> : vector<8x8xf32>
    %19 = tpu.matmul %15, %18, %cst_12 {dimension_numbers = #tpu.dot_dimension_numbers<[1], [0], [0], [1], [0, 0, 1, 1], [], []>} : vector<8x16xf32>, vector<16x8xf32>, vector<8x8xf32> -> vector<8x8xf32>
    %cst_13 = arith.constant 2.500000e-01 : f32
    %20 = vector.broadcast %cst_13 : f32 to vector<8x8xf32>
    %21 = arith.mulf %19, %20 : vector<8x8xf32>
    %cst_14 = arith.constant dense<0xFF800000> : vector<8xf32>
    %22 = vector.multi_reduction <maximumf>, %21, %cst_14 [1] : vector<8x8xf32> to vector<8xf32>
    %23 = vector.shape_cast %22 : vector<8xf32> to vector<8x1xf32>
    %24 = vector.broadcast %23 : vector<8x1xf32> to vector<8x8xf32>
    %25 = arith.subf %21, %24 : vector<8x8xf32>
    %26 = math.exp %25 : vector<8x8xf32>
    %cst_15 = arith.constant dense<0.000000e+00> : vector<8xf32>
    %27 = vector.multi_reduction <add>, %26, %cst_15 [1] : vector<8x8xf32> to vector<8xf32>
    %28 = vector.shape_cast %27 : vector<8xf32> to vector<8x1xf32>
    %29 = tpu.reciprocal %28 {approx = true} : vector<8x1xf32> -> vector<8x1xf32>
    %30 = vector.broadcast %29 : vector<8x1xf32> to vector<8x8xf32>
    %31 = arith.mulf %26, %30 : vector<8x8xf32>
    %cst_16 = arith.constant dense<0.000000e+00> : vector<8x16xf32>
    %32 = tpu.matmul %31, %17, %cst_16 {dimension_numbers = #tpu.dot_dimension_numbers<[1], [0], [0], [1], [0, 0, 1, 1], [], []>} : vector<8x8xf32>, vector<8x16xf32>, vector<8x16xf32> -> vector<8x16xf32>
    %33 = vector.extract_strided_slice %14 {offsets = [0, 16], sizes = [8, 16], strides = [1, 1]} : vector<8x192xf32> to vector<8x16xf32>
    %34 = vector.extract_strided_slice %14 {offsets = [0, 80], sizes = [8, 16], strides = [1, 1]} : vector<8x192xf32> to vector<8x16xf32>
    %35 = vector.extract_strided_slice %14 {offsets = [0, 144], sizes = [8, 16], strides = [1, 1]} : vector<8x192xf32> to vector<8x16xf32>
    %36 = tpu.transpose %34, [1, 0] : vector<8x16xf32> -> vector<16x8xf32>
    %cst_17 = arith.constant dense<0.000000e+00> : vector<8x8xf32>
    %37 = tpu.matmul %33, %36, %cst_17 {dimension_numbers = #tpu.dot_dimension_numbers<[1], [0], [0], [1], [0, 0, 1, 1], [], []>} : vector<8x16xf32>, vector<16x8xf32>, vector<8x8xf32> -> vector<8x8xf32>
    %cst_18 = arith.constant 2.500000e-01 : f32
    %38 = vector.broadcast %cst_18 : f32 to vector<8x8xf32>
    %39 = arith.mulf %37, %38 : vector<8x8xf32>
    %cst_19 = arith.constant dense<0xFF800000> : vector<8xf32>
    %40 = vector.multi_reduction <maximumf>, %39, %cst_19 [1] : vector<8x8xf32> to vector<8xf32>
    %41 = vector.shape_cast %40 : vector<8xf32> to vector<8x1xf32>
    %42 = vector.broadcast %41 : vector<8x1xf32> to vector<8x8xf32>
    %43 = arith.subf %39, %42 : vector<8x8xf32>
    %44 = math.exp %43 : vector<8x8xf32>
    %cst_20 = arith.constant dense<0.000000e+00> : vector<8xf32>
    %45 = vector.multi_reduction <add>, %44, %cst_20 [1] : vector<8x8xf32> to vector<8xf32>
    %46 = vector.shape_cast %45 : vector<8xf32> to vector<8x1xf32>
    %47 = tpu.reciprocal %46 {approx = true} : vector<8x1xf32> -> vector<8x1xf32>
    %48 = vector.broadcast %47 : vector<8x1xf32> to vector<8x8xf32>
    %49 = arith.mulf %44, %48 : vector<8x8xf32>
    %cst_21 = arith.constant dense<0.000000e+00> : vector<8x16xf32>
    %50 = tpu.matmul %49, %35, %cst_21 {dimension_numbers = #tpu.dot_dimension_numbers<[1], [0], [0], [1], [0, 0, 1, 1], [], []>} : vector<8x8xf32>, vector<8x16xf32>, vector<8x16xf32> -> vector<8x16xf32>
    %51 = vector.extract_strided_slice %14 {offsets = [0, 32], sizes = [8, 16], strides = [1, 1]} : vector<8x192xf32> to vector<8x16xf32>
    %52 = vector.extract_strided_slice %14 {offsets = [0, 96], sizes = [8, 16], strides = [1, 1]} : vector<8x192xf32> to vector<8x16xf32>
    %53 = vector.extract_strided_slice %14 {offsets = [0, 160], sizes = [8, 16], strides = [1, 1]} : vector<8x192xf32> to vector<8x16xf32>
    %54 = tpu.transpose %52, [1, 0] : vector<8x16xf32> -> vector<16x8xf32>
    %cst_22 = arith.constant dense<0.000000e+00> : vector<8x8xf32>
    %55 = tpu.matmul %51, %54, %cst_22 {dimension_numbers = #tpu.dot_dimension_numbers<[1], [0], [0], [1], [0, 0, 1, 1], [], []>} : vector<8x16xf32>, vector<16x8xf32>, vector<8x8xf32> -> vector<8x8xf32>
    %cst_23 = arith.constant 2.500000e-01 : f32
    %56 = vector.broadcast %cst_23 : f32 to vector<8x8xf32>
    %57 = arith.mulf %55, %56 : vector<8x8xf32>
    %cst_24 = arith.constant dense<0xFF800000> : vector<8xf32>
    %58 = vector.multi_reduction <maximumf>, %57, %cst_24 [1] : vector<8x8xf32> to vector<8xf32>
    %59 = vector.shape_cast %58 : vector<8xf32> to vector<8x1xf32>
    %60 = vector.broadcast %59 : vector<8x1xf32> to vector<8x8xf32>
    %61 = arith.subf %57, %60 : vector<8x8xf32>
    %62 = math.exp %61 : vector<8x8xf32>
    %cst_25 = arith.constant dense<0.000000e+00> : vector<8xf32>
    %63 = vector.multi_reduction <add>, %62, %cst_25 [1] : vector<8x8xf32> to vector<8xf32>
    %64 = vector.shape_cast %63 : vector<8xf32> to vector<8x1xf32>
    %65 = tpu.reciprocal %64 {approx = true} : vector<8x1xf32> -> vector<8x1xf32>
    %66 = vector.broadcast %65 : vector<8x1xf32> to vector<8x8xf32>
    %67 = arith.mulf %62, %66 : vector<8x8xf32>
    %cst_26 = arith.constant dense<0.000000e+00> : vector<8x16xf32>
    %68 = tpu.matmul %67, %53, %cst_26 {dimension_numbers = #tpu.dot_dimension_numbers<[1], [0], [0], [1], [0, 0, 1, 1], [], []>} : vector<8x8xf32>, vector<8x16xf32>, vector<8x16xf32> -> vector<8x16xf32>
    %69 = vector.extract_strided_slice %14 {offsets = [0, 48], sizes = [8, 16], strides = [1, 1]} : vector<8x192xf32> to vector<8x16xf32>
    %70 = vector.extract_strided_slice %14 {offsets = [0, 112], sizes = [8, 16], strides = [1, 1]} : vector<8x192xf32> to vector<8x16xf32>
    %71 = vector.extract_strided_slice %14 {offsets = [0, 176], sizes = [8, 16], strides = [1, 1]} : vector<8x192xf32> to vector<8x16xf32>
    %72 = tpu.transpose %70, [1, 0] : vector<8x16xf32> -> vector<16x8xf32>
    %cst_27 = arith.constant dense<0.000000e+00> : vector<8x8xf32>
    %73 = tpu.matmul %69, %72, %cst_27 {dimension_numbers = #tpu.dot_dimension_numbers<[1], [0], [0], [1], [0, 0, 1, 1], [], []>} : vector<8x16xf32>, vector<16x8xf32>, vector<8x8xf32> -> vector<8x8xf32>
    %cst_28 = arith.constant 2.500000e-01 : f32
    %74 = vector.broadcast %cst_28 : f32 to vector<8x8xf32>
    %75 = arith.mulf %73, %74 : vector<8x8xf32>
    %cst_29 = arith.constant dense<0xFF800000> : vector<8xf32>
    %76 = vector.multi_reduction <maximumf>, %75, %cst_29 [1] : vector<8x8xf32> to vector<8xf32>
    %77 = vector.shape_cast %76 : vector<8xf32> to vector<8x1xf32>
    %78 = vector.broadcast %77 : vector<8x1xf32> to vector<8x8xf32>
    %79 = arith.subf %75, %78 : vector<8x8xf32>
    %80 = math.exp %79 : vector<8x8xf32>
    %cst_30 = arith.constant dense<0.000000e+00> : vector<8xf32>
    %81 = vector.multi_reduction <add>, %80, %cst_30 [1] : vector<8x8xf32> to vector<8xf32>
    %82 = vector.shape_cast %81 : vector<8xf32> to vector<8x1xf32>
    %83 = tpu.reciprocal %82 {approx = true} : vector<8x1xf32> -> vector<8x1xf32>
    %84 = vector.broadcast %83 : vector<8x1xf32> to vector<8x8xf32>
    %85 = arith.mulf %80, %84 : vector<8x8xf32>
    %cst_31 = arith.constant dense<0.000000e+00> : vector<8x16xf32>
    %86 = tpu.matmul %85, %71, %cst_31 {dimension_numbers = #tpu.dot_dimension_numbers<[1], [0], [0], [1], [0, 0, 1, 1], [], []>} : vector<8x8xf32>, vector<8x16xf32>, vector<8x16xf32> -> vector<8x16xf32>
    %87 = tpu.concatenate %32, %50, %68, %86 in 1 : vector<8x16xf32>, vector<8x16xf32>, vector<8x16xf32>, vector<8x16xf32> -> vector<8x64xf32>
    %88 = arith.truncf %87 : vector<8x64xf32> to vector<8x64xbf16>
    %c0_32 = arith.constant 0 : index
    %c0_33 = arith.constant 0 : index
    %c0_34 = arith.constant 0 : index
    %89 = vector.load %arg5[%c0_32, %c0_33, %c0_34] : memref<2x64x64xbf16, #tpu.memory_space<vmem>>, vector<1x64x64xbf16>
    %90 = vector.shape_cast %89 : vector<1x64x64xbf16> to vector<64x64xbf16>
    %cst_35 = arith.constant dense<0.000000e+00> : vector<8x64xf32>
    %91 = tpu.matmul %88, %90, %cst_35 {dimension_numbers = #tpu.dot_dimension_numbers<[1], [0], [0], [1], [0, 0, 1, 1], [], []>} : vector<8x64xbf16>, vector<64x64xbf16>, vector<8x64xf32> -> vector<8x64xf32>
    %c0_36 = arith.constant 0 : index
    %c0_37 = arith.constant 0 : index
    %c0_38 = arith.constant 0 : index
    %92 = vector.load %arg6[%c0_36, %c0_37, %c0_38] : memref<2x1x64xf32, #tpu.memory_space<vmem>>, vector<1x1x64xf32>
    %93 = vector.shape_cast %92 : vector<1x1x64xf32> to vector<1x64xf32>
    %94 = vector.broadcast %93 : vector<1x64xf32> to vector<8x64xf32>
    %95 = arith.addf %91, %94 : vector<8x64xf32>
    %96 = arith.addf %6, %95 : vector<8x64xf32>
    %c0_39 = arith.constant 0 : index
    %c0_40 = arith.constant 0 : index
    %c0_41 = arith.constant 0 : index
    %97 = vector.load %arg7[%c0_39, %c0_40, %c0_41] : memref<2x1x64xf32, #tpu.memory_space<vmem>>, vector<1x1x64xf32>
    %98 = vector.shape_cast %97 : vector<1x1x64xf32> to vector<1x64xf32>
    %c0_42 = arith.constant 0 : index
    %c0_43 = arith.constant 0 : index
    %c0_44 = arith.constant 0 : index
    %99 = vector.load %arg8[%c0_42, %c0_43, %c0_44] : memref<2x1x64xf32, #tpu.memory_space<vmem>>, vector<1x1x64xf32>
    %100 = vector.shape_cast %99 : vector<1x1x64xf32> to vector<1x64xf32>
    %cst_45 = arith.constant dense<0.000000e+00> : vector<8xf32>
    %101 = vector.multi_reduction <add>, %96, %cst_45 [1] : vector<8x64xf32> to vector<8xf32>
    %102 = vector.shape_cast %101 : vector<8xf32> to vector<8x1xf32>
    %cst_46 = arith.constant 6.400000e+01 : f32
    %103 = vector.broadcast %cst_46 : f32 to vector<8x1xf32>
    %104 = arith.divf %102, %103 : vector<8x1xf32>
    %105 = vector.broadcast %104 : vector<8x1xf32> to vector<8x64xf32>
    %106 = arith.subf %96, %105 : vector<8x64xf32>
    %107 = arith.mulf %106, %106 : vector<8x64xf32>
    %cst_47 = arith.constant dense<0.000000e+00> : vector<8xf32>
    %108 = vector.multi_reduction <add>, %107, %cst_47 [1] : vector<8x64xf32> to vector<8xf32>
    %109 = vector.shape_cast %108 : vector<8xf32> to vector<8x1xf32>
    %cst_48 = arith.constant 6.400000e+01 : f32
    %110 = vector.broadcast %cst_48 : f32 to vector<8x1xf32>
    %111 = arith.divf %109, %110 : vector<8x1xf32>
    %112 = vector.broadcast %104 : vector<8x1xf32> to vector<8x64xf32>
    %113 = arith.subf %96, %112 : vector<8x64xf32>
    %cst_49 = arith.constant 9.99999974E-6 : f32
    %114 = vector.broadcast %cst_49 : f32 to vector<8x1xf32>
    %115 = arith.addf %111, %114 : vector<8x1xf32>
    %116 = math.rsqrt %115 : vector<8x1xf32>
    %117 = vector.broadcast %116 : vector<8x1xf32> to vector<8x64xf32>
    %118 = arith.mulf %113, %117 : vector<8x64xf32>
    %119 = vector.broadcast %98 : vector<1x64xf32> to vector<8x64xf32>
    %120 = arith.mulf %118, %119 : vector<8x64xf32>
    %121 = vector.broadcast %100 : vector<1x64xf32> to vector<8x64xf32>
    %122 = arith.addf %120, %121 : vector<8x64xf32>
    %123 = arith.truncf %122 : vector<8x64xf32> to vector<8x64xbf16>
    %c0_50 = arith.constant 0 : index
    %c0_51 = arith.constant 0 : index
    %c0_52 = arith.constant 0 : index
    %124 = vector.load %arg11[%c0_50, %c0_51, %c0_52] : memref<2x64x2048xbf16, #tpu.memory_space<vmem>>, vector<1x64x2048xbf16>
    %125 = vector.shape_cast %124 : vector<1x64x2048xbf16> to vector<64x2048xbf16>
    %cst_53 = arith.constant dense<0.000000e+00> : vector<8x2048xf32>
    %126 = tpu.matmul %123, %125, %cst_53 {dimension_numbers = #tpu.dot_dimension_numbers<[1], [0], [0], [1], [0, 0, 1, 1], [], []>} : vector<8x64xbf16>, vector<64x2048xbf16>, vector<8x2048xf32> -> vector<8x2048xf32>
    %c0_54 = arith.constant 0 : index
    %c0_55 = arith.constant 0 : index
    %c0_56 = arith.constant 0 : index
    %127 = vector.load %arg12[%c0_54, %c0_55, %c0_56] : memref<2x1x2048xf32, #tpu.memory_space<vmem>>, vector<1x1x2048xf32>
    %128 = vector.shape_cast %127 : vector<1x1x2048xf32> to vector<1x2048xf32>
    %129 = vector.broadcast %128 : vector<1x2048xf32> to vector<8x2048xf32>
    %130 = arith.addf %126, %129 : vector<8x2048xf32>
    %cst_57 = arith.constant 0.000000e+00 : f32
    %131 = vector.broadcast %cst_57 : f32 to vector<8x2048xf32>
    %132 = arith.maximumf %130, %131 : vector<8x2048xf32>
    %133 = arith.truncf %132 : vector<8x2048xf32> to vector<8x2048xbf16>
    %c0_58 = arith.constant 0 : index
    %c0_59 = arith.constant 0 : index
    %c0_60 = arith.constant 0 : index
    %134 = vector.load %arg13[%c0_58, %c0_59, %c0_60] : memref<2x2048x64xbf16, #tpu.memory_space<vmem>>, vector<1x2048x64xbf16>
    %135 = vector.shape_cast %134 : vector<1x2048x64xbf16> to vector<2048x64xbf16>
    %cst_61 = arith.constant dense<0.000000e+00> : vector<8x64xf32>
    %136 = tpu.matmul %133, %135, %cst_61 {dimension_numbers = #tpu.dot_dimension_numbers<[1], [0], [0], [1], [0, 0, 1, 1], [], []>} : vector<8x2048xbf16>, vector<2048x64xbf16>, vector<8x64xf32> -> vector<8x64xf32>
    %c0_62 = arith.constant 0 : index
    %c0_63 = arith.constant 0 : index
    %c0_64 = arith.constant 0 : index
    %137 = vector.load %arg14[%c0_62, %c0_63, %c0_64] : memref<2x1x64xf32, #tpu.memory_space<vmem>>, vector<1x1x64xf32>
    %138 = vector.shape_cast %137 : vector<1x1x64xf32> to vector<1x64xf32>
    %139 = vector.broadcast %138 : vector<1x64xf32> to vector<8x64xf32>
    %140 = arith.addf %136, %139 : vector<8x64xf32>
    %141 = arith.addf %122, %140 : vector<8x64xf32>
    %c0_65 = arith.constant 0 : index
    %c0_66 = arith.constant 0 : index
    %c0_67 = arith.constant 0 : index
    %142 = vector.load %arg9[%c0_65, %c0_66, %c0_67] : memref<2x1x64xf32, #tpu.memory_space<vmem>>, vector<1x1x64xf32>
    %143 = vector.shape_cast %142 : vector<1x1x64xf32> to vector<1x64xf32>
    %c0_68 = arith.constant 0 : index
    %c0_69 = arith.constant 0 : index
    %c0_70 = arith.constant 0 : index
    %144 = vector.load %arg10[%c0_68, %c0_69, %c0_70] : memref<2x1x64xf32, #tpu.memory_space<vmem>>, vector<1x1x64xf32>
    %145 = vector.shape_cast %144 : vector<1x1x64xf32> to vector<1x64xf32>
    %cst_71 = arith.constant dense<0.000000e+00> : vector<8xf32>
    %146 = vector.multi_reduction <add>, %141, %cst_71 [1] : vector<8x64xf32> to vector<8xf32>
    %147 = vector.shape_cast %146 : vector<8xf32> to vector<8x1xf32>
    %cst_72 = arith.constant 6.400000e+01 : f32
    %148 = vector.broadcast %cst_72 : f32 to vector<8x1xf32>
    %149 = arith.divf %147, %148 : vector<8x1xf32>
    %150 = vector.broadcast %149 : vector<8x1xf32> to vector<8x64xf32>
    %151 = arith.subf %141, %150 : vector<8x64xf32>
    %152 = arith.mulf %151, %151 : vector<8x64xf32>
    %cst_73 = arith.constant dense<0.000000e+00> : vector<8xf32>
    %153 = vector.multi_reduction <add>, %152, %cst_73 [1] : vector<8x64xf32> to vector<8xf32>
    %154 = vector.shape_cast %153 : vector<8xf32> to vector<8x1xf32>
    %cst_74 = arith.constant 6.400000e+01 : f32
    %155 = vector.broadcast %cst_74 : f32 to vector<8x1xf32>
    %156 = arith.divf %154, %155 : vector<8x1xf32>
    %157 = vector.broadcast %149 : vector<8x1xf32> to vector<8x64xf32>
    %158 = arith.subf %141, %157 : vector<8x64xf32>
    %cst_75 = arith.constant 9.99999974E-6 : f32
    %159 = vector.broadcast %cst_75 : f32 to vector<8x1xf32>
    %160 = arith.addf %156, %159 : vector<8x1xf32>
    %161 = math.rsqrt %160 : vector<8x1xf32>
    %162 = vector.broadcast %161 : vector<8x1xf32> to vector<8x64xf32>
    %163 = arith.mulf %158, %162 : vector<8x64xf32>
    %164 = vector.broadcast %143 : vector<1x64xf32> to vector<8x64xf32>
    %165 = arith.mulf %163, %164 : vector<8x64xf32>
    %166 = vector.broadcast %145 : vector<1x64xf32> to vector<8x64xf32>
    %167 = arith.addf %165, %166 : vector<8x64xf32>
    %168 = arith.truncf %167 : vector<8x64xf32> to vector<8x64xbf16>
    %c1 = arith.constant 1 : index
    %c0_76 = arith.constant 0 : index
    %c0_77 = arith.constant 0 : index
    %169 = vector.load %arg3[%c1, %c0_76, %c0_77] : memref<2x64x192xbf16, #tpu.memory_space<vmem>>, vector<1x64x192xbf16>
    %170 = vector.shape_cast %169 : vector<1x64x192xbf16> to vector<64x192xbf16>
    %cst_78 = arith.constant dense<0.000000e+00> : vector<8x192xf32>
    %171 = tpu.matmul %168, %170, %cst_78 {dimension_numbers = #tpu.dot_dimension_numbers<[1], [0], [0], [1], [0, 0, 1, 1], [], []>} : vector<8x64xbf16>, vector<64x192xbf16>, vector<8x192xf32> -> vector<8x192xf32>
    %c1_79 = arith.constant 1 : index
    %c0_80 = arith.constant 0 : index
    %c0_81 = arith.constant 0 : index
    %172 = vector.load %arg4[%c1_79, %c0_80, %c0_81] : memref<2x1x192xf32, #tpu.memory_space<vmem>>, vector<1x1x192xf32>
    %173 = vector.shape_cast %172 : vector<1x1x192xf32> to vector<1x192xf32>
    %174 = vector.broadcast %173 : vector<1x192xf32> to vector<8x192xf32>
    %175 = arith.addf %171, %174 : vector<8x192xf32>
    %176 = vector.extract_strided_slice %175 {offsets = [0, 0], sizes = [8, 16], strides = [1, 1]} : vector<8x192xf32> to vector<8x16xf32>
    %177 = vector.extract_strided_slice %175 {offsets = [0, 64], sizes = [8, 16], strides = [1, 1]} : vector<8x192xf32> to vector<8x16xf32>
    %178 = vector.extract_strided_slice %175 {offsets = [0, 128], sizes = [8, 16], strides = [1, 1]} : vector<8x192xf32> to vector<8x16xf32>
    %179 = tpu.transpose %177, [1, 0] : vector<8x16xf32> -> vector<16x8xf32>
    %cst_82 = arith.constant dense<0.000000e+00> : vector<8x8xf32>
    %180 = tpu.matmul %176, %179, %cst_82 {dimension_numbers = #tpu.dot_dimension_numbers<[1], [0], [0], [1], [0, 0, 1, 1], [], []>} : vector<8x16xf32>, vector<16x8xf32>, vector<8x8xf32> -> vector<8x8xf32>
    %cst_83 = arith.constant 2.500000e-01 : f32
    %181 = vector.broadcast %cst_83 : f32 to vector<8x8xf32>
    %182 = arith.mulf %180, %181 : vector<8x8xf32>
    %cst_84 = arith.constant dense<0xFF800000> : vector<8xf32>
    %183 = vector.multi_reduction <maximumf>, %182, %cst_84 [1] : vector<8x8xf32> to vector<8xf32>
    %184 = vector.shape_cast %183 : vector<8xf32> to vector<8x1xf32>
    %185 = vector.broadcast %184 : vector<8x1xf32> to vector<8x8xf32>
    %186 = arith.subf %182, %185 : vector<8x8xf32>
    %187 = math.exp %186 : vector<8x8xf32>
    %cst_85 = arith.constant dense<0.000000e+00> : vector<8xf32>
    %188 = vector.multi_reduction <add>, %187, %cst_85 [1] : vector<8x8xf32> to vector<8xf32>
    %189 = vector.shape_cast %188 : vector<8xf32> to vector<8x1xf32>
    %190 = tpu.reciprocal %189 {approx = true} : vector<8x1xf32> -> vector<8x1xf32>
    %191 = vector.broadcast %190 : vector<8x1xf32> to vector<8x8xf32>
    %192 = arith.mulf %187, %191 : vector<8x8xf32>
    %cst_86 = arith.constant dense<0.000000e+00> : vector<8x16xf32>
    %193 = tpu.matmul %192, %178, %cst_86 {dimension_numbers = #tpu.dot_dimension_numbers<[1], [0], [0], [1], [0, 0, 1, 1], [], []>} : vector<8x8xf32>, vector<8x16xf32>, vector<8x16xf32> -> vector<8x16xf32>
    %194 = vector.extract_strided_slice %175 {offsets = [0, 16], sizes = [8, 16], strides = [1, 1]} : vector<8x192xf32> to vector<8x16xf32>
    %195 = vector.extract_strided_slice %175 {offsets = [0, 80], sizes = [8, 16], strides = [1, 1]} : vector<8x192xf32> to vector<8x16xf32>
    %196 = vector.extract_strided_slice %175 {offsets = [0, 144], sizes = [8, 16], strides = [1, 1]} : vector<8x192xf32> to vector<8x16xf32>
    %197 = tpu.transpose %195, [1, 0] : vector<8x16xf32> -> vector<16x8xf32>
    %cst_87 = arith.constant dense<0.000000e+00> : vector<8x8xf32>
    %198 = tpu.matmul %194, %197, %cst_87 {dimension_numbers = #tpu.dot_dimension_numbers<[1], [0], [0], [1], [0, 0, 1, 1], [], []>} : vector<8x16xf32>, vector<16x8xf32>, vector<8x8xf32> -> vector<8x8xf32>
    %cst_88 = arith.constant 2.500000e-01 : f32
    %199 = vector.broadcast %cst_88 : f32 to vector<8x8xf32>
    %200 = arith.mulf %198, %199 : vector<8x8xf32>
    %cst_89 = arith.constant dense<0xFF800000> : vector<8xf32>
    %201 = vector.multi_reduction <maximumf>, %200, %cst_89 [1] : vector<8x8xf32> to vector<8xf32>
    %202 = vector.shape_cast %201 : vector<8xf32> to vector<8x1xf32>
    %203 = vector.broadcast %202 : vector<8x1xf32> to vector<8x8xf32>
    %204 = arith.subf %200, %203 : vector<8x8xf32>
    %205 = math.exp %204 : vector<8x8xf32>
    %cst_90 = arith.constant dense<0.000000e+00> : vector<8xf32>
    %206 = vector.multi_reduction <add>, %205, %cst_90 [1] : vector<8x8xf32> to vector<8xf32>
    %207 = vector.shape_cast %206 : vector<8xf32> to vector<8x1xf32>
    %208 = tpu.reciprocal %207 {approx = true} : vector<8x1xf32> -> vector<8x1xf32>
    %209 = vector.broadcast %208 : vector<8x1xf32> to vector<8x8xf32>
    %210 = arith.mulf %205, %209 : vector<8x8xf32>
    %cst_91 = arith.constant dense<0.000000e+00> : vector<8x16xf32>
    %211 = tpu.matmul %210, %196, %cst_91 {dimension_numbers = #tpu.dot_dimension_numbers<[1], [0], [0], [1], [0, 0, 1, 1], [], []>} : vector<8x8xf32>, vector<8x16xf32>, vector<8x16xf32> -> vector<8x16xf32>
    %212 = vector.extract_strided_slice %175 {offsets = [0, 32], sizes = [8, 16], strides = [1, 1]} : vector<8x192xf32> to vector<8x16xf32>
    %213 = vector.extract_strided_slice %175 {offsets = [0, 96], sizes = [8, 16], strides = [1, 1]} : vector<8x192xf32> to vector<8x16xf32>
    %214 = vector.extract_strided_slice %175 {offsets = [0, 160], sizes = [8, 16], strides = [1, 1]} : vector<8x192xf32> to vector<8x16xf32>
    %215 = tpu.transpose %213, [1, 0] : vector<8x16xf32> -> vector<16x8xf32>
    %cst_92 = arith.constant dense<0.000000e+00> : vector<8x8xf32>
    %216 = tpu.matmul %212, %215, %cst_92 {dimension_numbers = #tpu.dot_dimension_numbers<[1], [0], [0], [1], [0, 0, 1, 1], [], []>} : vector<8x16xf32>, vector<16x8xf32>, vector<8x8xf32> -> vector<8x8xf32>
    %cst_93 = arith.constant 2.500000e-01 : f32
    %217 = vector.broadcast %cst_93 : f32 to vector<8x8xf32>
    %218 = arith.mulf %216, %217 : vector<8x8xf32>
    %cst_94 = arith.constant dense<0xFF800000> : vector<8xf32>
    %219 = vector.multi_reduction <maximumf>, %218, %cst_94 [1] : vector<8x8xf32> to vector<8xf32>
    %220 = vector.shape_cast %219 : vector<8xf32> to vector<8x1xf32>
    %221 = vector.broadcast %220 : vector<8x1xf32> to vector<8x8xf32>
    %222 = arith.subf %218, %221 : vector<8x8xf32>
    %223 = math.exp %222 : vector<8x8xf32>
    %cst_95 = arith.constant dense<0.000000e+00> : vector<8xf32>
    %224 = vector.multi_reduction <add>, %223, %cst_95 [1] : vector<8x8xf32> to vector<8xf32>
    %225 = vector.shape_cast %224 : vector<8xf32> to vector<8x1xf32>
    %226 = tpu.reciprocal %225 {approx = true} : vector<8x1xf32> -> vector<8x1xf32>
    %227 = vector.broadcast %226 : vector<8x1xf32> to vector<8x8xf32>
    %228 = arith.mulf %223, %227 : vector<8x8xf32>
    %cst_96 = arith.constant dense<0.000000e+00> : vector<8x16xf32>
    %229 = tpu.matmul %228, %214, %cst_96 {dimension_numbers = #tpu.dot_dimension_numbers<[1], [0], [0], [1], [0, 0, 1, 1], [], []>} : vector<8x8xf32>, vector<8x16xf32>, vector<8x16xf32> -> vector<8x16xf32>
    %230 = vector.extract_strided_slice %175 {offsets = [0, 48], sizes = [8, 16], strides = [1, 1]} : vector<8x192xf32> to vector<8x16xf32>
    %231 = vector.extract_strided_slice %175 {offsets = [0, 112], sizes = [8, 16], strides = [1, 1]} : vector<8x192xf32> to vector<8x16xf32>
    %232 = vector.extract_strided_slice %175 {offsets = [0, 176], sizes = [8, 16], strides = [1, 1]} : vector<8x192xf32> to vector<8x16xf32>
    %233 = tpu.transpose %231, [1, 0] : vector<8x16xf32> -> vector<16x8xf32>
    %cst_97 = arith.constant dense<0.000000e+00> : vector<8x8xf32>
    %234 = tpu.matmul %230, %233, %cst_97 {dimension_numbers = #tpu.dot_dimension_numbers<[1], [0], [0], [1], [0, 0, 1, 1], [], []>} : vector<8x16xf32>, vector<16x8xf32>, vector<8x8xf32> -> vector<8x8xf32>
    %cst_98 = arith.constant 2.500000e-01 : f32
    %235 = vector.broadcast %cst_98 : f32 to vector<8x8xf32>
    %236 = arith.mulf %234, %235 : vector<8x8xf32>
    %cst_99 = arith.constant dense<0xFF800000> : vector<8xf32>
    %237 = vector.multi_reduction <maximumf>, %236, %cst_99 [1] : vector<8x8xf32> to vector<8xf32>
    %238 = vector.shape_cast %237 : vector<8xf32> to vector<8x1xf32>
    %239 = vector.broadcast %238 : vector<8x1xf32> to vector<8x8xf32>
    %240 = arith.subf %236, %239 : vector<8x8xf32>
    %241 = math.exp %240 : vector<8x8xf32>
    %cst_100 = arith.constant dense<0.000000e+00> : vector<8xf32>
    %242 = vector.multi_reduction <add>, %241, %cst_100 [1] : vector<8x8xf32> to vector<8xf32>
    %243 = vector.shape_cast %242 : vector<8xf32> to vector<8x1xf32>
    %244 = tpu.reciprocal %243 {approx = true} : vector<8x1xf32> -> vector<8x1xf32>
    %245 = vector.broadcast %244 : vector<8x1xf32> to vector<8x8xf32>
    %246 = arith.mulf %241, %245 : vector<8x8xf32>
    %cst_101 = arith.constant dense<0.000000e+00> : vector<8x16xf32>
    %247 = tpu.matmul %246, %232, %cst_101 {dimension_numbers = #tpu.dot_dimension_numbers<[1], [0], [0], [1], [0, 0, 1, 1], [], []>} : vector<8x8xf32>, vector<8x16xf32>, vector<8x16xf32> -> vector<8x16xf32>
    %248 = tpu.concatenate %193, %211, %229, %247 in 1 : vector<8x16xf32>, vector<8x16xf32>, vector<8x16xf32>, vector<8x16xf32> -> vector<8x64xf32>
    %249 = arith.truncf %248 : vector<8x64xf32> to vector<8x64xbf16>
    %c1_102 = arith.constant 1 : index
    %c0_103 = arith.constant 0 : index
    %c0_104 = arith.constant 0 : index
    %250 = vector.load %arg5[%c1_102, %c0_103, %c0_104] : memref<2x64x64xbf16, #tpu.memory_space<vmem>>, vector<1x64x64xbf16>
    %251 = vector.shape_cast %250 : vector<1x64x64xbf16> to vector<64x64xbf16>
    %cst_105 = arith.constant dense<0.000000e+00> : vector<8x64xf32>
    %252 = tpu.matmul %249, %251, %cst_105 {dimension_numbers = #tpu.dot_dimension_numbers<[1], [0], [0], [1], [0, 0, 1, 1], [], []>} : vector<8x64xbf16>, vector<64x64xbf16>, vector<8x64xf32> -> vector<8x64xf32>
    %c1_106 = arith.constant 1 : index
    %c0_107 = arith.constant 0 : index
    %c0_108 = arith.constant 0 : index
    %253 = vector.load %arg6[%c1_106, %c0_107, %c0_108] : memref<2x1x64xf32, #tpu.memory_space<vmem>>, vector<1x1x64xf32>
    %254 = vector.shape_cast %253 : vector<1x1x64xf32> to vector<1x64xf32>
    %255 = vector.broadcast %254 : vector<1x64xf32> to vector<8x64xf32>
    %256 = arith.addf %252, %255 : vector<8x64xf32>
    %257 = arith.addf %167, %256 : vector<8x64xf32>
    %c1_109 = arith.constant 1 : index
    %c0_110 = arith.constant 0 : index
    %c0_111 = arith.constant 0 : index
    %258 = vector.load %arg7[%c1_109, %c0_110, %c0_111] : memref<2x1x64xf32, #tpu.memory_space<vmem>>, vector<1x1x64xf32>
    %259 = vector.shape_cast %258 : vector<1x1x64xf32> to vector<1x64xf32>
    %c1_112 = arith.constant 1 : index
    %c0_113 = arith.constant 0 : index
    %c0_114 = arith.constant 0 : index
    %260 = vector.load %arg8[%c1_112, %c0_113, %c0_114] : memref<2x1x64xf32, #tpu.memory_space<vmem>>, vector<1x1x64xf32>
    %261 = vector.shape_cast %260 : vector<1x1x64xf32> to vector<1x64xf32>
    %cst_115 = arith.constant dense<0.000000e+00> : vector<8xf32>
    %262 = vector.multi_reduction <add>, %257, %cst_115 [1] : vector<8x64xf32> to vector<8xf32>
    %263 = vector.shape_cast %262 : vector<8xf32> to vector<8x1xf32>
    %cst_116 = arith.constant 6.400000e+01 : f32
    %264 = vector.broadcast %cst_116 : f32 to vector<8x1xf32>
    %265 = arith.divf %263, %264 : vector<8x1xf32>
    %266 = vector.broadcast %265 : vector<8x1xf32> to vector<8x64xf32>
    %267 = arith.subf %257, %266 : vector<8x64xf32>
    %268 = arith.mulf %267, %267 : vector<8x64xf32>
    %cst_117 = arith.constant dense<0.000000e+00> : vector<8xf32>
    %269 = vector.multi_reduction <add>, %268, %cst_117 [1] : vector<8x64xf32> to vector<8xf32>
    %270 = vector.shape_cast %269 : vector<8xf32> to vector<8x1xf32>
    %cst_118 = arith.constant 6.400000e+01 : f32
    %271 = vector.broadcast %cst_118 : f32 to vector<8x1xf32>
    %272 = arith.divf %270, %271 : vector<8x1xf32>
    %273 = vector.broadcast %265 : vector<8x1xf32> to vector<8x64xf32>
    %274 = arith.subf %257, %273 : vector<8x64xf32>
    %cst_119 = arith.constant 9.99999974E-6 : f32
    %275 = vector.broadcast %cst_119 : f32 to vector<8x1xf32>
    %276 = arith.addf %272, %275 : vector<8x1xf32>
    %277 = math.rsqrt %276 : vector<8x1xf32>
    %278 = vector.broadcast %277 : vector<8x1xf32> to vector<8x64xf32>
    %279 = arith.mulf %274, %278 : vector<8x64xf32>
    %280 = vector.broadcast %259 : vector<1x64xf32> to vector<8x64xf32>
    %281 = arith.mulf %279, %280 : vector<8x64xf32>
    %282 = vector.broadcast %261 : vector<1x64xf32> to vector<8x64xf32>
    %283 = arith.addf %281, %282 : vector<8x64xf32>
    %284 = arith.truncf %283 : vector<8x64xf32> to vector<8x64xbf16>
    %c1_120 = arith.constant 1 : index
    %c0_121 = arith.constant 0 : index
    %c0_122 = arith.constant 0 : index
    %285 = vector.load %arg11[%c1_120, %c0_121, %c0_122] : memref<2x64x2048xbf16, #tpu.memory_space<vmem>>, vector<1x64x2048xbf16>
    %286 = vector.shape_cast %285 : vector<1x64x2048xbf16> to vector<64x2048xbf16>
    %cst_123 = arith.constant dense<0.000000e+00> : vector<8x2048xf32>
    %287 = tpu.matmul %284, %286, %cst_123 {dimension_numbers = #tpu.dot_dimension_numbers<[1], [0], [0], [1], [0, 0, 1, 1], [], []>} : vector<8x64xbf16>, vector<64x2048xbf16>, vector<8x2048xf32> -> vector<8x2048xf32>
    %c1_124 = arith.constant 1 : index
    %c0_125 = arith.constant 0 : index
    %c0_126 = arith.constant 0 : index
    %288 = vector.load %arg12[%c1_124, %c0_125, %c0_126] : memref<2x1x2048xf32, #tpu.memory_space<vmem>>, vector<1x1x2048xf32>
    %289 = vector.shape_cast %288 : vector<1x1x2048xf32> to vector<1x2048xf32>
    %290 = vector.broadcast %289 : vector<1x2048xf32> to vector<8x2048xf32>
    %291 = arith.addf %287, %290 : vector<8x2048xf32>
    %cst_127 = arith.constant 0.000000e+00 : f32
    %292 = vector.broadcast %cst_127 : f32 to vector<8x2048xf32>
    %293 = arith.maximumf %291, %292 : vector<8x2048xf32>
    %294 = arith.truncf %293 : vector<8x2048xf32> to vector<8x2048xbf16>
    %c1_128 = arith.constant 1 : index
    %c0_129 = arith.constant 0 : index
    %c0_130 = arith.constant 0 : index
    %295 = vector.load %arg13[%c1_128, %c0_129, %c0_130] : memref<2x2048x64xbf16, #tpu.memory_space<vmem>>, vector<1x2048x64xbf16>
    %296 = vector.shape_cast %295 : vector<1x2048x64xbf16> to vector<2048x64xbf16>
    %cst_131 = arith.constant dense<0.000000e+00> : vector<8x64xf32>
    %297 = tpu.matmul %294, %296, %cst_131 {dimension_numbers = #tpu.dot_dimension_numbers<[1], [0], [0], [1], [0, 0, 1, 1], [], []>} : vector<8x2048xbf16>, vector<2048x64xbf16>, vector<8x64xf32> -> vector<8x64xf32>
    %c1_132 = arith.constant 1 : index
    %c0_133 = arith.constant 0 : index
    %c0_134 = arith.constant 0 : index
    %298 = vector.load %arg14[%c1_132, %c0_133, %c0_134] : memref<2x1x64xf32, #tpu.memory_space<vmem>>, vector<1x1x64xf32>
    %299 = vector.shape_cast %298 : vector<1x1x64xf32> to vector<1x64xf32>
    %300 = vector.broadcast %299 : vector<1x64xf32> to vector<8x64xf32>
    %301 = arith.addf %297, %300 : vector<8x64xf32>
    %302 = arith.addf %283, %301 : vector<8x64xf32>
    %c1_135 = arith.constant 1 : index
    %c0_136 = arith.constant 0 : index
    %c0_137 = arith.constant 0 : index
    %303 = vector.load %arg9[%c1_135, %c0_136, %c0_137] : memref<2x1x64xf32, #tpu.memory_space<vmem>>, vector<1x1x64xf32>
    %304 = vector.shape_cast %303 : vector<1x1x64xf32> to vector<1x64xf32>
    %c1_138 = arith.constant 1 : index
    %c0_139 = arith.constant 0 : index
    %c0_140 = arith.constant 0 : index
    %305 = vector.load %arg10[%c1_138, %c0_139, %c0_140] : memref<2x1x64xf32, #tpu.memory_space<vmem>>, vector<1x1x64xf32>
    %306 = vector.shape_cast %305 : vector<1x1x64xf32> to vector<1x64xf32>
    %cst_141 = arith.constant dense<0.000000e+00> : vector<8xf32>
    %307 = vector.multi_reduction <add>, %302, %cst_141 [1] : vector<8x64xf32> to vector<8xf32>
    %308 = vector.shape_cast %307 : vector<8xf32> to vector<8x1xf32>
    %cst_142 = arith.constant 6.400000e+01 : f32
    %309 = vector.broadcast %cst_142 : f32 to vector<8x1xf32>
    %310 = arith.divf %308, %309 : vector<8x1xf32>
    %311 = vector.broadcast %310 : vector<8x1xf32> to vector<8x64xf32>
    %312 = arith.subf %302, %311 : vector<8x64xf32>
    %313 = arith.mulf %312, %312 : vector<8x64xf32>
    %cst_143 = arith.constant dense<0.000000e+00> : vector<8xf32>
    %314 = vector.multi_reduction <add>, %313, %cst_143 [1] : vector<8x64xf32> to vector<8xf32>
    %315 = vector.shape_cast %314 : vector<8xf32> to vector<8x1xf32>
    %cst_144 = arith.constant 6.400000e+01 : f32
    %316 = vector.broadcast %cst_144 : f32 to vector<8x1xf32>
    %317 = arith.divf %315, %316 : vector<8x1xf32>
    %318 = vector.broadcast %310 : vector<8x1xf32> to vector<8x64xf32>
    %319 = arith.subf %302, %318 : vector<8x64xf32>
    %cst_145 = arith.constant 9.99999974E-6 : f32
    %320 = vector.broadcast %cst_145 : f32 to vector<8x1xf32>
    %321 = arith.addf %317, %320 : vector<8x1xf32>
    %322 = math.rsqrt %321 : vector<8x1xf32>
    %323 = vector.broadcast %322 : vector<8x1xf32> to vector<8x64xf32>
    %324 = arith.mulf %319, %323 : vector<8x64xf32>
    %325 = vector.broadcast %304 : vector<1x64xf32> to vector<8x64xf32>
    %326 = arith.mulf %324, %325 : vector<8x64xf32>
    %327 = vector.broadcast %306 : vector<1x64xf32> to vector<8x64xf32>
    %328 = arith.addf %326, %327 : vector<8x64xf32>
    %329 = arith.truncf %328 : vector<8x64xf32> to vector<8x64xbf16>
    %c0_146 = arith.constant 0 : index
    %c0_147 = arith.constant 0 : index
    %330 = vector.load %arg15[%c0_146, %c0_147] : memref<64x3xbf16, #tpu.memory_space<vmem>>, vector<64x3xbf16>
    %cst_148 = arith.constant dense<0.000000e+00> : vector<8x3xf32>
    %331 = tpu.matmul %329, %330, %cst_148 {dimension_numbers = #tpu.dot_dimension_numbers<[1], [0], [0], [1], [0, 0, 1, 1], [], []>} : vector<8x64xbf16>, vector<64x3xbf16>, vector<8x3xf32> -> vector<8x3xf32>
    %c0_149 = arith.constant 0 : index
    %c0_150 = arith.constant 0 : index
    %332 = vector.load %arg16[%c0_149, %c0_150] : memref<1x3xf32, #tpu.memory_space<vmem>>, vector<1x3xf32>
    %333 = vector.broadcast %332 : vector<1x3xf32> to vector<8x3xf32>
    %334 = arith.addf %331, %333 : vector<8x3xf32>
    %c0_151 = arith.constant 0 : index
    %c0_152 = arith.constant 0 : index
    %335 = vector.load %arg17[%c0_151, %c0_152] : memref<8x3xf32, #tpu.memory_space<vmem>>, vector<8x3xf32>
    tpu.vector_store %arg17[%c0_151, %c0_152], %334 {strides = array<i32>} : memref<8x3xf32, #tpu.memory_space<vmem>>, vector<8x3xf32>,
    return
  }
}

</mosaic_0001>

<llo_original>
// kernel: tpu_custom_call.1
$region0: #{tpu_custom_call.1}
  #allocation0 [shape = 'u32[]', space=smem, size = 0x4, offset = 0x4, fixed_abs, tag = 'smem constant byte address 0x4 - core index']
  #allocation1 [shape = 'u32[144,128]{1,0:T(1,128)}', space=vmem, size = 0x12000, scoped, tag = 'internal scratch']
  %s0 = inlined_call_operand.vmem [shape: f32[8,32], index: 0, kind: input, shape index: {}]
  %s1 = inlined_call_operand.vmem [shape: bf16[32,64], index: 1, kind: input, shape index: {}]
  %s2 = inlined_call_operand.vmem [shape: f32[1,64], index: 2, kind: input, shape index: {}]
  %s3 = inlined_call_operand.vmem [shape: bf16[2,64,192], index: 3, kind: input, shape index: {}]
  %s4 = inlined_call_operand.vmem [shape: f32[2,1,192], index: 4, kind: input, shape index: {}]
  %s5 = inlined_call_operand.vmem [shape: bf16[2,64,64], index: 5, kind: input, shape index: {}]
  %s6 = inlined_call_operand.vmem [shape: f32[2,1,64], index: 6, kind: input, shape index: {}]
  %s7 = inlined_call_operand.vmem [shape: f32[2,1,64], index: 7, kind: input, shape index: {}]
  %s8 = inlined_call_operand.vmem [shape: f32[2,1,64], index: 8, kind: input, shape index: {}]
  %s9 = inlined_call_operand.vmem [shape: f32[2,1,64], index: 9, kind: input, shape index: {}]
  %s10 = inlined_call_operand.vmem [shape: f32[2,1,64], index: 10, kind: input, shape index: {}]
  %s11 = inlined_call_operand.vmem [shape: bf16[2,64,2048], index: 11, kind: input, shape index: {}]
  %s12 = inlined_call_operand.vmem [shape: f32[2,1,2048], index: 12, kind: input, shape index: {}]
  %s13 = inlined_call_operand.vmem [shape: bf16[2,2048,64], index: 13, kind: input, shape index: {}]
  %s14 = inlined_call_operand.vmem [shape: f32[2,1,64], index: 14, kind: input, shape index: {}]
  %s15 = inlined_call_operand.vmem [shape: bf16[64,3], index: 15, kind: input, shape index: {}]
  %s16 = inlined_call_operand.vmem [shape: f32[1,3], index: 16, kind: input, shape index: {}]
  %s17 = inlined_call_operand.vmem [shape: f32[8,3], index: 17, kind: output, shape index: {}]
  %s18 = sld [smem:[#allocation0]]
  $region78: #{tpu_custom_call.1} parent=0
    _
  %s20 = ssub.s32 1, %s18
  %s21 = scalar_select 0, %s20, %s18
  // Predicated region
  $region2: #{tpu_custom_call.1} parent=0 // pred_check
    _
  $region3: #{tpu_custom_call.1} parent=0 // pred_check_branch
    %23 = sbr.rel (0) target = $region5
  $region4: #{tpu_custom_call.1} parent=0 // pred_region
    _
  $region5: #{tpu_custom_call.1} parent=0 // pred_fallthru
    _
  // Predicated region
  $region6: #{tpu_custom_call.1} parent=0 // pred_check
    _
  $region7: #{tpu_custom_call.1} parent=0 // pred_check_branch
    %25 = sbr.rel (0) target = $region9
  $region8: #{tpu_custom_call.1} parent=0 // pred_region
    _
  $region9: #{tpu_custom_call.1} parent=0 // pred_fallthru
    _
  // Predicated region
  $region10: #{tpu_custom_call.1} parent=0 // pred_check
    _
  $region11: #{tpu_custom_call.1} parent=0 // pred_check_branch
    %27 = sbr.rel (0) target = $region13
  $region12: #{tpu_custom_call.1} parent=0 // pred_region
    _
  $region13: #{tpu_custom_call.1} parent=0 // pred_fallthru
    _
  // Predicated region
  $region14: #{tpu_custom_call.1} parent=0 // pred_check
    _
  $region15: #{tpu_custom_call.1} parent=0 // pred_check_branch
    %29 = sbr.rel (0) target = $region17
  $region16: #{tpu_custom_call.1} parent=0 // pred_region
    _
  $region17: #{tpu_custom_call.1} parent=0 // pred_fallthru
    _
  // Predicated region
  $region18: #{tpu_custom_call.1} parent=0 // pred_check
    _
  $region19: #{tpu_custom_call.1} parent=0 // pred_check_branch
    %31 = sbr.rel (0) target = $region21
  $region20: #{tpu_custom_call.1} parent=0 // pred_region
    _
  $region21: #{tpu_custom_call.1} parent=0 // pred_fallthru
    _
  // Predicated region
  $region22: #{tpu_custom_call.1} parent=0 // pred_check
    _
  $region23: #{tpu_custom_call.1} parent=0 // pred_check_branch
    %33 = sbr.rel (0) target = $region25
  $region24: #{tpu_custom_call.1} parent=0 // pred_region
    _
  $region25: #{tpu_custom_call.1} parent=0 // pred_fallthru
    _
  // Predicated region
  $region26: #{tpu_custom_call.1} parent=0 // pred_check
    _
  $region27: #{tpu_custom_call.1} parent=0 // pred_check_branch
    %35 = sbr.rel (0) target = $region29
  $region28: #{tpu_custom_call.1} parent=0 // pred_region
    _
  $region29: #{tpu_custom_call.1} parent=0 // pred_fallthru
    _
  // Predicated region
  $region30: #{tpu_custom_call.1} parent=0 // pred_check
    _
  $region31: #{tpu_custom_call.1} parent=0 // pred_check_branch
    %37 = sbr.rel (0) target = $region33
  $region32: #{tpu_custom_call.1} parent=0 // pred_region
    _
  $region33: #{tpu_custom_call.1} parent=0 // pred_fallthru
    _
  // Predicated region
  $region34: #{tpu_custom_call.1} parent=0 // pred_check
    _
  $region35: #{tpu_custom_call.1} parent=0 // pred_check_branch
    %39 = sbr.rel (0) target = $region37
  $region36: #{tpu_custom_call.1} parent=0 // pred_region
    _
  $region37: #{tpu_custom_call.1} parent=0 // pred_fallthru
    _
  // Predicated region
  $region38: #{tpu_custom_call.1} parent=0 // pred_check
    _
  $region39: #{tpu_custom_call.1} parent=0 // pred_check_branch
    %41 = sbr.rel (0) target = $region41
  $region40: #{tpu_custom_call.1} parent=0 // pred_region
    _
  $region41: #{tpu_custom_call.1} parent=0 // pred_fallthru
    _
  // Predicated region
  $region42: #{tpu_custom_call.1} parent=0 // pred_check
    _
  $region43: #{tpu_custom_call.1} parent=0 // pred_check_branch
    %43 = sbr.rel (0) target = $region45
  $region44: #{tpu_custom_call.1} parent=0 // pred_region
    _
  $region45: #{tpu_custom_call.1} parent=0 // pred_fallthru
    _
  // Predicated region
  $region46: #{tpu_custom_call.1} parent=0 // pred_check
    _
  $region47: #{tpu_custom_call.1} parent=0 // pred_check_branch
    %45 = sbr.rel (0) target = $region49
  $region48: #{tpu_custom_call.1} parent=0 // pred_region
    _
  $region49: #{tpu_custom_call.1} parent=0 // pred_fallthru
    _
  // Predicated region
  $region50: #{tpu_custom_call.1} parent=0 // pred_check
    _
  $region51: #{tpu_custom_call.1} parent=0 // pred_check_branch
    %47 = sbr.rel (0) target = $region53
  $region52: #{tpu_custom_call.1} parent=0 // pred_region
    _
  $region53: #{tpu_custom_call.1} parent=0 // pred_fallthru
    _
  // Predicated region
  $region54: #{tpu_custom_call.1} parent=0 // pred_check
    _
  $region55: #{tpu_custom_call.1} parent=0 // pred_check_branch
    %49 = sbr.rel (0) target = $region57
  $region56: #{tpu_custom_call.1} parent=0 // pred_region
    _
  $region57: #{tpu_custom_call.1} parent=0 // pred_fallthru
    _
  // Predicated region
  $region58: #{tpu_custom_call.1} parent=0 // pred_check
    _
  $region59: #{tpu_custom_call.1} parent=0 // pred_check_branch
    %51 = sbr.rel (0) target = $region61
  $region60: #{tpu_custom_call.1} parent=0 // pred_region
    _
  $region61: #{tpu_custom_call.1} parent=0 // pred_fallthru
    _
  // Predicated region
  $region62: #{tpu_custom_call.1} parent=0 // pred_check
    _
  $region63: #{tpu_custom_call.1} parent=0 // pred_check_branch
    %53 = sbr.rel (0) target = $region65
  $region64: #{tpu_custom_call.1} parent=0 // pred_region
    _
  $region65: #{tpu_custom_call.1} parent=0 // pred_fallthru
    _
  // Predicated region
  $region66: #{tpu_custom_call.1} parent=0 // pred_check
    _
  $region67: #{tpu_custom_call.1} parent=0 // pred_check_branch
    %55 = sbr.rel (0) target = $region69
  $region68: #{tpu_custom_call.1} parent=0 // pred_region
    _
  $region69: #{tpu_custom_call.1} parent=0 // pred_fallthru
    _
  %v57 = vld [vmem:[%s0] sm:$0xff]
  %v58 = vpack.c.bf16 %v57, %v57
  %v59 = vld [vmem:[%s1] sm:$0xf]
  %v60 = vld [vmem:[%s1 + $0x4] sm:$0xf]
  %v61 = vld [vmem:[%s1 + $0x8] sm:$0xf]
  %v62 = vld [vmem:[%s1 + $0xc] sm:$0xf]
  %v63 = vld [vmem:[%s2] sm:$0x1]
  %v65 = vlaneseq
  %v66 = vshrl.u32 %v65, 7
  %v67 = vsub.s32 0, %v66
  %v68 = vrot.slane %v63, %v67
  %v74 = vunpack.c.l.b16 %v59
  %v75 = vunpack.c.l.b16 %v60
  %v76 = vunpack.c.l.b16 %v61
  %v77 = vunpack.c.l.b16 %v62
  %v78 = vpack.c.b16 %v75, %v74
  %v79 = vpack.c.b16 %v77, %v76
  %vm82 = vcmask 261120
  %v84 = vsel %vm82, %v58, 0
  %86 = vmatprep.subr.bf16.mxu0 0
  %87 = vmatpush1.bf16.msra.mxu0 %v78
  %88 = vmatprep.subr.bf16.mxu0 0
  %89 = vmatpush1.bf16.msra.mxu0 %v79
  %90 = vmatprep.subr.bf16.mxu0 0
  %91 = vmatpush1.bf16.msra.mxu0 0
  %92 = vmatprep.subr.bf16.mxu0 0
  %93 = vmatpush1.bf16.msra.mxu0 0
  %94 = vmatprep.subr.bf16.mxu0 0
  %95 = vmatpush1.bf16.msra.mxu0 0
  %96 = vmatprep.subr.bf16.mxu0 0
  %97 = vmatpush1.bf16.msra.mxu0 0
  %98 = vmatprep.subr.bf16.mxu0 0
  %99 = vmatpush1.bf16.msra.mxu0 0
  %100 = vmatprep.subr.bf16.mxu0 0
  %101 = vmatpush1.bf16.msra.mxu0 0
  %102 = vmatprep.subr.bf16.mxu0 0
  %103 = vmatpush1.bf16.msra.mxu0 0
  %104 = vmatprep.subr.bf16.mxu0 0
  %105 = vmatpush1.bf16.msra.mxu0 0
  %106 = vmatprep.subr.bf16.mxu0 0
  %107 = vmatpush1.bf16.msra.mxu0 0
  %108 = vmatprep.subr.bf16.mxu0 0
  %109 = vmatpush1.bf16.msra.mxu0 0
  %110 = vmatprep.subr.bf16.mxu0 0
  %111 = vmatpush1.bf16.msra.mxu0 0
  %112 = vmatprep.subr.bf16.mxu0 0
  %113 = vmatpush1.bf16.msra.mxu0 0
  %114 = vmatprep.subr.bf16.mxu0 0
  %115 = vmatpush1.bf16.msra.mxu0 0
  %116 = vmatprep.subr.bf16.mxu0 0
  %117 = vmatpush1.bf16.msra.mxu0 0
  %118 = vmatprep.mubr.bf16.mxu0 0
  %119 = vmatmul.mubr.bf16.gmra.mrb[0].mxu0 %v84
  %v120 = vpop.f32.mrb[0].mxu0
  %v121 = vadd.f32 %v68, %v120
  %v122 = vpop.f32.mrb[0].mxu0
  %v123 = vpop.f32.mrb[0].mxu0
  %v124 = vpop.f32.mrb[0].mxu0
  %125 = vdwg.mxu0
  %v126 = vpack.c.bf16 %v121, %v121
  %v127 = vld [vmem:[%s3] sm:$0xff]
  %v128 = vld [vmem:[%s3 + $0x8] sm:$0xff]
  %v129 = vld [vmem:[%s3 + $0x10] sm:$0xff]
  %v130 = vld [vmem:[%s3 + $0x18] sm:$0xff]
  %v131 = vld [vmem:[%s3 + $0x20] sm:$0xff]
  %v132 = vld [vmem:[%s3 + $0x28] sm:$0xff]
  %v133 = vld [vmem:[%s3 + $0x30] sm:$0xff]
  %v134 = vld [vmem:[%s3 + $0x38] sm:$0xff]
  %v135 = vld [vmem:[%s4] sm:$0x3]
  %v137 = vlaneseq
  %v138 = vshrl.u32 %v137, 7
  %v139 = vsub.s32 0, %v138
  %v140 = vrot.slane %v135, %v139
  %v141 = vlaneseq
  %v142 = vshrl.u32 %v141, 7
  %v143 = vsub.s32 1, %v142
  %v144 = vrot.slane %v135, %v143
  %v155 = vunpack.c.l.b16 %v127
  %v156 = vunpack.c.h.b16 %v127
  %v157 = vunpack.c.l.b16 %v128
  %v158 = vunpack.c.h.b16 %v128
  %v159 = vunpack.c.l.b16 %v129
  %v160 = vunpack.c.h.b16 %v129
  %v161 = vunpack.c.l.b16 %v130
  %v162 = vunpack.c.h.b16 %v130
  %v163 = vunpack.c.l.b16 %v131
  %v164 = vunpack.c.h.b16 %v131
  %v165 = vunpack.c.l.b16 %v132
  %v166 = vunpack.c.h.b16 %v132
  %v167 = vunpack.c.l.b16 %v133
  %v168 = vunpack.c.h.b16 %v133
  %v169 = vunpack.c.l.b16 %v134
  %v170 = vunpack.c.h.b16 %v134
  %v171 = vpack.c.b16 %v157, %v155
  %v172 = vpack.c.b16 %v158, %v156
  %v173 = vpack.c.b16 %v161, %v159
  %v174 = vpack.c.b16 %v162, %v160
  %v175 = vpack.c.b16 %v165, %v163
  %v176 = vpack.c.b16 %v166, %v164
  %v177 = vpack.c.b16 %v169, %v167
  %v178 = vpack.c.b16 %v170, %v168
  %vm187 = vcmask 523264
  %v189 = vsel %vm187, %v126, 0
  %191 = vmatprep.subr.bf16.mxu0 %v172
  %192 = vmatpush1.bf16.msra.mxu0 %v171
  %193 = vmatprep.subr.bf16.mxu0 %v174
  %194 = vmatpush1.bf16.msra.mxu0 %v173
  %195 = vmatprep.subr.bf16.mxu0 %v176
  %196 = vmatpush1.bf16.msra.mxu0 %v175
  %197 = vmatprep.subr.bf16.mxu0 %v178
  %198 = vmatpush1.bf16.msra.mxu0 %v177
  %199 = vmatprep.subr.bf16.mxu0 0
  %200 = vmatpush1.bf16.msra.mxu0 0
  %201 = vmatprep.subr.bf16.mxu0 0
  %202 = vmatpush1.bf16.msra.mxu0 0
  %203 = vmatprep.subr.bf16.mxu0 0
  %204 = vmatpush1.bf16.msra.mxu0 0
  %205 = vmatprep.subr.bf16.mxu0 0
  %206 = vmatpush1.bf16.msra.mxu0 0
  %207 = vmatprep.subr.bf16.mxu0 0
  %208 = vmatpush1.bf16.msra.mxu0 0
  %209 = vmatprep.subr.bf16.mxu0 0
  %210 = vmatpush1.bf16.msra.mxu0 0
  %211 = vmatprep.subr.bf16.mxu0 0
  %212 = vmatpush1.bf16.msra.mxu0 0
  %213 = vmatprep.subr.bf16.mxu0 0
  %214 = vmatpush1.bf16.msra.mxu0 0
  %215 = vmatprep.subr.bf16.mxu0 0
  %216 = vmatpush1.bf16.msra.mxu0 0
  %217 = vmatprep.subr.bf16.mxu0 0
  %218 = vmatpush1.bf16.msra.mxu0 0
  %219 = vmatprep.subr.bf16.mxu0 0
  %220 = vmatpush1.bf16.msra.mxu0 0
  %221 = vmatprep.subr.bf16.mxu0 0
  %222 = vmatpush1.bf16.msra.mxu0 0
  %223 = vmatprep.mubr.bf16.mxu0 0
  %224 = vmatmul.mubr.bf16.gmra.mrb[0].mxu0 %v189
  %v225 = vpop.f32.mrb[0].mxu0
  %v226 = vadd.f32 %v140, %v225
  %v227 = vpop.f32.mrb[0].mxu0
  %v228 = vadd.f32 %v144, %v227
  %v229 = vpop.f32.mrb[0].mxu0
  %v230 = vpop.f32.mrb[0].mxu0
  %231 = vdwg.mxu0
  %233 = vrot.lane.b32.xlu0 %v226, 64
  %v234 = vpop.permute.xlu0 %233
  %vm235 = vcmask 130048
  %v236 = vsel %vm235, %v226, 0
  %v238 = vsel %vm235, %v234, 0
  %240 = vmatprep.subr.mxu0 0.0
  %241 = vmatpush1.xpose.msra.mxu0 %v238
  %242 = vmatprep.subr.mxu0 0.0
  %243 = vmatpush1.xpose.msra.mxu0 0.0
  %244 = vmatprep.subr.mxu0 0.0
  %245 = vmatpush1.xpose.msra.mxu0 0.0
  %246 = vmatprep.subr.mxu0 0.0
  %247 = vmatpush1.xpose.msra.mxu0 0.0
  %248 = vmatprep.subr.mxu0 0.0
  %249 = vmatpush1.xpose.msra.mxu0 0.0
  %250 = vmatprep.subr.mxu0 0.0
  %251 = vmatpush1.xpose.msra.mxu0 0.0
  %252 = vmatprep.subr.mxu0 0.0
  %253 = vmatpush1.xpose.msra.mxu0 0.0
  %254 = vmatprep.subr.mxu0 0.0
  %255 = vmatpush1.xpose.msra.mxu0 0.0
  %256 = vmatprep.subr.mxu0 0.0
  %257 = vmatpush1.xpose.msra.mxu0 0.0
  %258 = vmatprep.subr.mxu0 0.0
  %259 = vmatpush1.xpose.msra.mxu0 0.0
  %260 = vmatprep.subr.mxu0 0.0
  %261 = vmatpush1.xpose.msra.mxu0 0.0
  %262 = vmatprep.subr.mxu0 0.0
  %263 = vmatpush1.xpose.msra.mxu0 0.0
  %264 = vmatprep.subr.mxu0 0.0
  %265 = vmatpush1.xpose.msra.mxu0 0.0
  %266 = vmatprep.subr.mxu0 0.0
  %267 = vmatpush1.xpose.msra.mxu0 0.0
  %268 = vmatprep.subr.mxu0 0.0
  %269 = vmatpush1.xpose.msra.mxu0 0.0
  %270 = vmatprep.subr.mxu0 0.0
  %271 = vmatpush1.xpose.msra.mxu0 0.0
  %272 = vmatprep.subr.mxu0 0.0
  %273 = vmatpush1.xpose.msra.mxu0 0.0
  %274 = vmatprep.subr.mxu0 0.0
  %275 = vmatpush1.xpose.msra.mxu0 0.0
  %276 = vmatprep.subr.mxu0 0.0
  %277 = vmatpush1.xpose.msra.mxu0 0.0
  %278 = vmatprep.subr.mxu0 0.0
  %279 = vmatpush1.xpose.msra.mxu0 0.0
  %280 = vmatprep.subr.mxu0 0.0
  %281 = vmatpush1.xpose.msra.mxu0 0.0
  %282 = vmatprep.subr.mxu0 0.0
  %283 = vmatpush1.xpose.msra.mxu0 0.0
  %284 = vmatprep.subr.mxu0 0.0
  %285 = vmatpush1.xpose.msra.mxu0 0.0
  %286 = vmatprep.subr.mxu0 0.0
  %287 = vmatpush1.xpose.msra.mxu0 0.0
  %288 = vmatprep.subr.mxu0 0.0
  %289 = vmatpush1.xpose.msra.mxu0 0.0
  %290 = vmatprep.subr.mxu0 0.0
  %291 = vmatpush1.xpose.msra.mxu0 0.0
  %292 = vmatprep.subr.mxu0 0.0
  %293 = vmatpush1.xpose.msra.mxu0 0.0
  %294 = vmatprep.subr.mxu0 0.0
  %295 = vmatpush1.xpose.msra.mxu0 0.0
  %296 = vmatprep.subr.mxu0 0.0
  %297 = vmatpush1.xpose.msra.mxu0 0.0
  %298 = vmatprep.subr.mxu0 0.0
  %299 = vmatpush1.xpose.msra.mxu0 0.0
  %300 = vmatprep.subr.mxu0 0.0
  %301 = vmatpush1.xpose.msra.mxu0 0.0
  %302 = vmatprep.subr.mxu0 0.0
  %303 = vmatpush1.xpose.msra.mxu0 0.0
  %304 = vmatprep.mubr.f32.mxu0 0.0
  %305 = vmatmul.mubr.f32.gmra.mrb[0].mxu0 %v236
  %v306 = vpop.f32.mrb[0].mxu0
  %v307 = vadd.f32 0.0, %v306
  %v308 = vpop.f32.mrb[0].mxu0
  %309 = vdwg.mxu0
  %v310 = vmul.f32 %v307, 0.25
  %vm311 = vcmask 64512
  %v312 = vsel %vm311, %v310, -inf
  %313 = vmax.xlane.f32.xlu0 %v312
  %v314 = vpop.xlane.xlu0 %313
  %v315 = vsub.f32 %v310, %v314
  %v316 = vmul.f32 %v315, 1.442695
  %v317 = vpow.pop %v316
  %v318 = vsel %vm311, %v317, 0.0
  %319 = vadd.xlane.f32.xlu0 %v318
  %v320 = vpop.xlane.xlu0 %319
  %v321 = vrcp.pop %v320
  %v322 = vmul.f32 %v317, %v321
  %v324 = vsel %vm311, %v322, 0
  %326 = vmatprep.subr.mxu0 0.0
  %327 = vmatpush1.msra.mxu0 %v228
  %328 = vmatprep.subr.mxu0 0.0
  %329 = vmatpush1.msra.mxu0 0.0
  %330 = vmatprep.subr.mxu0 0.0
  %331 = vmatpush1.msra.mxu0 0.0
  %332 = vmatprep.subr.mxu0 0.0
  %333 = vmatpush1.msra.mxu0 0.0
  %334 = vmatprep.subr.mxu0 0.0
  %335 = vmatpush1.msra.mxu0 0.0
  %336 = vmatprep.subr.mxu0 0.0
  %337 = vmatpush1.msra.mxu0 0.0
  %338 = vmatprep.subr.mxu0 0.0
  %339 = vmatpush1.msra.mxu0 0.0
  %340 = vmatprep.subr.mxu0 0.0
  %341 = vmatpush1.msra.mxu0 0.0
  %342 = vmatprep.subr.mxu0 0.0
  %343 = vmatpush1.msra.mxu0 0.0
  %344 = vmatprep.subr.mxu0 0.0
  %345 = vmatpush1.msra.mxu0 0.0
  %346 = vmatprep.subr.mxu0 0.0
  %347 = vmatpush1.msra.mxu0 0.0
  %348 = vmatprep.subr.mxu0 0.0
  %349 = vmatpush1.msra.mxu0 0.0
  %350 = vmatprep.subr.mxu0 0.0
  %351 = vmatpush1.msra.mxu0 0.0
  %352 = vmatprep.subr.mxu0 0.0
  %353 = vmatpush1.msra.mxu0 0.0
  %354 = vmatprep.subr.mxu0 0.0
  %355 = vmatpush1.msra.mxu0 0.0
  %356 = vmatprep.subr.mxu0 0.0
  %357 = vmatpush1.msra.mxu0 0.0
  %358 = vmatprep.subr.mxu0 0.0
  %359 = vmatpush1.msra.mxu0 0.0
  %360 = vmatprep.subr.mxu0 0.0
  %361 = vmatpush1.msra.mxu0 0.0
  %362 = vmatprep.subr.mxu0 0.0
  %363 = vmatpush1.msra.mxu0 0.0
  %364 = vmatprep.subr.mxu0 0.0
  %365 = vmatpush1.msra.mxu0 0.0
  %366 = vmatprep.subr.mxu0 0.0
  %367 = vmatpush1.msra.mxu0 0.0
  %368 = vmatprep.subr.mxu0 0.0
  %369 = vmatpush1.msra.mxu0 0.0
  %370 = vmatprep.subr.mxu0 0.0
  %371 = vmatpush1.msra.mxu0 0.0
  %372 = vmatprep.subr.mxu0 0.0
  %373 = vmatpush1.msra.mxu0 0.0
  %374 = vmatprep.subr.mxu0 0.0
  %375 = vmatpush1.msra.mxu0 0.0
  %376 = vmatprep.subr.mxu0 0.0
  %377 = vmatpush1.msra.mxu0 0.0
  %378 = vmatprep.subr.mxu0 0.0
  %379 = vmatpush1.msra.mxu0 0.0
  %380 = vmatprep.subr.mxu0 0.0
  %381 = vmatpush1.msra.mxu0 0.0
  %382 = vmatprep.subr.mxu0 0.0
  %383 = vmatpush1.msra.mxu0 0.0
  %384 = vmatprep.subr.mxu0 0.0
  %385 = vmatpush1.msra.mxu0 0.0
  %386 = vmatprep.subr.mxu0 0.0
  %387 = vmatpush1.msra.mxu0 0.0
  %388 = vmatprep.subr.mxu0 0.0
  %389 = vmatpush1.msra.mxu0 0.0
  %390 = vmatprep.mubr.f32.mxu0 0.0
  %391 = vmatmul.mubr.f32.gmra.mrb[0].mxu0 %v324
  %v392 = vpop.f32.mrb[0].mxu0
  %v393 = vadd.f32 0.0, %v392
  %v394 = vpop.f32.mrb[0].mxu0
  %395 = vdwg.mxu0
  %396 = vrot.lane.b32.xlu0 %v226, 112
  %v397 = vpop.permute.xlu0 %396
  %398 = vrot.lane.b32.xlu0 %v226, 48
  %v399 = vpop.permute.xlu0 %398
  %v400 = vsel %vm235, %v397, 0
  %v402 = vsel %vm235, %v399, 0
  %404 = vmatprep.subr.mxu0 0.0
  %405 = vmatpush1.xpose.msra.mxu0 %v402
  %406 = vmatprep.subr.mxu0 0.0
  %407 = vmatpush1.xpose.msra.mxu0 0.0
  %408 = vmatprep.subr.mxu0 0.0
  %409 = vmatpush1.xpose.msra.mxu0 0.0
  %410 = vmatprep.subr.mxu0 0.0
  %411 = vmatpush1.xpose.msra.mxu0 0.0
  %412 = vmatprep.subr.mxu0 0.0
  %413 = vmatpush1.xpose.msra.mxu0 0.0
  %414 = vmatprep.subr.mxu0 0.0
  %415 = vmatpush1.xpose.msra.mxu0 0.0
  %416 = vmatprep.subr.mxu0 0.0
  %417 = vmatpush1.xpose.msra.mxu0 0.0
  %418 = vmatprep.subr.mxu0 0.0
  %419 = vmatpush1.xpose.msra.mxu0 0.0
  %420 = vmatprep.subr.mxu0 0.0
  %421 = vmatpush1.xpose.msra.mxu0 0.0
  %422 = vmatprep.subr.mxu0 0.0
  %423 = vmatpush1.xpose.msra.mxu0 0.0
  %424 = vmatprep.subr.mxu0 0.0
  %425 = vmatpush1.xpose.msra.mxu0 0.0
  %426 = vmatprep.subr.mxu0 0.0
  %427 = vmatpush1.xpose.msra.mxu0 0.0
  %428 = vmatprep.subr.mxu0 0.0
  %429 = vmatpush1.xpose.msra.mxu0 0.0
  %430 = vmatprep.subr.mxu0 0.0
  %431 = vmatpush1.xpose.msra.mxu0 0.0
  %432 = vmatprep.subr.mxu0 0.0
  %433 = vmatpush1.xpose.msra.mxu0 0.0
  %434 = vmatprep.subr.mxu0 0.0
  %435 = vmatpush1.xpose.msra.mxu0 0.0
  %436 = vmatprep.subr.mxu0 0.0
  %437 = vmatpush1.xpose.msra.mxu0 0.0
  %438 = vmatprep.subr.mxu0 0.0
  %439 = vmatpush1.xpose.msra.mxu0 0.0
  %440 = vmatprep.subr.mxu0 0.0
  %441 = vmatpush1.xpose.msra.mxu0 0.0
  %442 = vmatprep.subr.mxu0 0.0
  %443 = vmatpush1.xpose.msra.mxu0 0.0
  %444 = vmatprep.subr.mxu0 0.0
  %445 = vmatpush1.xpose.msra.mxu0 0.0
  %446 = vmatprep.subr.mxu0 0.0
  %447 = vmatpush1.xpose.msra.mxu0 0.0
  %448 = vmatprep.subr.mxu0 0.0
  %449 = vmatpush1.xpose.msra.mxu0 0.0
  %450 = vmatprep.subr.mxu0 0.0
  %451 = vmatpush1.xpose.msra.mxu0 0.0
  %452 = vmatprep.subr.mxu0 0.0
  %453 = vmatpush1.xpose.msra.mxu0 0.0
  %454 = vmatprep.subr.mxu0 0.0
  %455 = vmatpush1.xpose.msra.mxu0 0.0
  %456 = vmatprep.subr.mxu0 0.0
  %457 = vmatpush1.xpose.msra.mxu0 0.0
  %458 = vmatprep.subr.mxu0 0.0
  %459 = vmatpush1.xpose.msra.mxu0 0.0
  %460 = vmatprep.subr.mxu0 0.0
  %461 = vmatpush1.xpose.msra.mxu0 0.0
  %462 = vmatprep.subr.mxu0 0.0
  %463 = vmatpush1.xpose.msra.mxu0 0.0
  %464 = vmatprep.subr.mxu0 0.0
  %465 = vmatpush1.xpose.msra.mxu0 0.0
  %466 = vmatprep.subr.mxu0 0.0
  %467 = vmatpush1.xpose.msra.mxu0 0.0
  %468 = vmatprep.mubr.f32.mxu0 0.0
  %469 = vmatmul.mubr.f32.gmra.mrb[0].mxu0 %v400
  %v470 = vpop.f32.mrb[0].mxu0
  %v471 = vadd.f32 0.0, %v470
  %v472 = vpop.f32.mrb[0].mxu0
  %473 = vdwg.mxu0
  %v474 = vmul.f32 %v471, 0.25
  %v475 = vsel %vm311, %v474, -inf
  %476 = vmax.xlane.f32.xlu0 %v475
  %v477 = vpop.xlane.xlu0 %476
  %v478 = vsub.f32 %v474, %v477
  %v479 = vmul.f32 %v478, 1.442695
  %v480 = vpow.pop %v479
  %v481 = vsel %vm311, %v480, 0.0
  %482 = vadd.xlane.f32.xlu0 %v481
  %v483 = vpop.xlane.xlu0 %482
  %v484 = vrcp.pop %v483
  %v485 = vmul.f32 %v480, %v484
  %487 = vrot.lane.b32.xlu0 %v228, 112
  %v488 = vpop.permute.xlu0 %487
  %v491 = vsel %vm311, %v485, 0
  %493 = vmatprep.subr.mxu0 0.0
  %494 = vmatpush1.msra.mxu0 %v488
  %495 = vmatprep.subr.mxu0 0.0
  %496 = vmatpush1.msra.mxu0 0.0
  %497 = vmatprep.subr.mxu0 0.0
  %498 = vmatpush1.msra.mxu0 0.0
  %499 = vmatprep.subr.mxu0 0.0
  %500 = vmatpush1.msra.mxu0 0.0
  %501 = vmatprep.subr.mxu0 0.0
  %502 = vmatpush1.msra.mxu0 0.0
  %503 = vmatprep.subr.mxu0 0.0
  %504 = vmatpush1.msra.mxu0 0.0
  %505 = vmatprep.subr.mxu0 0.0
  %506 = vmatpush1.msra.mxu0 0.0
  %507 = vmatprep.subr.mxu0 0.0
  %508 = vmatpush1.msra.mxu0 0.0
  %509 = vmatprep.subr.mxu0 0.0
  %510 = vmatpush1.msra.mxu0 0.0
  %511 = vmatprep.subr.mxu0 0.0
  %512 = vmatpush1.msra.mxu0 0.0
  %513 = vmatprep.subr.mxu0 0.0
  %514 = vmatpush1.msra.mxu0 0.0
  %515 = vmatprep.subr.mxu0 0.0
  %516 = vmatpush1.msra.mxu0 0.0
  %517 = vmatprep.subr.mxu0 0.0
  %518 = vmatpush1.msra.mxu0 0.0
  %519 = vmatprep.subr.mxu0 0.0
  %520 = vmatpush1.msra.mxu0 0.0
  %521 = vmatprep.subr.mxu0 0.0
  %522 = vmatpush1.msra.mxu0 0.0
  %523 = vmatprep.subr.mxu0 0.0
  %524 = vmatpush1.msra.mxu0 0.0
  %525 = vmatprep.subr.mxu0 0.0
  %526 = vmatpush1.msra.mxu0 0.0
  %527 = vmatprep.subr.mxu0 0.0
  %528 = vmatpush1.msra.mxu0 0.0
  %529 = vmatprep.subr.mxu0 0.0
  %530 = vmatpush1.msra.mxu0 0.0
  %531 = vmatprep.subr.mxu0 0.0
  %532 = vmatpush1.msra.mxu0 0.0
  %533 = vmatprep.subr.mxu0 0.0
  %534 = vmatpush1.msra.mxu0 0.0
  %535 = vmatprep.subr.mxu0 0.0
  %536 = vmatpush1.msra.mxu0 0.0
  %537 = vmatprep.subr.mxu0 0.0
  %538 = vmatpush1.msra.mxu0 0.0
  %539 = vmatprep.subr.mxu0 0.0
  %540 = vmatpush1.msra.mxu0 0.0
  %541 = vmatprep.subr.mxu0 0.0
  %542 = vmatpush1.msra.mxu0 0.0
  %543 = vmatprep.subr.mxu0 0.0
  %544 = vmatpush1.msra.mxu0 0.0
  %545 = vmatprep.subr.mxu0 0.0
  %546 = vmatpush1.msra.mxu0 0.0
  %547 = vmatprep.subr.mxu0 0.0
  %548 = vmatpush1.msra.mxu0 0.0
  %549 = vmatprep.subr.mxu0 0.0
  %550 = vmatpush1.msra.mxu0 0.0
  %551 = vmatprep.subr.mxu0 0.0
  %552 = vmatpush1.msra.mxu0 0.0
  %553 = vmatprep.subr.mxu0 0.0
  %554 = vmatpush1.msra.mxu0 0.0
  %555 = vmatprep.subr.mxu0 0.0
  %556 = vmatpush1.msra.mxu0 0.0
  %557 = vmatprep.mubr.f32.mxu0 0.0
  %558 = vmatmul.mubr.f32.gmra.mrb[0].mxu0 %v491
  %v559 = vpop.f32.mrb[0].mxu0
  %v560 = vadd.f32 0.0, %v559
  %v561 = vpop.f32.mrb[0].mxu0
  %562 = vdwg.mxu0
  %563 = vrot.lane.b32.xlu0 %v226, 96
  %v564 = vpop.permute.xlu0 %563
  %565 = vrot.lane.b32.xlu0 %v226, 32
  %v566 = vpop.permute.xlu0 %565
  %v567 = vsel %vm235, %v564, 0
  %v569 = vsel %vm235, %v566, 0
  %571 = vmatprep.subr.mxu0 0.0
  %572 = vmatpush1.xpose.msra.mxu0 %v569
  %573 = vmatprep.subr.mxu0 0.0
  %574 = vmatpush1.xpose.msra.mxu0 0.0
  %575 = vmatprep.subr.mxu0 0.0
  %576 = vmatpush1.xpose.msra.mxu0 0.0
  %577 = vmatprep.subr.mxu0 0.0
  %578 = vmatpush1.xpose.msra.mxu0 0.0
  %579 = vmatprep.subr.mxu0 0.0
  %580 = vmatpush1.xpose.msra.mxu0 0.0
  %581 = vmatprep.subr.mxu0 0.0
  %582 = vmatpush1.xpose.msra.mxu0 0.0
  %583 = vmatprep.subr.mxu0 0.0
  %584 = vmatpush1.xpose.msra.mxu0 0.0
  %585 = vmatprep.subr.mxu0 0.0
  %586 = vmatpush1.xpose.msra.mxu0 0.0
  %587 = vmatprep.subr.mxu0 0.0
  %588 = vmatpush1.xpose.msra.mxu0 0.0
  %589 = vmatprep.subr.mxu0 0.0
  %590 = vmatpush1.xpose.msra.mxu0 0.0
  %591 = vmatprep.subr.mxu0 0.0
  %592 = vmatpush1.xpose.msra.mxu0 0.0
  %593 = vmatprep.subr.mxu0 0.0
  %594 = vmatpush1.xpose.msra.mxu0 0.0
  %595 = vmatprep.subr.mxu0 0.0
  %596 = vmatpush1.xpose.msra.mxu0 0.0
  %597 = vmatprep.subr.mxu0 0.0
  %598 = vmatpush1.xpose.msra.mxu0 0.0
  %599 = vmatprep.subr.mxu0 0.0
  %600 = vmatpush1.xpose.msra.mxu0 0.0
  %601 = vmatprep.subr.mxu0 0.0
  %602 = vmatpush1.xpose.msra.mxu0 0.0
  %603 = vmatprep.subr.mxu0 0.0
  %604 = vmatpush1.xpose.msra.mxu0 0.0
  %605 = vmatprep.subr.mxu0 0.0
  %606 = vmatpush1.xpose.msra.mxu0 0.0
  %607 = vmatprep.subr.mxu0 0.0
  %608 = vmatpush1.xpose.msra.mxu0 0.0
  %609 = vmatprep.subr.mxu0 0.0
  %610 = vmatpush1.xpose.msra.mxu0 0.0
  %611 = vmatprep.subr.mxu0 0.0
  %612 = vmatpush1.xpose.msra.mxu0 0.0
  %613 = vmatprep.subr.mxu0 0.0
  %614 = vmatpush1.xpose.msra.mxu0 0.0
  %615 = vmatprep.subr.mxu0 0.0
  %616 = vmatpush1.xpose.msra.mxu0 0.0
  %617 = vmatprep.subr.mxu0 0.0
  %618 = vmatpush1.xpose.msra.mxu0 0.0
  %619 = vmatprep.subr.mxu0 0.0
  %620 = vmatpush1.xpose.msra.mxu0 0.0
  %621 = vmatprep.subr.mxu0 0.0
  %622 = vmatpush1.xpose.msra.mxu0 0.0
  %623 = vmatprep.subr.mxu0 0.0
  %624 = vmatpush1.xpose.msra.mxu0 0.0
  %625 = vmatprep.subr.mxu0 0.0
  %626 = vmatpush1.xpose.msra.mxu0 0.0
  %627 = vmatprep.subr.mxu0 0.0
  %628 = vmatpush1.xpose.msra.mxu0 0.0
  %629 = vmatprep.subr.mxu0 0.0
  %630 = vmatpush1.xpose.msra.mxu0 0.0
  %631 = vmatprep.subr.mxu0 0.0
  %632 = vmatpush1.xpose.msra.mxu0 0.0
  %633 = vmatprep.subr.mxu0 0.0
  %634 = vmatpush1.xpose.msra.mxu0 0.0
  %635 = vmatprep.mubr.f32.mxu0 0.0
  %636 = vmatmul.mubr.f32.gmra.mrb[0].mxu0 %v567
  %v637 = vpop.f32.mrb[0].mxu0
  %v638 = vadd.f32 0.0, %v637
  %v639 = vpop.f32.mrb[0].mxu0
  %640 = vdwg.mxu0
  %v641 = vmul.f32 %v638, 0.25
  %v642 = vsel %vm311, %v641, -inf
  %643 = vmax.xlane.f32.xlu0 %v642
  %v644 = vpop.xlane.xlu0 %643
  %v645 = vsub.f32 %v641, %v644
  %v646 = vmul.f32 %v645, 1.442695
  %v647 = vpow.pop %v646
  %v648 = vsel %vm311, %v647, 0.0
  %649 = vadd.xlane.f32.xlu0 %v648
  %v650 = vpop.xlane.xlu0 %649
  %v651 = vrcp.pop %v650
  %v652 = vmul.f32 %v647, %v651
  %653 = vrot.lane.b32.xlu0 %v228, 96
  %v654 = vpop.permute.xlu0 %653
  %v657 = vsel %vm311, %v652, 0
  %659 = vmatprep.subr.mxu0 0.0
  %660 = vmatpush1.msra.mxu0 %v654
  %661 = vmatprep.subr.mxu0 0.0
  %662 = vmatpush1.msra.mxu0 0.0
  %663 = vmatprep.subr.mxu0 0.0
  %664 = vmatpush1.msra.mxu0 0.0
  %665 = vmatprep.subr.mxu0 0.0
  %666 = vmatpush1.msra.mxu0 0.0
  %667 = vmatprep.subr.mxu0 0.0
  %668 = vmatpush1.msra.mxu0 0.0
  %669 = vmatprep.subr.mxu0 0.0
  %670 = vmatpush1.msra.mxu0 0.0
  %671 = vmatprep.subr.mxu0 0.0
  %672 = vmatpush1.msra.mxu0 0.0
  %673 = vmatprep.subr.mxu0 0.0
  %674 = vmatpush1.msra.mxu0 0.0
  %675 = vmatprep.subr.mxu0 0.0
  %676 = vmatpush1.msra.mxu0 0.0
  %677 = vmatprep.subr.mxu0 0.0
  %678 = vmatpush1.msra.mxu0 0.0
  %679 = vmatprep.subr.mxu0 0.0
  %680 = vmatpush1.msra.mxu0 0.0
  %681 = vmatprep.subr.mxu0 0.0
  %682 = vmatpush1.msra.mxu0 0.0
  %683 = vmatprep.subr.mxu0 0.0
  %684 = vmatpush1.msra.mxu0 0.0
  %685 = vmatprep.subr.mxu0 0.0
  %686 = vmatpush1.msra.mxu0 0.0
  %687 = vmatprep.subr.mxu0 0.0
  %688 = vmatpush1.msra.mxu0 0.0
  %689 = vmatprep.subr.mxu0 0.0
  %690 = vmatpush1.msra.mxu0 0.0
  %691 = vmatprep.subr.mxu0 0.0
  %692 = vmatpush1.msra.mxu0 0.0
  %693 = vmatprep.subr.mxu0 0.0
  %694 = vmatpush1.msra.mxu0 0.0
  %695 = vmatprep.subr.mxu0 0.0
  %696 = vmatpush1.msra.mxu0 0.0
  %697 = vmatprep.subr.mxu0 0.0
  %698 = vmatpush1.msra.mxu0 0.0
  %699 = vmatprep.subr.mxu0 0.0
  %700 = vmatpush1.msra.mxu0 0.0
  %701 = vmatprep.subr.mxu0 0.0
  %702 = vmatpush1.msra.mxu0 0.0
  %703 = vmatprep.subr.mxu0 0.0
  %704 = vmatpush1.msra.mxu0 0.0
  %705 = vmatprep.subr.mxu0 0.0
  %706 = vmatpush1.msra.mxu0 0.0
  %707 = vmatprep.subr.mxu0 0.0
  %708 = vmatpush1.msra.mxu0 0.0
  %709 = vmatprep.subr.mxu0 0.0
  %710 = vmatpush1.msra.mxu0 0.0
  %711 = vmatprep.subr.mxu0 0.0
  %712 = vmatpush1.msra.mxu0 0.0
  %713 = vmatprep.subr.mxu0 0.0
  %714 = vmatpush1.msra.mxu0 0.0
  %715 = vmatprep.subr.mxu0 0.0
  %716 = vmatpush1.msra.mxu0 0.0
  %717 = vmatprep.subr.mxu0 0.0
  %718 = vmatpush1.msra.mxu0 0.0
  %719 = vmatprep.subr.mxu0 0.0
  %720 = vmatpush1.msra.mxu0 0.0
  %721 = vmatprep.subr.mxu0 0.0
  %722 = vmatpush1.msra.mxu0 0.0
  %723 = vmatprep.mubr.f32.mxu0 0.0
  %724 = vmatmul.mubr.f32.gmra.mrb[0].mxu0 %v657
  %v725 = vpop.f32.mrb[0].mxu0
  %v726 = vadd.f32 0.0, %v725
  %v727 = vpop.f32.mrb[0].mxu0
  %728 = vdwg.mxu0
  %729 = vrot.lane.b32.xlu0 %v226, 80
  %v730 = vpop.permute.xlu0 %729
  %731 = vrot.lane.b32.xlu0 %v226, 16
  %v732 = vpop.permute.xlu0 %731
  %v733 = vsel %vm235, %v730, 0
  %v735 = vsel %vm235, %v732, 0
  %737 = vmatprep.subr.mxu0 0.0
  %738 = vmatpush1.xpose.msra.mxu0 %v735
  %739 = vmatprep.subr.mxu0 0.0
  %740 = vmatpush1.xpose.msra.mxu0 0.0
  %741 = vmatprep.subr.mxu0 0.0
  %742 = vmatpush1.xpose.msra.mxu0 0.0
  %743 = vmatprep.subr.mxu0 0.0
  %744 = vmatpush1.xpose.msra.mxu0 0.0
  %745 = vmatprep.subr.mxu0 0.0
  %746 = vmatpush1.xpose.msra.mxu0 0.0
  %747 = vmatprep.subr.mxu0 0.0
  %748 = vmatpush1.xpose.msra.mxu0 0.0
  %749 = vmatprep.subr.mxu0 0.0
  %750 = vmatpush1.xpose.msra.mxu0 0.0
  %751 = vmatprep.subr.mxu0 0.0
  %752 = vmatpush1.xpose.msra.mxu0 0.0
  %753 = vmatprep.subr.mxu0 0.0
  %754 = vmatpush1.xpose.msra.mxu0 0.0
  %755 = vmatprep.subr.mxu0 0.0
  %756 = vmatpush1.xpose.msra.mxu0 0.0
  %757 = vmatprep.subr.mxu0 0.0
  %758 = vmatpush1.xpose.msra.mxu0 0.0
  %759 = vmatprep.subr.mxu0 0.0
  %760 = vmatpush1.xpose.msra.mxu0 0.0
  %761 = vmatprep.subr.mxu0 0.0
  %762 = vmatpush1.xpose.msra.mxu0 0.0
  %763 = vmatprep.subr.mxu0 0.0
  %764 = vmatpush1.xpose.msra.mxu0 0.0
  %765 = vmatprep.subr.mxu0 0.0
  %766 = vmatpush1.xpose.msra.mxu0 0.0
  %767 = vmatprep.subr.mxu0 0.0
  %768 = vmatpush1.xpose.msra.mxu0 0.0
  %769 = vmatprep.subr.mxu0 0.0
  %770 = vmatpush1.xpose.msra.mxu0 0.0
  %771 = vmatprep.subr.mxu0 0.0
  %772 = vmatpush1.xpose.msra.mxu0 0.0
  %773 = vmatprep.subr.mxu0 0.0
  %774 = vmatpush1.xpose.msra.mxu0 0.0
  %775 = vmatprep.subr.mxu0 0.0
  %776 = vmatpush1.xpose.msra.mxu0 0.0
  %777 = vmatprep.subr.mxu0 0.0
  %778 = vmatpush1.xpose.msra.mxu0 0.0
  %779 = vmatprep.subr.mxu0 0.0
  %780 = vmatpush1.xpose.msra.mxu0 0.0
  %781 = vmatprep.subr.mxu0 0.0
  %782 = vmatpush1.xpose.msra.mxu0 0.0
  %783 = vmatprep.subr.mxu0 0.0
  %784 = vmatpush1.xpose.msra.mxu0 0.0
  %785 = vmatprep.subr.mxu0 0.0
  %786 = vmatpush1.xpose.msra.mxu0 0.0
  %787 = vmatprep.subr.mxu0 0.0
  %788 = vmatpush1.xpose.msra.mxu0 0.0
  %789 = vmatprep.subr.mxu0 0.0
  %790 = vmatpush1.xpose.msra.mxu0 0.0
  %791 = vmatprep.subr.mxu0 0.0
  %792 = vmatpush1.xpose.msra.mxu0 0.0
  %793 = vmatprep.subr.mxu0 0.0
  %794 = vmatpush1.xpose.msra.mxu0 0.0
  %795 = vmatprep.subr.mxu0 0.0
  %796 = vmatpush1.xpose.msra.mxu0 0.0
  %797 = vmatprep.subr.mxu0 0.0
  %798 = vmatpush1.xpose.msra.mxu0 0.0
  %799 = vmatprep.subr.mxu0 0.0
  %800 = vmatpush1.xpose.msra.mxu0 0.0
  %801 = vmatprep.mubr.f32.mxu0 0.0
  %802 = vmatmul.mubr.f32.gmra.mrb[0].mxu0 %v733
  %v803 = vpop.f32.mrb[0].mxu0
  %v804 = vadd.f32 0.0, %v803
  %v805 = vpop.f32.mrb[0].mxu0
  %806 = vdwg.mxu0
  %v807 = vmul.f32 %v804, 0.25
  %v808 = vsel %vm311, %v807, -inf
  %809 = vmax.xlane.f32.xlu0 %v808
  %v810 = vpop.xlane.xlu0 %809
  %v811 = vsub.f32 %v807, %v810
  %v812 = vmul.f32 %v811, 1.442695
  %v813 = vpow.pop %v812
  %v814 = vsel %vm311, %v813, 0.0
  %815 = vadd.xlane.f32.xlu0 %v814
  %v816 = vpop.xlane.xlu0 %815
  %v817 = vrcp.pop %v816
  %v818 = vmul.f32 %v813, %v817
  %819 = vrot.lane.b32.xlu0 %v228, 80
  %v820 = vpop.permute.xlu0 %819
  %v823 = vsel %vm311, %v818, 0
  %825 = vmatprep.subr.mxu0 0.0
  %826 = vmatpush1.msra.mxu0 %v820
  %827 = vmatprep.subr.mxu0 0.0
  %828 = vmatpush1.msra.mxu0 0.0
  %829 = vmatprep.subr.mxu0 0.0
  %830 = vmatpush1.msra.mxu0 0.0
  %831 = vmatprep.subr.mxu0 0.0
  %832 = vmatpush1.msra.mxu0 0.0
  %833 = vmatprep.subr.mxu0 0.0
  %834 = vmatpush1.msra.mxu0 0.0
  %835 = vmatprep.subr.mxu0 0.0
  %836 = vmatpush1.msra.mxu0 0.0
  %837 = vmatprep.subr.mxu0 0.0
  %838 = vmatpush1.msra.mxu0 0.0
  %839 = vmatprep.subr.mxu0 0.0
  %840 = vmatpush1.msra.mxu0 0.0
  %841 = vmatprep.subr.mxu0 0.0
  %842 = vmatpush1.msra.mxu0 0.0
  %843 = vmatprep.subr.mxu0 0.0
  %844 = vmatpush1.msra.mxu0 0.0
  %845 = vmatprep.subr.mxu0 0.0
  %846 = vmatpush1.msra.mxu0 0.0
  %847 = vmatprep.subr.mxu0 0.0
  %848 = vmatpush1.msra.mxu0 0.0
  %849 = vmatprep.subr.mxu0 0.0
  %850 = vmatpush1.msra.mxu0 0.0
  %851 = vmatprep.subr.mxu0 0.0
  %852 = vmatpush1.msra.mxu0 0.0
  %853 = vmatprep.subr.mxu0 0.0
  %854 = vmatpush1.msra.mxu0 0.0
  %855 = vmatprep.subr.mxu0 0.0
  %856 = vmatpush1.msra.mxu0 0.0
  %857 = vmatprep.subr.mxu0 0.0
  %858 = vmatpush1.msra.mxu0 0.0
  %859 = vmatprep.subr.mxu0 0.0
  %860 = vmatpush1.msra.mxu0 0.0
  %861 = vmatprep.subr.mxu0 0.0
  %862 = vmatpush1.msra.mxu0 0.0
  %863 = vmatprep.subr.mxu0 0.0
  %864 = vmatpush1.msra.mxu0 0.0
  %865 = vmatprep.subr.mxu0 0.0
  %866 = vmatpush1.msra.mxu0 0.0
  %867 = vmatprep.subr.mxu0 0.0
  %868 = vmatpush1.msra.mxu0 0.0
  %869 = vmatprep.subr.mxu0 0.0
  %870 = vmatpush1.msra.mxu0 0.0
  %871 = vmatprep.subr.mxu0 0.0
  %872 = vmatpush1.msra.mxu0 0.0
  %873 = vmatprep.subr.mxu0 0.0
  %874 = vmatpush1.msra.mxu0 0.0
  %875 = vmatprep.subr.mxu0 0.0
  %876 = vmatpush1.msra.mxu0 0.0
  %877 = vmatprep.subr.mxu0 0.0
  %878 = vmatpush1.msra.mxu0 0.0
  %879 = vmatprep.subr.mxu0 0.0
  %880 = vmatpush1.msra.mxu0 0.0
  %881 = vmatprep.subr.mxu0 0.0
  %882 = vmatpush1.msra.mxu0 0.0
  %883 = vmatprep.subr.mxu0 0.0
  %884 = vmatpush1.msra.mxu0 0.0
  %885 = vmatprep.subr.mxu0 0.0
  %886 = vmatpush1.msra.mxu0 0.0
  %887 = vmatprep.subr.mxu0 0.0
  %888 = vmatpush1.msra.mxu0 0.0
  %889 = vmatprep.mubr.f32.mxu0 0.0
  %890 = vmatmul.mubr.f32.gmra.mrb[0].mxu0 %v823
  %v891 = vpop.f32.mrb[0].mxu0
  %v892 = vadd.f32 0.0, %v891
  %v893 = vpop.f32.mrb[0].mxu0
  %894 = vdwg.mxu0
  %896 = vrot.lane.b32.xlu0 %v560, 16
  %v897 = vpop.permute.xlu0 %896
  %900 = vrot.lane.b32.xlu0 %v726, 32
  %v901 = vpop.permute.xlu0 %900
  %904 = vrot.lane.b32.xlu0 %v892, 48
  %v905 = vpop.permute.xlu0 %904
  %v907 = vsel %vm235, %v393, %v897
  %v908 = vsel %vm82, %v907, %v901
  %vm909 = vcmask 392192
  %v910 = vsel %vm909, %v908, %v905
  %v911 = vpack.c.bf16 %v910, %v910
  %v912 = vld [vmem:[%s5] sm:$0xf]
  %v913 = vld [vmem:[%s5 + $0x4] sm:$0xf]
  %v914 = vld [vmem:[%s5 + $0x8] sm:$0xf]
  %v915 = vld [vmem:[%s5 + $0xc] sm:$0xf]
  %v916 = vld [vmem:[%s5 + $0x10] sm:$0xf]
  %v917 = vld [vmem:[%s5 + $0x14] sm:$0xf]
  %v918 = vld [vmem:[%s5 + $0x18] sm:$0xf]
  %v919 = vld [vmem:[%s5 + $0x1c] sm:$0xf]
  %v920 = vld [vmem:[%s6] sm:$0x1]
  %v922 = vlaneseq
  %v923 = vshrl.u32 %v922, 7
  %v924 = vsub.s32 0, %v923
  %v925 = vrot.slane %v920, %v924
  %v935 = vunpack.c.l.b16 %v912
  %v936 = vunpack.c.l.b16 %v913
  %v937 = vunpack.c.l.b16 %v914
  %v938 = vunpack.c.l.b16 %v915
  %v939 = vunpack.c.l.b16 %v916
  %v940 = vunpack.c.l.b16 %v917
  %v941 = vunpack.c.l.b16 %v918
  %v942 = vunpack.c.l.b16 %v919
  %v943 = vpack.c.b16 %v936, %v935
  %v944 = vpack.c.b16 %v938, %v937
  %v945 = vpack.c.b16 %v940, %v939
  %v946 = vpack.c.b16 %v942, %v941
  %v952 = vsel %vm187, %v911, 0
  %954 = vmatprep.subr.bf16.mxu0 0
  %955 = vmatpush1.bf16.msra.mxu0 %v943
  %956 = vmatprep.subr.bf16.mxu0 0
  %957 = vmatpush1.bf16.msra.mxu0 %v944
  %958 = vmatprep.subr.bf16.mxu0 0
  %959 = vmatpush1.bf16.msra.mxu0 %v945
  %960 = vmatprep.subr.bf16.mxu0 0
  %961 = vmatpush1.bf16.msra.mxu0 %v946
  %962 = vmatprep.subr.bf16.mxu0 0
  %963 = vmatpush1.bf16.msra.mxu0 0
  %964 = vmatprep.subr.bf16.mxu0 0
  %965 = vmatpush1.bf16.msra.mxu0 0
  %966 = vmatprep.subr.bf16.mxu0 0
  %967 = vmatpush1.bf16.msra.mxu0 0
  %968 = vmatprep.subr.bf16.mxu0 0
  %969 = vmatpush1.bf16.msra.mxu0 0
  %970 = vmatprep.subr.bf16.mxu0 0
  %971 = vmatpush1.bf16.msra.mxu0 0
  %972 = vmatprep.subr.bf16.mxu0 0
  %973 = vmatpush1.bf16.msra.mxu0 0
  %974 = vmatprep.subr.bf16.mxu0 0
  %975 = vmatpush1.bf16.msra.mxu0 0
  %976 = vmatprep.subr.bf16.mxu0 0
  %977 = vmatpush1.bf16.msra.mxu0 0
  %978 = vmatprep.subr.bf16.mxu0 0
  %979 = vmatpush1.bf16.msra.mxu0 0
  %980 = vmatprep.subr.bf16.mxu0 0
  %981 = vmatpush1.bf16.msra.mxu0 0
  %982 = vmatprep.subr.bf16.mxu0 0
  %983 = vmatpush1.bf16.msra.mxu0 0
  %984 = vmatprep.subr.bf16.mxu0 0
  %985 = vmatpush1.bf16.msra.mxu0 0
  %986 = vmatprep.mubr.bf16.mxu0 0
  %987 = vmatmul.mubr.bf16.gmra.mrb[0].mxu0 %v952
  %v988 = vpop.f32.mrb[0].mxu0
  %v989 = vadd.f32 %v925, %v988
  %v990 = vpop.f32.mrb[0].mxu0
  %v991 = vpop.f32.mrb[0].mxu0
  %v992 = vpop.f32.mrb[0].mxu0
  %993 = vdwg.mxu0
  %v994 = vadd.f32 %v121, %v989
  %v995 = vld [vmem:[%s7] sm:$0x1]
  %v996 = vld [vmem:[%s8] sm:$0x1]
  %v997 = vsel %vm187, %v994, 0.0
  %998 = vadd.xlane.f32.xlu0 %v997
  %v999 = vpop.xlane.xlu0 %998
  %v1000 = vrcp.pop 64.0
  %v1001 = vmul.f32 %v999, %v1000
  %v1002 = vsub.f32 %v994, %v1001
  %v1003 = vmul.f32 %v1002, %v1002
  %v1004 = vsel %vm187, %v1003, 0.0
  %1005 = vadd.xlane.f32.xlu0 %v1004
  %v1006 = vpop.xlane.xlu0 %1005
  %v1007 = vmul.f32 %v1006, %v1000
  %v1008 = vadd.f32 %v1007, 1e-05
  %v1009 = vrsqrt.pop %v1008
  %v1010 = vmul.f32 %v1002, %v1009
  %v1012 = vlaneseq
  %v1013 = vshrl.u32 %v1012, 7
  %v1014 = vsub.s32 0, %v1013
  %v1015 = vrot.slane %v995, %v1014
  %v1017 = vmul.f32 %v1010, %v1015
  %v1019 = vlaneseq
  %v1020 = vshrl.u32 %v1019, 7
  %v1021 = vsub.s32 0, %v1020
  %v1022 = vrot.slane %v996, %v1021
  %v1024 = vadd.f32 %v1017, %v1022
  %v1025 = vpack.c.bf16 %v1024, %v1024
  %v1026 = vld [vmem:[%s11] sm:$0xff]
  %v1027 = vld [vmem:[%s11 + $0x8] sm:$0xff]
  %v1028 = vld [vmem:[%s11 + $0x10] sm:$0xff]
  %v1029 = vld [vmem:[%s11 + $0x18] sm:$0xff]
  %v1030 = vld [vmem:[%s11 + $0x20] sm:$0xff]
  %v1031 = vld [vmem:[%s11 + $0x28] sm:$0xff]
  %v1032 = vld [vmem:[%s11 + $0x30] sm:$0xff]
  %v1033 = vld [vmem:[%s11 + $0x38] sm:$0xff]
  %v1034 = vld [vmem:[%s11 + $0x40] sm:$0xff]
  %v1035 = vld [vmem:[%s11 + $0x48] sm:$0xff]
  %v1036 = vld [vmem:[%s11 + $0x50] sm:$0xff]
  %v1037 = vld [vmem:[%s11 + $0x58] sm:$0xff]
  %v1038 = vld [vmem:[%s11 + $0x60] sm:$0xff]
  %v1039 = vld [vmem:[%s11 + $0x68] sm:$0xff]
  %v1040 = vld [vmem:[%s11 + $0x70] sm:$0xff]
  %v1041 = vld [vmem:[%s11 + $0x78] sm:$0xff]
  %v1042 = vld [vmem:[%s11 + $0x80] sm:$0xff]
  %v1043 = vld [vmem:[%s11 + $0x88] sm:$0xff]
  %v1044 = vld [vmem:[%s11 + $0x90] sm:$0xff]
  %v1045 = vld [vmem:[%s11 + $0x98] sm:$0xff]
  %v1046 = vld [vmem:[%s11 + $0xa0] sm:$0xff]
  %v1047 = vld [vmem:[%s11 + $0xa8] sm:$0xff]
  %v1048 = vld [vmem:[%s11 + $0xb0] sm:$0xff]
  %v1049 = vld [vmem:[%s11 + $0xb8] sm:$0xff]
  %v1050 = vld [vmem:[%s11 + $0xc0] sm:$0xff]
  %v1051 = vld [vmem:[%s11 + $0xc8] sm:$0xff]
  %v1052 = vld [vmem:[%s11 + $0xd0] sm:$0xff]
  %v1053 = vld [vmem:[%s11 + $0xd8] sm:$0xff]
  %v1054 = vld [vmem:[%s11 + $0xe0] sm:$0xff]
  %v1055 = vld [vmem:[%s11 + $0xe8] sm:$0xff]
  %v1056 = vld [vmem:[%s11 + $0xf0] sm:$0xff]
  %v1057 = vld [vmem:[%s11 + $0xf8] sm:$0xff]
  %v1058 = vld [vmem:[%s11 + $0x100] sm:$0xff]
  %v1059 = vld [vmem:[%s11 + $0x108] sm:$0xff]
  %v1060 = vld [vmem:[%s11 + $0x110] sm:$0xff]
  %v1061 = vld [vmem:[%s11 + $0x118] sm:$0xff]
  %v1062 = vld [vmem:[%s11 + $0x120] sm:$0xff]
  %v1063 = vld [vmem:[%s11 + $0x128] sm:$0xff]
  %v1064 = vld [vmem:[%s11 + $0x130] sm:$0xff]
  %v1065 = vld [vmem:[%s11 + $0x138] sm:$0xff]
  %v1066 = vld [vmem:[%s11 + $0x140] sm:$0xff]
  %v1067 = vld [vmem:[%s11 + $0x148] sm:$0xff]
  %v1068 = vld [vmem:[%s11 + $0x150] sm:$0xff]
  %v1069 = vld [vmem:[%s11 + $0x158] sm:$0xff]
  %v1070 = vld [vmem:[%s11 + $0x160] sm:$0xff]
  %v1071 = vld [vmem:[%s11 + $0x168] sm:$0xff]
  %v1072 = vld [vmem:[%s11 + $0x170] sm:$0xff]
  %v1073 = vld [vmem:[%s11 + $0x178] sm:$0xff]
  %v1074 = vld [vmem:[%s11 + $0x180] sm:$0xff]
  %v1075 = vld [vmem:[%s11 + $0x188] sm:$0xff]
  %v1076 = vld [vmem:[%s11 + $0x190] sm:$0xff]
  %v1077 = vld [vmem:[%s11 + $0x198] sm:$0xff]
  %v1078 = vld [vmem:[%s11 + $0x1a0] sm:$0xff]
  %v1079 = vld [vmem:[%s11 + $0x1a8] sm:$0xff]
  %v1080 = vld [vmem:[%s11 + $0x1b0] sm:$0xff]
  %v1081 = vld [vmem:[%s11 + $0x1b8] sm:$0xff]
  %v1082 = vld [vmem:[%s11 + $0x1c0] sm:$0xff]
  %v1083 = vld [vmem:[%s11 + $0x1c8] sm:$0xff]
  %v1084 = vld [vmem:[%s11 + $0x1d0] sm:$0xff]
  %v1085 = vld [vmem:[%s11 + $0x1d8] sm:$0xff]
  %v1086 = vld [vmem:[%s11 + $0x1e0] sm:$0xff]
  %v1087 = vld [vmem:[%s11 + $0x1e8] sm:$0xff]
  %v1088 = vld [vmem:[%s11 + $0x1f0] sm:$0xff]
  %v1089 = vld [vmem:[%s11 + $0x1f8] sm:$0xff]
  %v1090 = vld [vmem:[%s12] sm:$0xff]
  %v1091 = vld [vmem:[%s12 + $0x8] sm:$0xff]
  %v1094 = vlaneseq
  %v1095 = vshrl.u32 %v1094, 7
  %v1096 = vsub.s32 0, %v1095
  %v1097 = vrot.slane %v1090, %v1096
  %v1098 = vlaneseq
  %v1099 = vshrl.u32 %v1098, 7
  %v1100 = vsub.s32 1, %v1099
  %v1101 = vrot.slane %v1090, %v1100
  %v1102 = vlaneseq
  %v1103 = vshrl.u32 %v1102, 7
  %v1104 = vsub.s32 2, %v1103
  %v1105 = vrot.slane %v1090, %v1104
  %v1106 = vlaneseq
  %v1107 = vshrl.u32 %v1106, 7
  %v1108 = vsub.s32 3, %v1107
  %v1109 = vrot.slane %v1090, %v1108
  %v1110 = vlaneseq
  %v1111 = vshrl.u32 %v1110, 7
  %v1112 = vsub.s32 4, %v1111
  %v1113 = vrot.slane %v1090, %v1112
  %v1114 = vlaneseq
  %v1115 = vshrl.u32 %v1114, 7
  %v1116 = vsub.s32 5, %v1115
  %v1117 = vrot.slane %v1090, %v1116
  %v1118 = vlaneseq
  %v1119 = vshrl.u32 %v1118, 7
  %v1120 = vsub.s32 6, %v1119
  %v1121 = vrot.slane %v1090, %v1120
  %v1122 = vlaneseq
  %v1123 = vshrl.u32 %v1122, 7
  %v1124 = vsub.s32 7, %v1123
  %v1125 = vrot.slane %v1090, %v1124
  %v1126 = vlaneseq
  %v1127 = vshrl.u32 %v1126, 7
  %v1128 = vsub.s32 0, %v1127
  %v1129 = vrot.slane %v1091, %v1128
  %v1130 = vlaneseq
  %v1131 = vshrl.u32 %v1130, 7
  %v1132 = vsub.s32 1, %v1131
  %v1133 = vrot.slane %v1091, %v1132
  %v1134 = vlaneseq
  %v1135 = vshrl.u32 %v1134, 7
  %v1136 = vsub.s32 2, %v1135
  %v1137 = vrot.slane %v1091, %v1136
  %v1138 = vlaneseq
  %v1139 = vshrl.u32 %v1138, 7
  %v1140 = vsub.s32 3, %v1139
  %v1141 = vrot.slane %v1091, %v1140
  %v1142 = vlaneseq
  %v1143 = vshrl.u32 %v1142, 7
  %v1144 = vsub.s32 4, %v1143
  %v1145 = vrot.slane %v1091, %v1144
  %v1146 = vlaneseq
  %v1147 = vshrl.u32 %v1146, 7
  %v1148 = vsub.s32 5, %v1147
  %v1149 = vrot.slane %v1091, %v1148
  %v1150 = vlaneseq
  %v1151 = vshrl.u32 %v1150, 7
  %v1152 = vsub.s32 6, %v1151
  %v1153 = vrot.slane %v1091, %v1152
  %v1154 = vlaneseq
  %v1155 = vshrl.u32 %v1154, 7
  %v1156 = vsub.s32 7, %v1155
  %v1157 = vrot.slane %v1091, %v1156
  %v1238 = vunpack.c.l.b16 %v1026
  %v1239 = vunpack.c.h.b16 %v1026
  %v1240 = vunpack.c.l.b16 %v1027
  %v1241 = vunpack.c.h.b16 %v1027
  %v1242 = vunpack.c.l.b16 %v1028
  %v1243 = vunpack.c.h.b16 %v1028
  %v1244 = vunpack.c.l.b16 %v1029
  %v1245 = vunpack.c.h.b16 %v1029
  %v1246 = vunpack.c.l.b16 %v1030
  %v1247 = vunpack.c.h.b16 %v1030
  %v1248 = vunpack.c.l.b16 %v1031
  %v1249 = vunpack.c.h.b16 %v1031
  %v1250 = vunpack.c.l.b16 %v1032
  %v1251 = vunpack.c.h.b16 %v1032
  %v1252 = vunpack.c.l.b16 %v1033
  %v1253 = vunpack.c.h.b16 %v1033
  %v1254 = vunpack.c.l.b16 %v1034
  %v1255 = vunpack.c.h.b16 %v1034
  %v1256 = vunpack.c.l.b16 %v1035
  %v1257 = vunpack.c.h.b16 %v1035
  %v1258 = vunpack.c.l.b16 %v1036
  %v1259 = vunpack.c.h.b16 %v1036
  %v1260 = vunpack.c.l.b16 %v1037
  %v1261 = vunpack.c.h.b16 %v1037
  %v1262 = vunpack.c.l.b16 %v1038
  %v1263 = vunpack.c.h.b16 %v1038
  %v1264 = vunpack.c.l.b16 %v1039
  %v1265 = vunpack.c.h.b16 %v1039
  %v1266 = vunpack.c.l.b16 %v1040
  %v1267 = vunpack.c.h.b16 %v1040
  %v1268 = vunpack.c.l.b16 %v1041
  %v1269 = vunpack.c.h.b16 %v1041
  %v1270 = vunpack.c.l.b16 %v1042
  %v1271 = vunpack.c.h.b16 %v1042
  %v1272 = vunpack.c.l.b16 %v1043
  %v1273 = vunpack.c.h.b16 %v1043
  %v1274 = vunpack.c.l.b16 %v1044
  %v1275 = vunpack.c.h.b16 %v1044
  %v1276 = vunpack.c.l.b16 %v1045
  %v1277 = vunpack.c.h.b16 %v1045
  %v1278 = vunpack.c.l.b16 %v1046
  %v1279 = vunpack.c.h.b16 %v1046
  %v1280 = vunpack.c.l.b16 %v1047
  %v1281 = vunpack.c.h.b16 %v1047
  %v1282 = vunpack.c.l.b16 %v1048
  %v1283 = vunpack.c.h.b16 %v1048
  %v1284 = vunpack.c.l.b16 %v1049
  %v1285 = vunpack.c.h.b16 %v1049
  %v1286 = vunpack.c.l.b16 %v1050
  %v1287 = vunpack.c.h.b16 %v1050
  %v1288 = vunpack.c.l.b16 %v1051
  %v1289 = vunpack.c.h.b16 %v1051
  %v1290 = vunpack.c.l.b16 %v1052
  %v1291 = vunpack.c.h.b16 %v1052
  %v1292 = vunpack.c.l.b16 %v1053
  %v1293 = vunpack.c.h.b16 %v1053
  %v1294 = vunpack.c.l.b16 %v1054
  %v1295 = vunpack.c.h.b16 %v1054
  %v1296 = vunpack.c.l.b16 %v1055
  %v1297 = vunpack.c.h.b16 %v1055
  %v1298 = vunpack.c.l.b16 %v1056
  %v1299 = vunpack.c.h.b16 %v1056
  %v1300 = vunpack.c.l.b16 %v1057
  %v1301 = vunpack.c.h.b16 %v1057
  %v1302 = vunpack.c.l.b16 %v1058
  %v1303 = vunpack.c.h.b16 %v1058
  %v1304 = vunpack.c.l.b16 %v1059
  %v1305 = vunpack.c.h.b16 %v1059
  %v1306 = vunpack.c.l.b16 %v1060
  %v1307 = vunpack.c.h.b16 %v1060
  %v1308 = vunpack.c.l.b16 %v1061
  %v1309 = vunpack.c.h.b16 %v1061
  %v1310 = vunpack.c.l.b16 %v1062
  %v1311 = vunpack.c.h.b16 %v1062
  %v1312 = vunpack.c.l.b16 %v1063
  %v1313 = vunpack.c.h.b16 %v1063
  %v1314 = vunpack.c.l.b16 %v1064
  %v1315 = vunpack.c.h.b16 %v1064
  %v1316 = vunpack.c.l.b16 %v1065
  %v1317 = vunpack.c.h.b16 %v1065
  %v1318 = vunpack.c.l.b16 %v1066
  %v1319 = vunpack.c.h.b16 %v1066
  %v1320 = vunpack.c.l.b16 %v1067
  %v1321 = vunpack.c.h.b16 %v1067
  %v1322 = vunpack.c.l.b16 %v1068
  %v1323 = vunpack.c.h.b16 %v1068
  %v1324 = vunpack.c.l.b16 %v1069
  %v1325 = vunpack.c.h.b16 %v1069
  %v1326 = vunpack.c.l.b16 %v1070
  %v1327 = vunpack.c.h.b16 %v1070
  %v1328 = vunpack.c.l.b16 %v1071
  %v1329 = vunpack.c.h.b16 %v1071
  %v1330 = vunpack.c.l.b16 %v1072
  %v1331 = vunpack.c.h.b16 %v1072
  %v1332 = vunpack.c.l.b16 %v1073
  %v1333 = vunpack.c.h.b16 %v1073
  %v1334 = vunpack.c.l.b16 %v1074
  %v1335 = vunpack.c.h.b16 %v1074
  %v1336 = vunpack.c.l.b16 %v1075
  %v1337 = vunpack.c.h.b16 %v1075
  %v1338 = vunpack.c.l.b16 %v1076
  %v1339 = vunpack.c.h.b16 %v1076
  %v1340 = vunpack.c.l.b16 %v1077
  %v1341 = vunpack.c.h.b16 %v1077
  %v1342 = vunpack.c.l.b16 %v1078
  %v1343 = vunpack.c.h.b16 %v1078
  %v1344 = vunpack.c.l.b16 %v1079
  %v1345 = vunpack.c.h.b16 %v1079
  %v1346 = vunpack.c.l.b16 %v1080
  %v1347 = vunpack.c.h.b16 %v1080
  %v1348 = vunpack.c.l.b16 %v1081
  %v1349 = vunpack.c.h.b16 %v1081
  %v1350 = vunpack.c.l.b16 %v1082
  %v1351 = vunpack.c.h.b16 %v1082
  %v1352 = vunpack.c.l.b16 %v1083
  %v1353 = vunpack.c.h.b16 %v1083
  %v1354 = vunpack.c.l.b16 %v1084
  %v1355 = vunpack.c.h.b16 %v1084
  %v1356 = vunpack.c.l.b16 %v1085
  %v1357 = vunpack.c.h.b16 %v1085
  %v1358 = vunpack.c.l.b16 %v1086
  %v1359 = vunpack.c.h.b16 %v1086
  %v1360 = vunpack.c.l.b16 %v1087
  %v1361 = vunpack.c.h.b16 %v1087
  %v1362 = vunpack.c.l.b16 %v1088
  %v1363 = vunpack.c.h.b16 %v1088
  %v1364 = vunpack.c.l.b16 %v1089
  %v1365 = vunpack.c.h.b16 %v1089
  %v1366 = vpack.c.b16 %v1254, %v1238
  %v1367 = vpack.c.b16 %v1255, %v1239
  %v1368 = vpack.c.b16 %v1256, %v1240
  %v1369 = vpack.c.b16 %v1257, %v1241
  %v1370 = vpack.c.b16 %v1258, %v1242
  %v1371 = vpack.c.b16 %v1259, %v1243
  %v1372 = vpack.c.b16 %v1260, %v1244
  %v1373 = vpack.c.b16 %v1261, %v1245
  %v1374 = vpack.c.b16 %v1262, %v1246
  %v1375 = vpack.c.b16 %v1263, %v1247
  %v1376 = vpack.c.b16 %v1264, %v1248
  %v1377 = vpack.c.b16 %v1265, %v1249
  %v1378 = vpack.c.b16 %v1266, %v1250
  %v1379 = vpack.c.b16 %v1267, %v1251
  %v1380 = vpack.c.b16 %v1268, %v1252
  %v1381 = vpack.c.b16 %v1269, %v1253
  %v1382 = vpack.c.b16 %v1286, %v1270
  %v1383 = vpack.c.b16 %v1287, %v1271
  %v1384 = vpack.c.b16 %v1288, %v1272
  %v1385 = vpack.c.b16 %v1289, %v1273
  %v1386 = vpack.c.b16 %v1290, %v1274
  %v1387 = vpack.c.b16 %v1291, %v1275
  %v1388 = vpack.c.b16 %v1292, %v1276
  %v1389 = vpack.c.b16 %v1293, %v1277
  %v1390 = vpack.c.b16 %v1294, %v1278
  %v1391 = vpack.c.b16 %v1295, %v1279
  %v1392 = vpack.c.b16 %v1296, %v1280
  %v1393 = vpack.c.b16 %v1297, %v1281
  %v1394 = vpack.c.b16 %v1298, %v1282
  %v1395 = vpack.c.b16 %v1299, %v1283
  %v1396 = vpack.c.b16 %v1300, %v1284
  %v1397 = vpack.c.b16 %v1301, %v1285
  %v1398 = vpack.c.b16 %v1318, %v1302
  %v1399 = vpack.c.b16 %v1319, %v1303
  %v1400 = vpack.c.b16 %v1320, %v1304
  %v1401 = vpack.c.b16 %v1321, %v1305
  %v1402 = vpack.c.b16 %v1322, %v1306
  %v1403 = vpack.c.b16 %v1323, %v1307
  %v1404 = vpack.c.b16 %v1324, %v1308
  %v1405 = vpack.c.b16 %v1325, %v1309
  %v1406 = vpack.c.b16 %v1326, %v1310
  %v1407 = vpack.c.b16 %v1327, %v1311
  %v1408 = vpack.c.b16 %v1328, %v1312
  %v1409 = vpack.c.b16 %v1329, %v1313
  %v1410 = vpack.c.b16 %v1330, %v1314
  %v1411 = vpack.c.b16 %v1331, %v1315
  %v1412 = vpack.c.b16 %v1332, %v1316
  %v1413 = vpack.c.b16 %v1333, %v1317
  %v1414 = vpack.c.b16 %v1350, %v1334
  %v1415 = vpack.c.b16 %v1351, %v1335
  %v1416 = vpack.c.b16 %v1352, %v1336
  %v1417 = vpack.c.b16 %v1353, %v1337
  %v1418 = vpack.c.b16 %v1354, %v1338
  %v1419 = vpack.c.b16 %v1355, %v1339
  %v1420 = vpack.c.b16 %v1356, %v1340
  %v1421 = vpack.c.b16 %v1357, %v1341
  %v1422 = vpack.c.b16 %v1358, %v1342
  %v1423 = vpack.c.b16 %v1359, %v1343
  %v1424 = vpack.c.b16 %v1360, %v1344
  %v1425 = vpack.c.b16 %v1361, %v1345
  %v1426 = vpack.c.b16 %v1362, %v1346
  %v1427 = vpack.c.b16 %v1363, %v1347
  %v1428 = vpack.c.b16 %v1364, %v1348
  %v1429 = vpack.c.b16 %v1365, %v1349
  %v1495 = vsel %vm187, %v1025, 0
  %1497 = vmatprep.subr.bf16.mxu0 %v1367
  %1498 = vmatpush1.bf16.msra.mxu0 %v1366
  %1499 = vmatprep.subr.bf16.mxu0 %v1383
  %1500 = vmatpush1.bf16.msra.mxu0 %v1382
  %1501 = vmatprep.subr.bf16.mxu0 %v1399
  %1502 = vmatpush1.bf16.msra.mxu0 %v1398
  %1503 = vmatprep.subr.bf16.mxu0 %v1415
  %1504 = vmatpush1.bf16.msra.mxu0 %v1414
  %1505 = vmatprep.subr.bf16.mxu0 0
  %1506 = vmatpush1.bf16.msra.mxu0 0
  %1507 = vmatprep.subr.bf16.mxu0 0
  %1508 = vmatpush1.bf16.msra.mxu0 0
  %1509 = vmatprep.subr.bf16.mxu0 0
  %1510 = vmatpush1.bf16.msra.mxu0 0
  %1511 = vmatprep.subr.bf16.mxu0 0
  %1512 = vmatpush1.bf16.msra.mxu0 0
  %1513 = vmatprep.subr.bf16.mxu0 0
  %1514 = vmatpush1.bf16.msra.mxu0 0
  %1515 = vmatprep.subr.bf16.mxu0 0
  %1516 = vmatpush1.bf16.msra.mxu0 0
  %1517 = vmatprep.subr.bf16.mxu0 0
  %1518 = vmatpush1.bf16.msra.mxu0 0
  %1519 = vmatprep.subr.bf16.mxu0 0
  %1520 = vmatpush1.bf16.msra.mxu0 0
  %1521 = vmatprep.subr.bf16.mxu0 0
  %1522 = vmatpush1.bf16.msra.mxu0 0
  %1523 = vmatprep.subr.bf16.mxu0 0
  %1524 = vmatpush1.bf16.msra.mxu0 0
  %1525 = vmatprep.subr.bf16.mxu0 0
  %1526 = vmatpush1.bf16.msra.mxu0 0
  %1527 = vmatprep.subr.bf16.mxu0 0
  %1528 = vmatpush1.bf16.msra.mxu0 0
  %1529 = vmatprep.mubr.bf16.mxu0 0
  %1530 = vmatmul.mubr.bf16.gmra.mrb[0].mxu0 %v1495
  %v1531 = vpop.f32.mrb[0].mxu0
  %v1532 = vadd.f32 %v1097, %v1531
  %v1533 = vpop.f32.mrb[0].mxu0
  %v1534 = vadd.f32 %v1101, %v1533
  %v1535 = vpop.f32.mrb[0].mxu0
  %v1536 = vpop.f32.mrb[0].mxu0
  %1537 = vdwg.mxu0
  %1538 = vmatprep.subr.bf16.mxu0 %v1369
  %1539 = vmatpush1.bf16.msra.mxu0 %v1368
  %1540 = vmatprep.subr.bf16.mxu0 %v1385
  %1541 = vmatpush1.bf16.msra.mxu0 %v1384
  %1542 = vmatprep.subr.bf16.mxu0 %v1401
  %1543 = vmatpush1.bf16.msra.mxu0 %v1400
  %1544 = vmatprep.subr.bf16.mxu0 %v1417
  %1545 = vmatpush1.bf16.msra.mxu0 %v1416
  %1546 = vmatprep.subr.bf16.mxu0 0
  %1547 = vmatpush1.bf16.msra.mxu0 0
  %1548 = vmatprep.subr.bf16.mxu0 0
  %1549 = vmatpush1.bf16.msra.mxu0 0
  %1550 = vmatprep.subr.bf16.mxu0 0
  %1551 = vmatpush1.bf16.msra.mxu0 0
  %1552 = vmatprep.subr.bf16.mxu0 0
  %1553 = vmatpush1.bf16.msra.mxu0 0
  %1554 = vmatprep.subr.bf16.mxu0 0
  %1555 = vmatpush1.bf16.msra.mxu0 0
  %1556 = vmatprep.subr.bf16.mxu0 0
  %1557 = vmatpush1.bf16.msra.mxu0 0
  %1558 = vmatprep.subr.bf16.mxu0 0
  %1559 = vmatpush1.bf16.msra.mxu0 0
  %1560 = vmatprep.subr.bf16.mxu0 0
  %1561 = vmatpush1.bf16.msra.mxu0 0
  %1562 = vmatprep.subr.bf16.mxu0 0
  %1563 = vmatpush1.bf16.msra.mxu0 0
  %1564 = vmatprep.subr.bf16.mxu0 0
  %1565 = vmatpush1.bf16.msra.mxu0 0
  %1566 = vmatprep.subr.bf16.mxu0 0
  %1567 = vmatpush1.bf16.msra.mxu0 0
  %1568 = vmatprep.subr.bf16.mxu0 0
  %1569 = vmatpush1.bf16.msra.mxu0 0
  %1570 = vmatprep.mubr.bf16.mxu0 0
  %1571 = vmatmul.mubr.bf16.gmra.mrb[0].mxu0 %v1495
  %v1572 = vpop.f32.mrb[0].mxu0
  %v1573 = vadd.f32 %v1105, %v1572
  %v1574 = vpop.f32.mrb[0].mxu0
  %v1575 = vadd.f32 %v1109, %v1574
  %v1576 = vpop.f32.mrb[0].mxu0
  %v1577 = vpop.f32.mrb[0].mxu0
  %1578 = vdwg.mxu0
  %1579 = vmatprep.subr.bf16.mxu0 %v1371
  %1580 = vmatpush1.bf16.msra.mxu0 %v1370
  %1581 = vmatprep.subr.bf16.mxu0 %v1387
  %1582 = vmatpush1.bf16.msra.mxu0 %v1386
  %1583 = vmatprep.subr.bf16.mxu0 %v1403
  %1584 = vmatpush1.bf16.msra.mxu0 %v1402
  %1585 = vmatprep.subr.bf16.mxu0 %v1419
  %1586 = vmatpush1.bf16.msra.mxu0 %v1418
  %1587 = vmatprep.subr.bf16.mxu0 0
  %1588 = vmatpush1.bf16.msra.mxu0 0
  %1589 = vmatprep.subr.bf16.mxu0 0
  %1590 = vmatpush1.bf16.msra.mxu0 0
  %1591 = vmatprep.subr.bf16.mxu0 0
  %1592 = vmatpush1.bf16.msra.mxu0 0
  %1593 = vmatprep.subr.bf16.mxu0 0
  %1594 = vmatpush1.bf16.msra.mxu0 0
  %1595 = vmatprep.subr.bf16.mxu0 0
  %1596 = vmatpush1.bf16.msra.mxu0 0
  %1597 = vmatprep.subr.bf16.mxu0 0
  %1598 = vmatpush1.bf16.msra.mxu0 0
  %1599 = vmatprep.subr.bf16.mxu0 0
  %1600 = vmatpush1.bf16.msra.mxu0 0
  %1601 = vmatprep.subr.bf16.mxu0 0
  %1602 = vmatpush1.bf16.msra.mxu0 0
  %1603 = vmatprep.subr.bf16.mxu0 0
  %1604 = vmatpush1.bf16.msra.mxu0 0
  %1605 = vmatprep.subr.bf16.mxu0 0
  %1606 = vmatpush1.bf16.msra.mxu0 0
  %1607 = vmatprep.subr.bf16.mxu0 0
  %1608 = vmatpush1.bf16.msra.mxu0 0
  %1609 = vmatprep.subr.bf16.mxu0 0
  %1610 = vmatpush1.bf16.msra.mxu0 0
  %1611 = vmatprep.mubr.bf16.mxu0 0
  %1612 = vmatmul.mubr.bf16.gmra.mrb[0].mxu0 %v1495
  %v1613 = vpop.f32.mrb[0].mxu0
  %v1614 = vadd.f32 %v1113, %v1613
  %v1615 = vpop.f32.mrb[0].mxu0
  %v1616 = vadd.f32 %v1117, %v1615
  %v1617 = vpop.f32.mrb[0].mxu0
  %v1618 = vpop.f32.mrb[0].mxu0
  %1619 = vdwg.mxu0
  %1620 = vmatprep.subr.bf16.mxu0 %v1373
  %1621 = vmatpush1.bf16.msra.mxu0 %v1372
  %1622 = vmatprep.subr.bf16.mxu0 %v1389
  %1623 = vmatpush1.bf16.msra.mxu0 %v1388
  %1624 = vmatprep.subr.bf16.mxu0 %v1405
  %1625 = vmatpush1.bf16.msra.mxu0 %v1404
  %1626 = vmatprep.subr.bf16.mxu0 %v1421
  %1627 = vmatpush1.bf16.msra.mxu0 %v1420
  %1628 = vmatprep.subr.bf16.mxu0 0
  %1629 = vmatpush1.bf16.msra.mxu0 0
  %1630 = vmatprep.subr.bf16.mxu0 0
  %1631 = vmatpush1.bf16.msra.mxu0 0
  %1632 = vmatprep.subr.bf16.mxu0 0
  %1633 = vmatpush1.bf16.msra.mxu0 0
  %1634 = vmatprep.subr.bf16.mxu0 0
  %1635 = vmatpush1.bf16.msra.mxu0 0
  %1636 = vmatprep.subr.bf16.mxu0 0
  %1637 = vmatpush1.bf16.msra.mxu0 0
  %1638 = vmatprep.subr.bf16.mxu0 0
  %1639 = vmatpush1.bf16.msra.mxu0 0
  %1640 = vmatprep.subr.bf16.mxu0 0
  %1641 = vmatpush1.bf16.msra.mxu0 0
  %1642 = vmatprep.subr.bf16.mxu0 0
  %1643 = vmatpush1.bf16.msra.mxu0 0
  %1644 = vmatprep.subr.bf16.mxu0 0
  %1645 = vmatpush1.bf16.msra.mxu0 0
  %1646 = vmatprep.subr.bf16.mxu0 0
  %1647 = vmatpush1.bf16.msra.mxu0 0
  %1648 = vmatprep.subr.bf16.mxu0 0
  %1649 = vmatpush1.bf16.msra.mxu0 0
  %1650 = vmatprep.subr.bf16.mxu0 0
  %1651 = vmatpush1.bf16.msra.mxu0 0
  %1652 = vmatprep.mubr.bf16.mxu0 0
  %1653 = vmatmul.mubr.bf16.gmra.mrb[0].mxu0 %v1495
  %v1654 = vpop.f32.mrb[0].mxu0
  %v1655 = vadd.f32 %v1121, %v1654
  %v1656 = vpop.f32.mrb[0].mxu0
  %v1657 = vadd.f32 %v1125, %v1656
  %v1658 = vpop.f32.mrb[0].mxu0
  %v1659 = vpop.f32.mrb[0].mxu0
  %1660 = vdwg.mxu0
  %1661 = vmatprep.subr.bf16.mxu0 %v1375
  %1662 = vmatpush1.bf16.msra.mxu0 %v1374
  %1663 = vmatprep.subr.bf16.mxu0 %v1391
  %1664 = vmatpush1.bf16.msra.mxu0 %v1390
  %1665 = vmatprep.subr.bf16.mxu0 %v1407
  %1666 = vmatpush1.bf16.msra.mxu0 %v1406
  %1667 = vmatprep.subr.bf16.mxu0 %v1423
  %1668 = vmatpush1.bf16.msra.mxu0 %v1422
  %1669 = vmatprep.subr.bf16.mxu0 0
  %1670 = vmatpush1.bf16.msra.mxu0 0
  %1671 = vmatprep.subr.bf16.mxu0 0
  %1672 = vmatpush1.bf16.msra.mxu0 0
  %1673 = vmatprep.subr.bf16.mxu0 0
  %1674 = vmatpush1.bf16.msra.mxu0 0
  %1675 = vmatprep.subr.bf16.mxu0 0
  %1676 = vmatpush1.bf16.msra.mxu0 0
  %1677 = vmatprep.subr.bf16.mxu0 0
  %1678 = vmatpush1.bf16.msra.mxu0 0
  %1679 = vmatprep.subr.bf16.mxu0 0
  %1680 = vmatpush1.bf16.msra.mxu0 0
  %1681 = vmatprep.subr.bf16.mxu0 0
  %1682 = vmatpush1.bf16.msra.mxu0 0
  %1683 = vmatprep.subr.bf16.mxu0 0
  %1684 = vmatpush1.bf16.msra.mxu0 0
  %1685 = vmatprep.subr.bf16.mxu0 0
  %1686 = vmatpush1.bf16.msra.mxu0 0
  %1687 = vmatprep.subr.bf16.mxu0 0
  %1688 = vmatpush1.bf16.msra.mxu0 0
  %1689 = vmatprep.subr.bf16.mxu0 0
  %1690 = vmatpush1.bf16.msra.mxu0 0
  %1691 = vmatprep.subr.bf16.mxu0 0
  %1692 = vmatpush1.bf16.msra.mxu0 0
  %1693 = vmatprep.mubr.bf16.mxu0 0
  %1694 = vmatmul.mubr.bf16.gmra.mrb[0].mxu0 %v1495
  %v1695 = vpop.f32.mrb[0].mxu0
  %v1696 = vadd.f32 %v1129, %v1695
  %v1697 = vpop.f32.mrb[0].mxu0
  %v1698 = vadd.f32 %v1133, %v1697
  %v1699 = vpop.f32.mrb[0].mxu0
  %v1700 = vpop.f32.mrb[0].mxu0
  %1701 = vdwg.mxu0
  %1702 = vmatprep.subr.bf16.mxu0 %v1377
  %1703 = vmatpush1.bf16.msra.mxu0 %v1376
  %1704 = vmatprep.subr.bf16.mxu0 %v1393
  %1705 = vmatpush1.bf16.msra.mxu0 %v1392
  %1706 = vmatprep.subr.bf16.mxu0 %v1409
  %1707 = vmatpush1.bf16.msra.mxu0 %v1408
  %1708 = vmatprep.subr.bf16.mxu0 %v1425
  %1709 = vmatpush1.bf16.msra.mxu0 %v1424
  %1710 = vmatprep.subr.bf16.mxu0 0
  %1711 = vmatpush1.bf16.msra.mxu0 0
  %1712 = vmatprep.subr.bf16.mxu0 0
  %1713 = vmatpush1.bf16.msra.mxu0 0
  %1714 = vmatprep.subr.bf16.mxu0 0
  %1715 = vmatpush1.bf16.msra.mxu0 0
  %1716 = vmatprep.subr.bf16.mxu0 0
  %1717 = vmatpush1.bf16.msra.mxu0 0
  %1718 = vmatprep.subr.bf16.mxu0 0
  %1719 = vmatpush1.bf16.msra.mxu0 0
  %1720 = vmatprep.subr.bf16.mxu0 0
  %1721 = vmatpush1.bf16.msra.mxu0 0
  %1722 = vmatprep.subr.bf16.mxu0 0
  %1723 = vmatpush1.bf16.msra.mxu0 0
  %1724 = vmatprep.subr.bf16.mxu0 0
  %1725 = vmatpush1.bf16.msra.mxu0 0
  %1726 = vmatprep.subr.bf16.mxu0 0
  %1727 = vmatpush1.bf16.msra.mxu0 0
  %1728 = vmatprep.subr.bf16.mxu0 0
  %1729 = vmatpush1.bf16.msra.mxu0 0
  %1730 = vmatprep.subr.bf16.mxu0 0
  %1731 = vmatpush1.bf16.msra.mxu0 0
  %1732 = vmatprep.subr.bf16.mxu0 0
  %1733 = vmatpush1.bf16.msra.mxu0 0
  %1734 = vmatprep.mubr.bf16.mxu0 0
  %1735 = vmatmul.mubr.bf16.gmra.mrb[0].mxu0 %v1495
  %v1736 = vpop.f32.mrb[0].mxu0
  %v1737 = vadd.f32 %v1137, %v1736
  %v1738 = vpop.f32.mrb[0].mxu0
  %v1739 = vadd.f32 %v1141, %v1738
  %v1740 = vpop.f32.mrb[0].mxu0
  %v1741 = vpop.f32.mrb[0].mxu0
  %1742 = vdwg.mxu0
  %1743 = vmatprep.subr.bf16.mxu0 %v1379
  %1744 = vmatpush1.bf16.msra.mxu0 %v1378
  %1745 = vmatprep.subr.bf16.mxu0 %v1395
  %1746 = vmatpush1.bf16.msra.mxu0 %v1394
  %1747 = vmatprep.subr.bf16.mxu0 %v1411
  %1748 = vmatpush1.bf16.msra.mxu0 %v1410
  %1749 = vmatprep.subr.bf16.mxu0 %v1427
  %1750 = vmatpush1.bf16.msra.mxu0 %v1426
  %1751 = vmatprep.subr.bf16.mxu0 0
  %1752 = vmatpush1.bf16.msra.mxu0 0
  %1753 = vmatprep.subr.bf16.mxu0 0
  %1754 = vmatpush1.bf16.msra.mxu0 0
  %1755 = vmatprep.subr.bf16.mxu0 0
  %1756 = vmatpush1.bf16.msra.mxu0 0
  %1757 = vmatprep.subr.bf16.mxu0 0
  %1758 = vmatpush1.bf16.msra.mxu0 0
  %1759 = vmatprep.subr.bf16.mxu0 0
  %1760 = vmatpush1.bf16.msra.mxu0 0
  %1761 = vmatprep.subr.bf16.mxu0 0
  %1762 = vmatpush1.bf16.msra.mxu0 0
  %1763 = vmatprep.subr.bf16.mxu0 0
  %1764 = vmatpush1.bf16.msra.mxu0 0
  %1765 = vmatprep.subr.bf16.mxu0 0
  %1766 = vmatpush1.bf16.msra.mxu0 0
  %1767 = vmatprep.subr.bf16.mxu0 0
  %1768 = vmatpush1.bf16.msra.mxu0 0
  %1769 = vmatprep.subr.bf16.mxu0 0
  %1770 = vmatpush1.bf16.msra.mxu0 0
  %1771 = vmatprep.subr.bf16.mxu0 0
  %1772 = vmatpush1.bf16.msra.mxu0 0
  %1773 = vmatprep.subr.bf16.mxu0 0
  %1774 = vmatpush1.bf16.msra.mxu0 0
  %1775 = vmatprep.mubr.bf16.mxu0 0
  %1776 = vmatmul.mubr.bf16.gmra.mrb[0].mxu0 %v1495
  %v1777 = vpop.f32.mrb[0].mxu0
  %v1778 = vadd.f32 %v1145, %v1777
  %v1779 = vpop.f32.mrb[0].mxu0
  %v1780 = vadd.f32 %v1149, %v1779
  %v1781 = vpop.f32.mrb[0].mxu0
  %v1782 = vpop.f32.mrb[0].mxu0
  %1783 = vdwg.mxu0
  %1784 = vmatprep.subr.bf16.mxu0 %v1381
  %1785 = vmatpush1.bf16.msra.mxu0 %v1380
  %1786 = vmatprep.subr.bf16.mxu0 %v1397
  %1787 = vmatpush1.bf16.msra.mxu0 %v1396
  %1788 = vmatprep.subr.bf16.mxu0 %v1413
  %1789 = vmatpush1.bf16.msra.mxu0 %v1412
  %1790 = vmatprep.subr.bf16.mxu0 %v1429
  %1791 = vmatpush1.bf16.msra.mxu0 %v1428
  %1792 = vmatprep.subr.bf16.mxu0 0
  %1793 = vmatpush1.bf16.msra.mxu0 0
  %1794 = vmatprep.subr.bf16.mxu0 0
  %1795 = vmatpush1.bf16.msra.mxu0 0
  %1796 = vmatprep.subr.bf16.mxu0 0
  %1797 = vmatpush1.bf16.msra.mxu0 0
  %1798 = vmatprep.subr.bf16.mxu0 0
  %1799 = vmatpush1.bf16.msra.mxu0 0
  %1800 = vmatprep.subr.bf16.mxu0 0
  %1801 = vmatpush1.bf16.msra.mxu0 0
  %1802 = vmatprep.subr.bf16.mxu0 0
  %1803 = vmatpush1.bf16.msra.mxu0 0
  %1804 = vmatprep.subr.bf16.mxu0 0
  %1805 = vmatpush1.bf16.msra.mxu0 0
  %1806 = vmatprep.subr.bf16.mxu0 0
  %1807 = vmatpush1.bf16.msra.mxu0 0
  %1808 = vmatprep.subr.bf16.mxu0 0
  %1809 = vmatpush1.bf16.msra.mxu0 0
  %1810 = vmatprep.subr.bf16.mxu0 0
  %1811 = vmatpush1.bf16.msra.mxu0 0
  %1812 = vmatprep.subr.bf16.mxu0 0
  %1813 = vmatpush1.bf16.msra.mxu0 0
  %1814 = vmatprep.subr.bf16.mxu0 0
  %1815 = vmatpush1.bf16.msra.mxu0 0
  %1816 = vmatprep.mubr.bf16.mxu0 0
  %1817 = vmatmul.mubr.bf16.gmra.mrb[0].mxu0 %v1495
  %v1818 = vpop.f32.mrb[0].mxu0
  %v1819 = vadd.f32 %v1153, %v1818
  %v1820 = vpop.f32.mrb[0].mxu0
  %v1821 = vadd.f32 %v1157, %v1820
  %v1822 = vpop.f32.mrb[0].mxu0
  %v1823 = vpop.f32.mrb[0].mxu0
  %1824 = vdwg.mxu0
  %v1825 = vmax.f32 %v1532, 0.0
  %v1826 = vmax.f32 %v1534, 0.0
  %v1827 = vmax.f32 %v1573, 0.0
  %v1828 = vmax.f32 %v1575, 0.0
  %v1829 = vmax.f32 %v1614, 0.0
  %v1830 = vmax.f32 %v1616, 0.0
  %v1831 = vmax.f32 %v1655, 0.0
  %v1832 = vmax.f32 %v1657, 0.0
  %v1833 = vmax.f32 %v1696, 0.0
  %v1834 = vmax.f32 %v1698, 0.0
  %v1835 = vmax.f32 %v1737, 0.0
  %v1836 = vmax.f32 %v1739, 0.0
  %v1837 = vmax.f32 %v1778, 0.0
  %v1838 = vmax.f32 %v1780, 0.0
  %v1839 = vmax.f32 %v1819, 0.0
  %v1840 = vmax.f32 %v1821, 0.0
  %v1841 = vpack.c.bf16 %v1825, %v1825
  %v1842 = vpack.c.bf16 %v1826, %v1826
  %v1843 = vpack.c.bf16 %v1827, %v1827
  %v1844 = vpack.c.bf16 %v1828, %v1828
  %v1845 = vpack.c.bf16 %v1829, %v1829
  %v1846 = vpack.c.bf16 %v1830, %v1830
  %v1847 = vpack.c.bf16 %v1831, %v1831
  %v1848 = vpack.c.bf16 %v1832, %v1832
  %v1849 = vpack.c.bf16 %v1833, %v1833
  %v1850 = vpack.c.bf16 %v1834, %v1834
  %v1851 = vpack.c.bf16 %v1835, %v1835
  %v1852 = vpack.c.bf16 %v1836, %v1836
  %v1853 = vpack.c.bf16 %v1837, %v1837
  %v1854 = vpack.c.bf16 %v1838, %v1838
  %v1855 = vpack.c.bf16 %v1839, %v1839
  %v1856 = vpack.c.bf16 %v1840, %v1840
  %v1857 = vld [vmem:[%s13] sm:$0xf]
  %v1858 = vld [vmem:[%s13 + $0x4] sm:$0xf]
  %v1859 = vld [vmem:[%s13 + $0x8] sm:$0xf]
  %v1860 = vld [vmem:[%s13 + $0xc] sm:$0xf]
  %v1861 = vld [vmem:[%s13 + $0x10] sm:$0xf]
  %v1862 = vld [vmem:[%s13 + $0x14] sm:$0xf]
  %v1863 = vld [vmem:[%s13 + $0x18] sm:$0xf]
  %v1864 = vld [vmem:[%s13 + $0x1c] sm:$0xf]
  %v1865 = vld [vmem:[%s13 + $0x20] sm:$0xf]
  %v1866 = vld [vmem:[%s13 + $0x24] sm:$0xf]
  %v1867 = vld [vmem:[%s13 + $0x28] sm:$0xf]
  %v1868 = vld [vmem:[%s13 + $0x2c] sm:$0xf]
  %v1869 = vld [vmem:[%s13 + $0x30] sm:$0xf]
  %v1870 = vld [vmem:[%s13 + $0x34] sm:$0xf]
  %v1871 = vld [vmem:[%s13 + $0x38] sm:$0xf]
  %v1872 = vld [vmem:[%s13 + $0x3c] sm:$0xf]
  %v1873 = vld [vmem:[%s13 + $0x40] sm:$0xf]
  %v1874 = vld [vmem:[%s13 + $0x44] sm:$0xf]
  %v1875 = vld [vmem:[%s13 + $0x48] sm:$0xf]
  %v1876 = vld [vmem:[%s13 + $0x4c] sm:$0xf]
  %v1877 = vld [vmem:[%s13 + $0x50] sm:$0xf]
  %v1878 = vld [vmem:[%s13 + $0x54] sm:$0xf]
  %v1879 = vld [vmem:[%s13 + $0x58] sm:$0xf]
  %v1880 = vld [vmem:[%s13 + $0x5c] sm:$0xf]
  %v1881 = vld [vmem:[%s13 + $0x60] sm:$0xf]
  %v1882 = vld [vmem:[%s13 + $0x64] sm:$0xf]
  %v1883 = vld [vmem:[%s13 + $0x68] sm:$0xf]
  %v1884 = vld [vmem:[%s13 + $0x6c] sm:$0xf]
  %v1885 = vld [vmem:[%s13 + $0x70] sm:$0xf]
  %v1886 = vld [vmem:[%s13 + $0x74] sm:$0xf]
  %v1887 = vld [vmem:[%s13 + $0x78] sm:$0xf]
  %v1888 = vld [vmem:[%s13 + $0x7c] sm:$0xf]
  %v1889 = vld [vmem:[%s13 + $0x80] sm:$0xf]
  %v1890 = vld [vmem:[%s13 + $0x84] sm:$0xf]
  %v1891 = vld [vmem:[%s13 + $0x88] sm:$0xf]
  %v1892 = vld [vmem:[%s13 + $0x8c] sm:$0xf]
  %v1893 = vld [vmem:[%s13 + $0x90] sm:$0xf]
  %v1894 = vld [vmem:[%s13 + $0x94] sm:$0xf]
  %v1895 = vld [vmem:[%s13 + $0x98] sm:$0xf]
  %v1896 = vld [vmem:[%s13 + $0x9c] sm:$0xf]
  %v1897 = vld [vmem:[%s13 + $0xa0] sm:$0xf]
  %v1898 = vld [vmem:[%s13 + $0xa4] sm:$0xf]
  %v1899 = vld [vmem:[%s13 + $0xa8] sm:$0xf]
  %v1900 = vld [vmem:[%s13 + $0xac] sm:$0xf]
  %v1901 = vld [vmem:[%s13 + $0xb0] sm:$0xf]
  %v1902 = vld [vmem:[%s13 + $0xb4] sm:$0xf]
  %v1903 = vld [vmem:[%s13 + $0xb8] sm:$0xf]
  %v1904 = vld [vmem:[%s13 + $0xbc] sm:$0xf]
  %v1905 = vld [vmem:[%s13 + $0xc0] sm:$0xf]
  %v1906 = vld [vmem:[%s13 + $0xc4] sm:$0xf]
  %v1907 = vld [vmem:[%s13 + $0xc8] sm:$0xf]
  %v1908 = vld [vmem:[%s13 + $0xcc] sm:$0xf]
  %v1909 = vld [vmem:[%s13 + $0xd0] sm:$0xf]
  %v1910 = vld [vmem:[%s13 + $0xd4] sm:$0xf]
  %v1911 = vld [vmem:[%s13 + $0xd8] sm:$0xf]
  %v1912 = vld [vmem:[%s13 + $0xdc] sm:$0xf]
  %v1913 = vld [vmem:[%s13 + $0xe0] sm:$0xf]
  %v1914 = vld [vmem:[%s13 + $0xe4] sm:$0xf]
  %v1915 = vld [vmem:[%s13 + $0xe8] sm:$0xf]
  %v1916 = vld [vmem:[%s13 + $0xec] sm:$0xf]
  %v1917 = vld [vmem:[%s13 + $0xf0] sm:$0xf]
  %v1918 = vld [vmem:[%s13 + $0xf4] sm:$0xf]
  %v1919 = vld [vmem:[%s13 + $0xf8] sm:$0xf]
  %v1920 = vld [vmem:[%s13 + $0xfc] sm:$0xf]
  %v1921 = vld [vmem:[%s13 + $0x100] sm:$0xf]
  %v1922 = vld [vmem:[%s13 + $0x104] sm:$0xf]
  %v1923 = vld [vmem:[%s13 + $0x108] sm:$0xf]
  %v1924 = vld [vmem:[%s13 + $0x10c] sm:$0xf]
  %v1925 = vld [vmem:[%s13 + $0x110] sm:$0xf]
  %v1926 = vld [vmem:[%s13 + $0x114] sm:$0xf]
  %v1927 = vld [vmem:[%s13 + $0x118] sm:$0xf]
  %v1928 = vld [vmem:[%s13 + $0x11c] sm:$0xf]
  %v1929 = vld [vmem:[%s13 + $0x120] sm:$0xf]
  %v1930 = vld [vmem:[%s13 + $0x124] sm:$0xf]
  %v1931 = vld [vmem:[%s13 + $0x128] sm:$0xf]
  %v1932 = vld [vmem:[%s13 + $0x12c] sm:$0xf]
  %v1933 = vld [vmem:[%s13 + $0x130] sm:$0xf]
  %v1934 = vld [vmem:[%s13 + $0x134] sm:$0xf]
  %v1935 = vld [vmem:[%s13 + $0x138] sm:$0xf]
  %v1936 = vld [vmem:[%s13 + $0x13c] sm:$0xf]
  %v1937 = vld [vmem:[%s13 + $0x140] sm:$0xf]
  %v1938 = vld [vmem:[%s13 + $0x144] sm:$0xf]
  %v1939 = vld [vmem:[%s13 + $0x148] sm:$0xf]
  %v1940 = vld [vmem:[%s13 + $0x14c] sm:$0xf]
  %v1941 = vld [vmem:[%s13 + $0x150] sm:$0xf]
  %v1942 = vld [vmem:[%s13 + $0x154] sm:$0xf]
  %v1943 = vld [vmem:[%s13 + $0x158] sm:$0xf]
  %v1944 = vld [vmem:[%s13 + $0x15c] sm:$0xf]
  %v1945 = vld [vmem:[%s13 + $0x160] sm:$0xf]
  %v1946 = vld [vmem:[%s13 + $0x164] sm:$0xf]
  %v1947 = vld [vmem:[%s13 + $0x168] sm:$0xf]
  %v1948 = vld [vmem:[%s13 + $0x16c] sm:$0xf]
  %v1949 = vld [vmem:[%s13 + $0x170] sm:$0xf]
  %v1950 = vld [vmem:[%s13 + $0x174] sm:$0xf]
  %v1951 = vld [vmem:[%s13 + $0x178] sm:$0xf]
  %v1952 = vld [vmem:[%s13 + $0x17c] sm:$0xf]
  %v1953 = vld [vmem:[%s13 + $0x180] sm:$0xf]
  %v1954 = vld [vmem:[%s13 + $0x184] sm:$0xf]
  %v1955 = vld [vmem:[%s13 + $0x188] sm:$0xf]
  %v1956 = vld [vmem:[%s13 + $0x18c] sm:$0xf]
  %v1957 = vld [vmem:[%s13 + $0x190] sm:$0xf]
  %v1958 = vld [vmem:[%s13 + $0x194] sm:$0xf]
  %v1959 = vld [vmem:[%s13 + $0x198] sm:$0xf]
  %v1960 = vld [vmem:[%s13 + $0x19c] sm:$0xf]
  %v1961 = vld [vmem:[%s13 + $0x1a0] sm:$0xf]
  %v1962 = vld [vmem:[%s13 + $0x1a4] sm:$0xf]
  %v1963 = vld [vmem:[%s13 + $0x1a8] sm:$0xf]
  %v1964 = vld [vmem:[%s13 + $0x1ac] sm:$0xf]
  %v1965 = vld [vmem:[%s13 + $0x1b0] sm:$0xf]
  %v1966 = vld [vmem:[%s13 + $0x1b4] sm:$0xf]
  %v1967 = vld [vmem:[%s13 + $0x1b8] sm:$0xf]
  %v1968 = vld [vmem:[%s13 + $0x1bc] sm:$0xf]
  %v1969 = vld [vmem:[%s13 + $0x1c0] sm:$0xf]
  %v1970 = vld [vmem:[%s13 + $0x1c4] sm:$0xf]
  %v1971 = vld [vmem:[%s13 + $0x1c8] sm:$0xf]
  %v1972 = vld [vmem:[%s13 + $0x1cc] sm:$0xf]
  %v1973 = vld [vmem:[%s13 + $0x1d0] sm:$0xf]
  %v1974 = vld [vmem:[%s13 + $0x1d4] sm:$0xf]
  %v1975 = vld [vmem:[%s13 + $0x1d8] sm:$0xf]
  %v1976 = vld [vmem:[%s13 + $0x1dc] sm:$0xf]
  %v1977 = vld [vmem:[%s13 + $0x1e0] sm:$0xf]
  %v1978 = vld [vmem:[%s13 + $0x1e4] sm:$0xf]
  %v1979 = vld [vmem:[%s13 + $0x1e8] sm:$0xf]
  %v1980 = vld [vmem:[%s13 + $0x1ec] sm:$0xf]
  %v1981 = vld [vmem:[%s13 + $0x1f0] sm:$0xf]
  %v1982 = vld [vmem:[%s13 + $0x1f4] sm:$0xf]
  %v1983 = vld [vmem:[%s13 + $0x1f8] sm:$0xf]
  %v1984 = vld [vmem:[%s13 + $0x1fc] sm:$0xf]
  %v1985 = vld [vmem:[%s13 + $0x200] sm:$0xf]
  %v1986 = vld [vmem:[%s13 + $0x204] sm:$0xf]
  %v1987 = vld [vmem:[%s13 + $0x208] sm:$0xf]
  %v1988 = vld [vmem:[%s13 + $0x20c] sm:$0xf]
  %v1989 = vld [vmem:[%s13 + $0x210] sm:$0xf]
  %v1990 = vld [vmem:[%s13 + $0x214] sm:$0xf]
  %v1991 = vld [vmem:[%s13 + $0x218] sm:$0xf]
  %v1992 = vld [vmem:[%s13 + $0x21c] sm:$0xf]
  %v1993 = vld [vmem:[%s13 + $0x220] sm:$0xf]
  %v1994 = vld [vmem:[%s13 + $0x224] sm:$0xf]
  %v1995 = vld [vmem:[%s13 + $0x228] sm:$0xf]
  %v1996 = vld [vmem:[%s13 + $0x22c] sm:$0xf]
  %v1997 = vld [vmem:[%s13 + $0x230] sm:$0xf]
  %v1998 = vld [vmem:[%s13 + $0x234] sm:$0xf]
  %v1999 = vld [vmem:[%s13 + $0x238] sm:$0xf]
  %v2000 = vld [vmem:[%s13 + $0x23c] sm:$0xf]
  %v2001 = vld [vmem:[%s13 + $0x240] sm:$0xf]
  %v2002 = vld [vmem:[%s13 + $0x244] sm:$0xf]
  %v2003 = vld [vmem:[%s13 + $0x248] sm:$0xf]
  %v2004 = vld [vmem:[%s13 + $0x24c] sm:$0xf]
  %v2005 = vld [vmem:[%s13 + $0x250] sm:$0xf]
  %v2006 = vld [vmem:[%s13 + $0x254] sm:$0xf]
  %v2007 = vld [vmem:[%s13 + $0x258] sm:$0xf]
  %v2008 = vld [vmem:[%s13 + $0x25c] sm:$0xf]
  %v2009 = vld [vmem:[%s13 + $0x260] sm:$0xf]
  %v2010 = vld [vmem:[%s13 + $0x264] sm:$0xf]
  %v2011 = vld [vmem:[%s13 + $0x268] sm:$0xf]
  %v2012 = vld [vmem:[%s13 + $0x26c] sm:$0xf]
  %v2013 = vld [vmem:[%s13 + $0x270] sm:$0xf]
  %v2014 = vld [vmem:[%s13 + $0x274] sm:$0xf]
  %v2015 = vld [vmem:[%s13 + $0x278] sm:$0xf]
  %v2016 = vld [vmem:[%s13 + $0x27c] sm:$0xf]
  %v2017 = vld [vmem:[%s13 + $0x280] sm:$0xf]
  %v2018 = vld [vmem:[%s13 + $0x284] sm:$0xf]
  %v2019 = vld [vmem:[%s13 + $0x288] sm:$0xf]
  %v2020 = vld [vmem:[%s13 + $0x28c] sm:$0xf]
  %v2021 = vld [vmem:[%s13 + $0x290] sm:$0xf]
  %v2022 = vld [vmem:[%s13 + $0x294] sm:$0xf]
  %v2023 = vld [vmem:[%s13 + $0x298] sm:$0xf]
  %v2024 = vld [vmem:[%s13 + $0x29c] sm:$0xf]
  %v2025 = vld [vmem:[%s13 + $0x2a0] sm:$0xf]
  %v2026 = vld [vmem:[%s13 + $0x2a4] sm:$0xf]
  %v2027 = vld [vmem:[%s13 + $0x2a8] sm:$0xf]
  %v2028 = vld [vmem:[%s13 + $0x2ac] sm:$0xf]
  %v2029 = vld [vmem:[%s13 + $0x2b0] sm:$0xf]
  %v2030 = vld [vmem:[%s13 + $0x2b4] sm:$0xf]
  %v2031 = vld [vmem:[%s13 + $0x2b8] sm:$0xf]
  %v2032 = vld [vmem:[%s13 + $0x2bc] sm:$0xf]
  %v2033 = vld [vmem:[%s13 + $0x2c0] sm:$0xf]
  %v2034 = vld [vmem:[%s13 + $0x2c4] sm:$0xf]
  %v2035 = vld [vmem:[%s13 + $0x2c8] sm:$0xf]
  %v2036 = vld [vmem:[%s13 + $0x2cc] sm:$0xf]
  %v2037 = vld [vmem:[%s13 + $0x2d0] sm:$0xf]
  %v2038 = vld [vmem:[%s13 + $0x2d4] sm:$0xf]
  %v2039 = vld [vmem:[%s13 + $0x2d8] sm:$0xf]
  %v2040 = vld [vmem:[%s13 + $0x2dc] sm:$0xf]
  %v2041 = vld [vmem:[%s13 + $0x2e0] sm:$0xf]
  %v2042 = vld [vmem:[%s13 + $0x2e4] sm:$0xf]
  %v2043 = vld [vmem:[%s13 + $0x2e8] sm:$0xf]
  %v2044 = vld [vmem:[%s13 + $0x2ec] sm:$0xf]
  %v2045 = vld [vmem:[%s13 + $0x2f0] sm:$0xf]
  %v2046 = vld [vmem:[%s13 + $0x2f4] sm:$0xf]
  %v2047 = vld [vmem:[%s13 + $0x2f8] sm:$0xf]
  %v2048 = vld [vmem:[%s13 + $0x2fc] sm:$0xf]
  %v2049 = vld [vmem:[%s13 + $0x300] sm:$0xf]
  %v2050 = vld [vmem:[%s13 + $0x304] sm:$0xf]
  %v2051 = vld [vmem:[%s13 + $0x308] sm:$0xf]
  %v2052 = vld [vmem:[%s13 + $0x30c] sm:$0xf]
  %v2053 = vld [vmem:[%s13 + $0x310] sm:$0xf]
  %v2054 = vld [vmem:[%s13 + $0x314] sm:$0xf]
  %v2055 = vld [vmem:[%s13 + $0x318] sm:$0xf]
  %v2056 = vld [vmem:[%s13 + $0x31c] sm:$0xf]
  %v2057 = vld [vmem:[%s13 + $0x320] sm:$0xf]
  %v2058 = vld [vmem:[%s13 + $0x324] sm:$0xf]
  %v2059 = vld [vmem:[%s13 + $0x328] sm:$0xf]
  %v2060 = vld [vmem:[%s13 + $0x32c] sm:$0xf]
  %v2061 = vld [vmem:[%s13 + $0x330] sm:$0xf]
  %v2062 = vld [vmem:[%s13 + $0x334] sm:$0xf]
  %v2063 = vld [vmem:[%s13 + $0x338] sm:$0xf]
  %v2064 = vld [vmem:[%s13 + $0x33c] sm:$0xf]
  %v2065 = vld [vmem:[%s13 + $0x340] sm:$0xf]
  %v2066 = vld [vmem:[%s13 + $0x344] sm:$0xf]
  %v2067 = vld [vmem:[%s13 + $0x348] sm:$0xf]
  %v2068 = vld [vmem:[%s13 + $0x34c] sm:$0xf]
  %v2069 = vld [vmem:[%s13 + $0x350] sm:$0xf]
  %v2070 = vld [vmem:[%s13 + $0x354] sm:$0xf]
  %v2071 = vld [vmem:[%s13 + $0x358] sm:$0xf]
  %v2072 = vld [vmem:[%s13 + $0x35c] sm:$0xf]
  %v2073 = vld [vmem:[%s13 + $0x360] sm:$0xf]
  %v2074 = vld [vmem:[%s13 + $0x364] sm:$0xf]
  %v2075 = vld [vmem:[%s13 + $0x368] sm:$0xf]
  %v2076 = vld [vmem:[%s13 + $0x36c] sm:$0xf]
  %v2077 = vld [vmem:[%s13 + $0x370] sm:$0xf]
  %v2078 = vld [vmem:[%s13 + $0x374] sm:$0xf]
  %v2079 = vld [vmem:[%s13 + $0x378] sm:$0xf]
  %v2080 = vld [vmem:[%s13 + $0x37c] sm:$0xf]
  %v2081 = vld [vmem:[%s13 + $0x380] sm:$0xf]
  %v2082 = vld [vmem:[%s13 + $0x384] sm:$0xf]
  %v2083 = vld [vmem:[%s13 + $0x388] sm:$0xf]
  %v2084 = vld [vmem:[%s13 + $0x38c] sm:$0xf]
  %v2085 = vld [vmem:[%s13 + $0x390] sm:$0xf]
  %v2086 = vld [vmem:[%s13 + $0x394] sm:$0xf]
  %v2087 = vld [vmem:[%s13 + $0x398] sm:$0xf]
  %v2088 = vld [vmem:[%s13 + $0x39c] sm:$0xf]
  %v2089 = vld [vmem:[%s13 + $0x3a0] sm:$0xf]
  %v2090 = vld [vmem:[%s13 + $0x3a4] sm:$0xf]
  %v2091 = vld [vmem:[%s13 + $0x3a8] sm:$0xf]
  %v2092 = vld [vmem:[%s13 + $0x3ac] sm:$0xf]
  %v2093 = vld [vmem:[%s13 + $0x3b0] sm:$0xf]
  %v2094 = vld [vmem:[%s13 + $0x3b4] sm:$0xf]
  %v2095 = vld [vmem:[%s13 + $0x3b8] sm:$0xf]
  %v2096 = vld [vmem:[%s13 + $0x3bc] sm:$0xf]
  %v2097 = vld [vmem:[%s13 + $0x3c0] sm:$0xf]
  %v2098 = vld [vmem:[%s13 + $0x3c4] sm:$0xf]
  %v2099 = vld [vmem:[%s13 + $0x3c8] sm:$0xf]
  %v2100 = vld [vmem:[%s13 + $0x3cc] sm:$0xf]
  %v2101 = vld [vmem:[%s13 + $0x3d0] sm:$0xf]
  %v2102 = vld [vmem:[%s13 + $0x3d4] sm:$0xf]
  %v2103 = vld [vmem:[%s13 + $0x3d8] sm:$0xf]
  %v2104 = vld [vmem:[%s13 + $0x3dc] sm:$0xf]
  %v2105 = vld [vmem:[%s13 + $0x3e0] sm:$0xf]
  %v2106 = vld [vmem:[%s13 + $0x3e4] sm:$0xf]
  %v2107 = vld [vmem:[%s13 + $0x3e8] sm:$0xf]
  %v2108 = vld [vmem:[%s13 + $0x3ec] sm:$0xf]
  %v2109 = vld [vmem:[%s13 + $0x3f0] sm:$0xf]
  %v2110 = vld [vmem:[%s13 + $0x3f4] sm:$0xf]
  %v2111 = vld [vmem:[%s13 + $0x3f8] sm:$0xf]
  %v2112 = vld [vmem:[%s13 + $0x3fc] sm:$0xf]
  %v2113 = vld [vmem:[%s14] sm:$0x1]
  %v2115 = vlaneseq
  %v2116 = vshrl.u32 %v2115, 7
  %v2117 = vsub.s32 0, %v2116
  %v2118 = vrot.slane %v2113, %v2117
  %v2376 = vunpack.c.l.b16 %v1857
  %v2377 = vunpack.c.l.b16 %v1858
  %v2378 = vunpack.c.l.b16 %v1859
  %v2379 = vunpack.c.l.b16 %v1860
  %v2380 = vunpack.c.l.b16 %v1861
  %v2381 = vunpack.c.l.b16 %v1862
  %v2382 = vunpack.c.l.b16 %v1863
  %v2383 = vunpack.c.l.b16 %v1864
  %v2384 = vunpack.c.l.b16 %v1865
  %v2385 = vunpack.c.l.b16 %v1866
  %v2386 = vunpack.c.l.b16 %v1867
  %v2387 = vunpack.c.l.b16 %v1868
  %v2388 = vunpack.c.l.b16 %v1869
  %v2389 = vunpack.c.l.b16 %v1870
  %v2390 = vunpack.c.l.b16 %v1871
  %v2391 = vunpack.c.l.b16 %v1872
  %v2392 = vunpack.c.l.b16 %v1873
  %v2393 = vunpack.c.l.b16 %v1874
  %v2394 = vunpack.c.l.b16 %v1875
  %v2395 = vunpack.c.l.b16 %v1876
  %v2396 = vunpack.c.l.b16 %v1877
  %v2397 = vunpack.c.l.b16 %v1878
  %v2398 = vunpack.c.l.b16 %v1879
  %v2399 = vunpack.c.l.b16 %v1880
  %v2400 = vunpack.c.l.b16 %v1881
  %v2401 = vunpack.c.l.b16 %v1882
  %v2402 = vunpack.c.l.b16 %v1883
  %v2403 = vunpack.c.l.b16 %v1884
  %v2404 = vunpack.c.l.b16 %v1885
  %v2405 = vunpack.c.l.b16 %v1886
  %v2406 = vunpack.c.l.b16 %v1887
  %v2407 = vunpack.c.l.b16 %v1888
  %v2408 = vunpack.c.l.b16 %v1889
  %v2409 = vunpack.c.l.b16 %v1890
  %v2410 = vunpack.c.l.b16 %v1891
  %v2411 = vunpack.c.l.b16 %v1892
  %v2412 = vunpack.c.l.b16 %v1893
  %v2413 = vunpack.c.l.b16 %v1894
  %v2414 = vunpack.c.l.b16 %v1895
  %v2415 = vunpack.c.l.b16 %v1896
  %v2416 = vunpack.c.l.b16 %v1897
  %v2417 = vunpack.c.l.b16 %v1898
  %v2418 = vunpack.c.l.b16 %v1899
  %v2419 = vunpack.c.l.b16 %v1900
  %v2420 = vunpack.c.l.b16 %v1901
  %v2421 = vunpack.c.l.b16 %v1902
  %v2422 = vunpack.c.l.b16 %v1903
  %v2423 = vunpack.c.l.b16 %v1904
  %v2424 = vunpack.c.l.b16 %v1905
  %v2425 = vunpack.c.l.b16 %v1906
  %v2426 = vunpack.c.l.b16 %v1907
  %v2427 = vunpack.c.l.b16 %v1908
  %v2428 = vunpack.c.l.b16 %v1909
  %v2429 = vunpack.c.l.b16 %v1910
  %v2430 = vunpack.c.l.b16 %v1911
  %v2431 = vunpack.c.l.b16 %v1912
  %v2432 = vunpack.c.l.b16 %v1913
  %v2433 = vunpack.c.l.b16 %v1914
  %v2434 = vunpack.c.l.b16 %v1915
  %v2435 = vunpack.c.l.b16 %v1916
  %v2436 = vunpack.c.l.b16 %v1917
  %v2437 = vunpack.c.l.b16 %v1918
  %v2438 = vunpack.c.l.b16 %v1919
  %v2439 = vunpack.c.l.b16 %v1920
  %v2440 = vunpack.c.l.b16 %v1921
  %v2441 = vunpack.c.l.b16 %v1922
  %v2442 = vunpack.c.l.b16 %v1923
  %v2443 = vunpack.c.l.b16 %v1924
  %v2444 = vunpack.c.l.b16 %v1925
  %v2445 = vunpack.c.l.b16 %v1926
  %v2446 = vunpack.c.l.b16 %v1927
  %v2447 = vunpack.c.l.b16 %v1928
  %v2448 = vunpack.c.l.b16 %v1929
  %v2449 = vunpack.c.l.b16 %v1930
  %v2450 = vunpack.c.l.b16 %v1931
  %v2451 = vunpack.c.l.b16 %v1932
  %v2452 = vunpack.c.l.b16 %v1933
  %v2453 = vunpack.c.l.b16 %v1934
  %v2454 = vunpack.c.l.b16 %v1935
  %v2455 = vunpack.c.l.b16 %v1936
  %v2456 = vunpack.c.l.b16 %v1937
  %v2457 = vunpack.c.l.b16 %v1938
  %v2458 = vunpack.c.l.b16 %v1939
  %v2459 = vunpack.c.l.b16 %v1940
  %v2460 = vunpack.c.l.b16 %v1941
  %v2461 = vunpack.c.l.b16 %v1942
  %v2462 = vunpack.c.l.b16 %v1943
  %v2463 = vunpack.c.l.b16 %v1944
  %v2464 = vunpack.c.l.b16 %v1945
  %v2465 = vunpack.c.l.b16 %v1946
  %v2466 = vunpack.c.l.b16 %v1947
  %v2467 = vunpack.c.l.b16 %v1948
  %v2468 = vunpack.c.l.b16 %v1949
  %v2469 = vunpack.c.l.b16 %v1950
  %v2470 = vunpack.c.l.b16 %v1951
  %v2471 = vunpack.c.l.b16 %v1952
  %v2472 = vunpack.c.l.b16 %v1953
  %v2473 = vunpack.c.l.b16 %v1954
  %v2474 = vunpack.c.l.b16 %v1955
  %v2475 = vunpack.c.l.b16 %v1956
  %v2476 = vunpack.c.l.b16 %v1957
  %v2477 = vunpack.c.l.b16 %v1958
  %v2478 = vunpack.c.l.b16 %v1959
  %v2479 = vunpack.c.l.b16 %v1960
  %v2480 = vunpack.c.l.b16 %v1961
  %v2481 = vunpack.c.l.b16 %v1962
  %v2482 = vunpack.c.l.b16 %v1963
  %v2483 = vunpack.c.l.b16 %v1964
  %v2484 = vunpack.c.l.b16 %v1965
  %v2485 = vunpack.c.l.b16 %v1966
  %v2486 = vunpack.c.l.b16 %v1967
  %v2487 = vunpack.c.l.b16 %v1968
  %v2488 = vunpack.c.l.b16 %v1969
  %v2489 = vunpack.c.l.b16 %v1970
  %v2490 = vunpack.c.l.b16 %v1971
  %v2491 = vunpack.c.l.b16 %v1972
  %v2492 = vunpack.c.l.b16 %v1973
  %v2493 = vunpack.c.l.b16 %v1974
  %v2494 = vunpack.c.l.b16 %v1975
  %v2495 = vunpack.c.l.b16 %v1976
  %v2496 = vunpack.c.l.b16 %v1977
  %v2497 = vunpack.c.l.b16 %v1978
  %v2498 = vunpack.c.l.b16 %v1979
  %v2499 = vunpack.c.l.b16 %v1980
  %v2500 = vunpack.c.l.b16 %v1981
  %v2501 = vunpack.c.l.b16 %v1982
  %v2502 = vunpack.c.l.b16 %v1983
  %v2503 = vunpack.c.l.b16 %v1984
  %v2504 = vunpack.c.l.b16 %v1985
  %v2505 = vunpack.c.l.b16 %v1986
  %v2506 = vunpack.c.l.b16 %v1987
  %v2507 = vunpack.c.l.b16 %v1988
  %v2508 = vunpack.c.l.b16 %v1989
  %v2509 = vunpack.c.l.b16 %v1990
  %v2510 = vunpack.c.l.b16 %v1991
  %v2511 = vunpack.c.l.b16 %v1992
  %v2512 = vunpack.c.l.b16 %v1993
  %v2513 = vunpack.c.l.b16 %v1994
  %v2514 = vunpack.c.l.b16 %v1995
  %v2515 = vunpack.c.l.b16 %v1996
  %v2516 = vunpack.c.l.b16 %v1997
  %v2517 = vunpack.c.l.b16 %v1998
  %v2518 = vunpack.c.l.b16 %v1999
  %v2519 = vunpack.c.l.b16 %v2000
  %v2520 = vunpack.c.l.b16 %v2001
  %v2521 = vunpack.c.l.b16 %v2002
  %v2522 = vunpack.c.l.b16 %v2003
  %v2523 = vunpack.c.l.b16 %v2004
  %v2524 = vunpack.c.l.b16 %v2005
  %v2525 = vunpack.c.l.b16 %v2006
  %v2526 = vunpack.c.l.b16 %v2007
  %v2527 = vunpack.c.l.b16 %v2008
  %v2528 = vunpack.c.l.b16 %v2009
  %v2529 = vunpack.c.l.b16 %v2010
  %v2530 = vunpack.c.l.b16 %v2011
  %v2531 = vunpack.c.l.b16 %v2012
  %v2532 = vunpack.c.l.b16 %v2013
  %v2533 = vunpack.c.l.b16 %v2014
  %v2534 = vunpack.c.l.b16 %v2015
  %v2535 = vunpack.c.l.b16 %v2016
  %v2536 = vunpack.c.l.b16 %v2017
  %v2537 = vunpack.c.l.b16 %v2018
  %v2538 = vunpack.c.l.b16 %v2019
  %v2539 = vunpack.c.l.b16 %v2020
  %v2540 = vunpack.c.l.b16 %v2021
  %v2541 = vunpack.c.l.b16 %v2022
  %v2542 = vunpack.c.l.b16 %v2023
  %v2543 = vunpack.c.l.b16 %v2024
  %v2544 = vunpack.c.l.b16 %v2025
  %v2545 = vunpack.c.l.b16 %v2026
  %v2546 = vunpack.c.l.b16 %v2027
  %v2547 = vunpack.c.l.b16 %v2028
  %v2548 = vunpack.c.l.b16 %v2029
  %v2549 = vunpack.c.l.b16 %v2030
  %v2550 = vunpack.c.l.b16 %v2031
  %v2551 = vunpack.c.l.b16 %v2032
  %v2552 = vunpack.c.l.b16 %v2033
  %v2553 = vunpack.c.l.b16 %v2034
  %v2554 = vunpack.c.l.b16 %v2035
  %v2555 = vunpack.c.l.b16 %v2036
  %v2556 = vunpack.c.l.b16 %v2037
  %v2557 = vunpack.c.l.b16 %v2038
  %v2558 = vunpack.c.l.b16 %v2039
  %v2559 = vunpack.c.l.b16 %v2040
  %v2560 = vunpack.c.l.b16 %v2041
  %v2561 = vunpack.c.l.b16 %v2042
  %v2562 = vunpack.c.l.b16 %v2043
  %v2563 = vunpack.c.l.b16 %v2044
  %v2564 = vunpack.c.l.b16 %v2045
  %v2565 = vunpack.c.l.b16 %v2046
  %v2566 = vunpack.c.l.b16 %v2047
  %v2567 = vunpack.c.l.b16 %v2048
  %v2568 = vunpack.c.l.b16 %v2049
  %v2569 = vunpack.c.l.b16 %v2050
  %v2570 = vunpack.c.l.b16 %v2051
  %v2571 = vunpack.c.l.b16 %v2052
  %v2572 = vunpack.c.l.b16 %v2053
  %v2573 = vunpack.c.l.b16 %v2054
  %v2574 = vunpack.c.l.b16 %v2055
  %v2575 = vunpack.c.l.b16 %v2056
  %v2576 = vunpack.c.l.b16 %v2057
  %v2577 = vunpack.c.l.b16 %v2058
  %v2578 = vunpack.c.l.b16 %v2059
  %v2579 = vunpack.c.l.b16 %v2060
  %v2580 = vunpack.c.l.b16 %v2061
  %v2581 = vunpack.c.l.b16 %v2062
  %v2582 = vunpack.c.l.b16 %v2063
  %v2583 = vunpack.c.l.b16 %v2064
  %v2584 = vunpack.c.l.b16 %v2065
  %v2585 = vunpack.c.l.b16 %v2066
  %v2586 = vunpack.c.l.b16 %v2067
  %v2587 = vunpack.c.l.b16 %v2068
  %v2588 = vunpack.c.l.b16 %v2069
  %v2589 = vunpack.c.l.b16 %v2070
  %v2590 = vunpack.c.l.b16 %v2071
  %v2591 = vunpack.c.l.b16 %v2072
  %v2592 = vunpack.c.l.b16 %v2073
  %v2593 = vunpack.c.l.b16 %v2074
  %v2594 = vunpack.c.l.b16 %v2075
  %v2595 = vunpack.c.l.b16 %v2076
  %v2596 = vunpack.c.l.b16 %v2077
  %v2597 = vunpack.c.l.b16 %v2078
  %v2598 = vunpack.c.l.b16 %v2079
  %v2599 = vunpack.c.l.b16 %v2080
  %v2600 = vunpack.c.l.b16 %v2081
  %v2601 = vunpack.c.l.b16 %v2082
  %v2602 = vunpack.c.l.b16 %v2083
  %v2603 = vunpack.c.l.b16 %v2084
  %v2604 = vunpack.c.l.b16 %v2085
  %v2605 = vunpack.c.l.b16 %v2086
  %v2606 = vunpack.c.l.b16 %v2087
  %v2607 = vunpack.c.l.b16 %v2088
  %v2608 = vunpack.c.l.b16 %v2089
  %v2609 = vunpack.c.l.b16 %v2090
  %v2610 = vunpack.c.l.b16 %v2091
  %v2611 = vunpack.c.l.b16 %v2092
  %v2612 = vunpack.c.l.b16 %v2093
  %v2613 = vunpack.c.l.b16 %v2094
  %v2614 = vunpack.c.l.b16 %v2095
  %v2615 = vunpack.c.l.b16 %v2096
  %v2616 = vunpack.c.l.b16 %v2097
  %v2617 = vunpack.c.l.b16 %v2098
  %v2618 = vunpack.c.l.b16 %v2099
  %v2619 = vunpack.c.l.b16 %v2100
  %v2620 = vunpack.c.l.b16 %v2101
  %v2621 = vunpack.c.l.b16 %v2102
  %v2622 = vunpack.c.l.b16 %v2103
  %v2623 = vunpack.c.l.b16 %v2104
  %v2624 = vunpack.c.l.b16 %v2105
  %v2625 = vunpack.c.l.b16 %v2106
  %v2626 = vunpack.c.l.b16 %v2107
  %v2627 = vunpack.c.l.b16 %v2108
  %v2628 = vunpack.c.l.b16 %v2109
  %v2629 = vunpack.c.l.b16 %v2110
  %v2630 = vunpack.c.l.b16 %v2111
  %v2631 = vunpack.c.l.b16 %v2112
  %v2632 = vpack.c.b16 %v2377, %v2376
  %v2633 = vpack.c.b16 %v2379, %v2378
  %v2634 = vpack.c.b16 %v2381, %v2380
  %v2635 = vpack.c.b16 %v2383, %v2382
  %v2636 = vpack.c.b16 %v2385, %v2384
  %v2637 = vpack.c.b16 %v2387, %v2386
  %v2638 = vpack.c.b16 %v2389, %v2388
  %v2639 = vpack.c.b16 %v2391, %v2390
  %v2640 = vpack.c.b16 %v2393, %v2392
  %v2641 = vpack.c.b16 %v2395, %v2394
  %v2642 = vpack.c.b16 %v2397, %v2396
  %v2643 = vpack.c.b16 %v2399, %v2398
  %v2644 = vpack.c.b16 %v2401, %v2400
  %v2645 = vpack.c.b16 %v2403, %v2402
  %v2646 = vpack.c.b16 %v2405, %v2404
  %v2647 = vpack.c.b16 %v2407, %v2406
  %v2648 = vpack.c.b16 %v2409, %v2408
  %v2649 = vpack.c.b16 %v2411, %v2410
  %v2650 = vpack.c.b16 %v2413, %v2412
  %v2651 = vpack.c.b16 %v2415, %v2414
  %v2652 = vpack.c.b16 %v2417, %v2416
  %v2653 = vpack.c.b16 %v2419, %v2418
  %v2654 = vpack.c.b16 %v2421, %v2420
  %v2655 = vpack.c.b16 %v2423, %v2422
  %v2656 = vpack.c.b16 %v2425, %v2424
  %v2657 = vpack.c.b16 %v2427, %v2426
  %v2658 = vpack.c.b16 %v2429, %v2428
  %v2659 = vpack.c.b16 %v2431, %v2430
  %v2660 = vpack.c.b16 %v2433, %v2432
  %v2661 = vpack.c.b16 %v2435, %v2434
  %v2662 = vpack.c.b16 %v2437, %v2436
  %v2663 = vpack.c.b16 %v2439, %v2438
  %v2664 = vpack.c.b16 %v2441, %v2440
  %v2665 = vpack.c.b16 %v2443, %v2442
  %v2666 = vpack.c.b16 %v2445, %v2444
  %v2667 = vpack.c.b16 %v2447, %v2446
  %v2668 = vpack.c.b16 %v2449, %v2448
  %v2669 = vpack.c.b16 %v2451, %v2450
  %v2670 = vpack.c.b16 %v2453, %v2452
  %v2671 = vpack.c.b16 %v2455, %v2454
  %v2672 = vpack.c.b16 %v2457, %v2456
  %v2673 = vpack.c.b16 %v2459, %v2458
  %v2674 = vpack.c.b16 %v2461, %v2460
  %v2675 = vpack.c.b16 %v2463, %v2462
  %v2676 = vpack.c.b16 %v2465, %v2464
  %v2677 = vpack.c.b16 %v2467, %v2466
  %v2678 = vpack.c.b16 %v2469, %v2468
  %v2679 = vpack.c.b16 %v2471, %v2470
  %v2680 = vpack.c.b16 %v2473, %v2472
  %v2681 = vpack.c.b16 %v2475, %v2474
  %v2682 = vpack.c.b16 %v2477, %v2476
  %v2683 = vpack.c.b16 %v2479, %v2478
  %v2684 = vpack.c.b16 %v2481, %v2480
  %v2685 = vpack.c.b16 %v2483, %v2482
  %v2686 = vpack.c.b16 %v2485, %v2484
  %v2687 = vpack.c.b16 %v2487, %v2486
  %v2688 = vpack.c.b16 %v2489, %v2488
  %v2689 = vpack.c.b16 %v2491, %v2490
  %v2690 = vpack.c.b16 %v2493, %v2492
  %v2691 = vpack.c.b16 %v2495, %v2494
  %v2692 = vpack.c.b16 %v2497, %v2496
  %v2693 = vpack.c.b16 %v2499, %v2498
  %v2694 = vpack.c.b16 %v2501, %v2500
  %v2695 = vpack.c.b16 %v2503, %v2502
  %v2696 = vpack.c.b16 %v2505, %v2504
  %v2697 = vpack.c.b16 %v2507, %v2506
  %v2698 = vpack.c.b16 %v2509, %v2508
  %v2699 = vpack.c.b16 %v2511, %v2510
  %v2700 = vpack.c.b16 %v2513, %v2512
  %v2701 = vpack.c.b16 %v2515, %v2514
  %v2702 = vpack.c.b16 %v2517, %v2516
  %v2703 = vpack.c.b16 %v2519, %v2518
  %v2704 = vpack.c.b16 %v2521, %v2520
  %v2705 = vpack.c.b16 %v2523, %v2522
  %v2706 = vpack.c.b16 %v2525, %v2524
  %v2707 = vpack.c.b16 %v2527, %v2526
  %v2708 = vpack.c.b16 %v2529, %v2528
  %v2709 = vpack.c.b16 %v2531, %v2530
  %v2710 = vpack.c.b16 %v2533, %v2532
  %v2711 = vpack.c.b16 %v2535, %v2534
  %v2712 = vpack.c.b16 %v2537, %v2536
  %v2713 = vpack.c.b16 %v2539, %v2538
  %v2714 = vpack.c.b16 %v2541, %v2540
  %v2715 = vpack.c.b16 %v2543, %v2542
  %v2716 = vpack.c.b16 %v2545, %v2544
  %v2717 = vpack.c.b16 %v2547, %v2546
  %v2718 = vpack.c.b16 %v2549, %v2548
  %v2719 = vpack.c.b16 %v2551, %v2550
  %v2720 = vpack.c.b16 %v2553, %v2552
  %v2721 = vpack.c.b16 %v2555, %v2554
  %v2722 = vpack.c.b16 %v2557, %v2556
  %v2723 = vpack.c.b16 %v2559, %v2558
  %v2724 = vpack.c.b16 %v2561, %v2560
  %v2725 = vpack.c.b16 %v2563, %v2562
  %v2726 = vpack.c.b16 %v2565, %v2564
  %v2727 = vpack.c.b16 %v2567, %v2566
  %v2728 = vpack.c.b16 %v2569, %v2568
  %v2729 = vpack.c.b16 %v2571, %v2570
  %v2730 = vpack.c.b16 %v2573, %v2572
  %v2731 = vpack.c.b16 %v2575, %v2574
  %v2732 = vpack.c.b16 %v2577, %v2576
  %v2733 = vpack.c.b16 %v2579, %v2578
  %v2734 = vpack.c.b16 %v2581, %v2580
  %v2735 = vpack.c.b16 %v2583, %v2582
  %v2736 = vpack.c.b16 %v2585, %v2584
  %v2737 = vpack.c.b16 %v2587, %v2586
  %v2738 = vpack.c.b16 %v2589, %v2588
  %v2739 = vpack.c.b16 %v2591, %v2590
  %v2740 = vpack.c.b16 %v2593, %v2592
  %v2741 = vpack.c.b16 %v2595, %v2594
  %v2742 = vpack.c.b16 %v2597, %v2596
  %v2743 = vpack.c.b16 %v2599, %v2598
  %v2744 = vpack.c.b16 %v2601, %v2600
  %v2745 = vpack.c.b16 %v2603, %v2602
  %v2746 = vpack.c.b16 %v2605, %v2604
  %v2747 = vpack.c.b16 %v2607, %v2606
  %v2748 = vpack.c.b16 %v2609, %v2608
  %v2749 = vpack.c.b16 %v2611, %v2610
  %v2750 = vpack.c.b16 %v2613, %v2612
  %v2751 = vpack.c.b16 %v2615, %v2614
  %v2752 = vpack.c.b16 %v2617, %v2616
  %v2753 = vpack.c.b16 %v2619, %v2618
  %v2754 = vpack.c.b16 %v2621, %v2620
  %v2755 = vpack.c.b16 %v2623, %v2622
  %v2756 = vpack.c.b16 %v2625, %v2624
  %v2757 = vpack.c.b16 %v2627, %v2626
  %v2758 = vpack.c.b16 %v2629, %v2628
  %v2759 = vpack.c.b16 %v2631, %v2630
  %2888 = vmatprep.subr.bf16.mxu0 0
  %2889 = vmatpush1.bf16.msra.mxu0 %v2632
  %2890 = vmatprep.subr.bf16.mxu0 0
  %2891 = vmatpush1.bf16.msra.mxu0 %v2633
  %2892 = vmatprep.subr.bf16.mxu0 0
  %2893 = vmatpush1.bf16.msra.mxu0 %v2634
  %2894 = vmatprep.subr.bf16.mxu0 0
  %2895 = vmatpush1.bf16.msra.mxu0 %v2635
  %2896 = vmatprep.subr.bf16.mxu0 0
  %2897 = vmatpush1.bf16.msra.mxu0 %v2636
  %2898 = vmatprep.subr.bf16.mxu0 0
  %2899 = vmatpush1.bf16.msra.mxu0 %v2637
  %2900 = vmatprep.subr.bf16.mxu0 0
  %2901 = vmatpush1.bf16.msra.mxu0 %v2638
  %2902 = vmatprep.subr.bf16.mxu0 0
  %2903 = vmatpush1.bf16.msra.mxu0 %v2639
  %2904 = vmatprep.subr.bf16.mxu0 0
  %2905 = vmatpush1.bf16.msra.mxu0 %v2640
  %2906 = vmatprep.subr.bf16.mxu0 0
  %2907 = vmatpush1.bf16.msra.mxu0 %v2641
  %2908 = vmatprep.subr.bf16.mxu0 0
  %2909 = vmatpush1.bf16.msra.mxu0 %v2642
  %2910 = vmatprep.subr.bf16.mxu0 0
  %2911 = vmatpush1.bf16.msra.mxu0 %v2643
  %2912 = vmatprep.subr.bf16.mxu0 0
  %2913 = vmatpush1.bf16.msra.mxu0 %v2644
  %2914 = vmatprep.subr.bf16.mxu0 0
  %2915 = vmatpush1.bf16.msra.mxu0 %v2645
  %2916 = vmatprep.subr.bf16.mxu0 0
  %2917 = vmatpush1.bf16.msra.mxu0 %v2646
  %2918 = vmatprep.subr.bf16.mxu0 0
  %2919 = vmatpush1.bf16.msra.mxu0 %v2647
  %2920 = vmatprep.mubr.bf16.mxu0 %v1842
  %2921 = vmatmul.mubr.bf16.gmra.mrb[0].mxu0 %v1841
  %v2922 = vpop.f32.mrb[0].mxu0
  %v2923 = vadd.f32 %v2118, %v2922
  %v2924 = vpop.f32.mrb[0].mxu0
  %v2925 = vpop.f32.mrb[0].mxu0
  %v2926 = vpop.f32.mrb[0].mxu0
  %2927 = vdwg.mxu0
  %2928 = vmatprep.subr.bf16.mxu0 0
  %2929 = vmatpush1.bf16.msra.mxu0 %v2648
  %2930 = vmatprep.subr.bf16.mxu0 0
  %2931 = vmatpush1.bf16.msra.mxu0 %v2649
  %2932 = vmatprep.subr.bf16.mxu0 0
  %2933 = vmatpush1.bf16.msra.mxu0 %v2650
  %2934 = vmatprep.subr.bf16.mxu0 0
  %2935 = vmatpush1.bf16.msra.mxu0 %v2651
  %2936 = vmatprep.subr.bf16.mxu0 0
  %2937 = vmatpush1.bf16.msra.mxu0 %v2652
  %2938 = vmatprep.subr.bf16.mxu0 0
  %2939 = vmatpush1.bf16.msra.mxu0 %v2653
  %2940 = vmatprep.subr.bf16.mxu0 0
  %2941 = vmatpush1.bf16.msra.mxu0 %v2654
  %2942 = vmatprep.subr.bf16.mxu0 0
  %2943 = vmatpush1.bf16.msra.mxu0 %v2655
  %2944 = vmatprep.subr.bf16.mxu0 0
  %2945 = vmatpush1.bf16.msra.mxu0 %v2656
  %2946 = vmatprep.subr.bf16.mxu0 0
  %2947 = vmatpush1.bf16.msra.mxu0 %v2657
  %2948 = vmatprep.subr.bf16.mxu0 0
  %2949 = vmatpush1.bf16.msra.mxu0 %v2658
  %2950 = vmatprep.subr.bf16.mxu0 0
  %2951 = vmatpush1.bf16.msra.mxu0 %v2659
  %2952 = vmatprep.subr.bf16.mxu0 0
  %2953 = vmatpush1.bf16.msra.mxu0 %v2660
  %2954 = vmatprep.subr.bf16.mxu0 0
  %2955 = vmatpush1.bf16.msra.mxu0 %v2661
  %2956 = vmatprep.subr.bf16.mxu0 0
  %2957 = vmatpush1.bf16.msra.mxu0 %v2662
  %2958 = vmatprep.subr.bf16.mxu0 0
  %2959 = vmatpush1.bf16.msra.mxu0 %v2663
  %2960 = vmatprep.mubr.bf16.mxu0 %v1844
  %2961 = vmatmul.mubr.bf16.gmra.mrb[0].mxu0 %v1843
  %v2962 = vpop.f32.mrb[0].mxu0
  %v2963 = vadd.f32 %v2923, %v2962
  %v2964 = vpop.f32.mrb[0].mxu0
  %v2965 = vpop.f32.mrb[0].mxu0
  %v2966 = vpop.f32.mrb[0].mxu0
  %2967 = vdwg.mxu0
  %2968 = vmatprep.subr.bf16.mxu0 0
  %2969 = vmatpush1.bf16.msra.mxu0 %v2664
  %2970 = vmatprep.subr.bf16.mxu0 0
  %2971 = vmatpush1.bf16.msra.mxu0 %v2665
  %2972 = vmatprep.subr.bf16.mxu0 0
  %2973 = vmatpush1.bf16.msra.mxu0 %v2666
  %2974 = vmatprep.subr.bf16.mxu0 0
  %2975 = vmatpush1.bf16.msra.mxu0 %v2667
  %2976 = vmatprep.subr.bf16.mxu0 0
  %2977 = vmatpush1.bf16.msra.mxu0 %v2668
  %2978 = vmatprep.subr.bf16.mxu0 0
  %2979 = vmatpush1.bf16.msra.mxu0 %v2669
  %2980 = vmatprep.subr.bf16.mxu0 0
  %2981 = vmatpush1.bf16.msra.mxu0 %v2670
  %2982 = vmatprep.subr.bf16.mxu0 0
  %2983 = vmatpush1.bf16.msra.mxu0 %v2671
  %2984 = vmatprep.subr.bf16.mxu0 0
  %2985 = vmatpush1.bf16.msra.mxu0 %v2672
  %2986 = vmatprep.subr.bf16.mxu0 0
  %2987 = vmatpush1.bf16.msra.mxu0 %v2673
  %2988 = vmatprep.subr.bf16.mxu0 0
  %2989 = vmatpush1.bf16.msra.mxu0 %v2674
  %2990 = vmatprep.subr.bf16.mxu0 0
  %2991 = vmatpush1.bf16.msra.mxu0 %v2675
  %2992 = vmatprep.subr.bf16.mxu0 0
  %2993 = vmatpush1.bf16.msra.mxu0 %v2676
  %2994 = vmatprep.subr.bf16.mxu0 0
  %2995 = vmatpush1.bf16.msra.mxu0 %v2677
  %2996 = vmatprep.subr.bf16.mxu0 0
  %2997 = vmatpush1.bf16.msra.mxu0 %v2678
  %2998 = vmatprep.subr.bf16.mxu0 0
  %2999 = vmatpush1.bf16.msra.mxu0 %v2679
  %3000 = vmatprep.mubr.bf16.mxu0 %v1846
  %3001 = vmatmul.mubr.bf16.gmra.mrb[0].mxu0 %v1845
  %v3002 = vpop.f32.mrb[0].mxu0
  %v3003 = vadd.f32 %v2963, %v3002
  %v3004 = vpop.f32.mrb[0].mxu0
  %v3005 = vpop.f32.mrb[0].mxu0
  %v3006 = vpop.f32.mrb[0].mxu0
  %3007 = vdwg.mxu0
  %3008 = vmatprep.subr.bf16.mxu0 0
  %3009 = vmatpush1.bf16.msra.mxu0 %v2680
  %3010 = vmatprep.subr.bf16.mxu0 0
  %3011 = vmatpush1.bf16.msra.mxu0 %v2681
  %3012 = vmatprep.subr.bf16.mxu0 0
  %3013 = vmatpush1.bf16.msra.mxu0 %v2682
  %3014 = vmatprep.subr.bf16.mxu0 0
  %3015 = vmatpush1.bf16.msra.mxu0 %v2683
  %3016 = vmatprep.subr.bf16.mxu0 0
  %3017 = vmatpush1.bf16.msra.mxu0 %v2684
  %3018 = vmatprep.subr.bf16.mxu0 0
  %3019 = vmatpush1.bf16.msra.mxu0 %v2685
  %3020 = vmatprep.subr.bf16.mxu0 0
  %3021 = vmatpush1.bf16.msra.mxu0 %v2686
  %3022 = vmatprep.subr.bf16.mxu0 0
  %3023 = vmatpush1.bf16.msra.mxu0 %v2687
  %3024 = vmatprep.subr.bf16.mxu0 0
  %3025 = vmatpush1.bf16.msra.mxu0 %v2688
  %3026 = vmatprep.subr.bf16.mxu0 0
  %3027 = vmatpush1.bf16.msra.mxu0 %v2689
  %3028 = vmatprep.subr.bf16.mxu0 0
  %3029 = vmatpush1.bf16.msra.mxu0 %v2690
  %3030 = vmatprep.subr.bf16.mxu0 0
  %3031 = vmatpush1.bf16.msra.mxu0 %v2691
  %3032 = vmatprep.subr.bf16.mxu0 0
  %3033 = vmatpush1.bf16.msra.mxu0 %v2692
  %3034 = vmatprep.subr.bf16.mxu0 0
  %3035 = vmatpush1.bf16.msra.mxu0 %v2693
  %3036 = vmatprep.subr.bf16.mxu0 0
  %3037 = vmatpush1.bf16.msra.mxu0 %v2694
  %3038 = vmatprep.subr.bf16.mxu0 0
  %3039 = vmatpush1.bf16.msra.mxu0 %v2695
  %3040 = vmatprep.mubr.bf16.mxu0 %v1848
  %3041 = vmatmul.mubr.bf16.gmra.mrb[0].mxu0 %v1847
  %v3042 = vpop.f32.mrb[0].mxu0
  %v3043 = vadd.f32 %v3003, %v3042
  %v3044 = vpop.f32.mrb[0].mxu0
  %v3045 = vpop.f32.mrb[0].mxu0
  %v3046 = vpop.f32.mrb[0].mxu0
  %3047 = vdwg.mxu0
  %3048 = vmatprep.subr.bf16.mxu0 0
  %3049 = vmatpush1.bf16.msra.mxu0 %v2696
  %3050 = vmatprep.subr.bf16.mxu0 0
  %3051 = vmatpush1.bf16.msra.mxu0 %v2697
  %3052 = vmatprep.subr.bf16.mxu0 0
  %3053 = vmatpush1.bf16.msra.mxu0 %v2698
  %3054 = vmatprep.subr.bf16.mxu0 0
  %3055 = vmatpush1.bf16.msra.mxu0 %v2699
  %3056 = vmatprep.subr.bf16.mxu0 0
  %3057 = vmatpush1.bf16.msra.mxu0 %v2700
  %3058 = vmatprep.subr.bf16.mxu0 0
  %3059 = vmatpush1.bf16.msra.mxu0 %v2701
  %3060 = vmatprep.subr.bf16.mxu0 0
  %3061 = vmatpush1.bf16.msra.mxu0 %v2702
  %3062 = vmatprep.subr.bf16.mxu0 0
  %3063 = vmatpush1.bf16.msra.mxu0 %v2703
  %3064 = vmatprep.subr.bf16.mxu0 0
  %3065 = vmatpush1.bf16.msra.mxu0 %v2704
  %3066 = vmatprep.subr.bf16.mxu0 0
  %3067 = vmatpush1.bf16.msra.mxu0 %v2705
  %3068 = vmatprep.subr.bf16.mxu0 0
  %3069 = vmatpush1.bf16.msra.mxu0 %v2706
  %3070 = vmatprep.subr.bf16.mxu0 0
  %3071 = vmatpush1.bf16.msra.mxu0 %v2707
  %3072 = vmatprep.subr.bf16.mxu0 0
  %3073 = vmatpush1.bf16.msra.mxu0 %v2708
  %3074 = vmatprep.subr.bf16.mxu0 0
  %3075 = vmatpush1.bf16.msra.mxu0 %v2709
  %3076 = vmatprep.subr.bf16.mxu0 0
  %3077 = vmatpush1.bf16.msra.mxu0 %v2710
  %3078 = vmatprep.subr.bf16.mxu0 0
  %3079 = vmatpush1.bf16.msra.mxu0 %v2711
  %3080 = vmatprep.mubr.bf16.mxu0 %v1850
  %3081 = vmatmul.mubr.bf16.gmra.mrb[0].mxu0 %v1849
  %v3082 = vpop.f32.mrb[0].mxu0
  %v3083 = vadd.f32 %v3043, %v3082
  %v3084 = vpop.f32.mrb[0].mxu0
  %v3085 = vpop.f32.mrb[0].mxu0
  %v3086 = vpop.f32.mrb[0].mxu0
  %3087 = vdwg.mxu0
  %3088 = vmatprep.subr.bf16.mxu0 0
  %3089 = vmatpush1.bf16.msra.mxu0 %v2712
  %3090 = vmatprep.subr.bf16.mxu0 0
  %3091 = vmatpush1.bf16.msra.mxu0 %v2713
  %3092 = vmatprep.subr.bf16.mxu0 0
  %3093 = vmatpush1.bf16.msra.mxu0 %v2714
  %3094 = vmatprep.subr.bf16.mxu0 0
  %3095 = vmatpush1.bf16.msra.mxu0 %v2715
  %3096 = vmatprep.subr.bf16.mxu0 0
  %3097 = vmatpush1.bf16.msra.mxu0 %v2716
  %3098 = vmatprep.subr.bf16.mxu0 0
  %3099 = vmatpush1.bf16.msra.mxu0 %v2717
  %3100 = vmatprep.subr.bf16.mxu0 0
  %3101 = vmatpush1.bf16.msra.mxu0 %v2718
  %3102 = vmatprep.subr.bf16.mxu0 0
  %3103 = vmatpush1.bf16.msra.mxu0 %v2719
  %3104 = vmatprep.subr.bf16.mxu0 0
  %3105 = vmatpush1.bf16.msra.mxu0 %v2720
  %3106 = vmatprep.subr.bf16.mxu0 0
  %3107 = vmatpush1.bf16.msra.mxu0 %v2721
  %3108 = vmatprep.subr.bf16.mxu0 0
  %3109 = vmatpush1.bf16.msra.mxu0 %v2722
  %3110 = vmatprep.subr.bf16.mxu0 0
  %3111 = vmatpush1.bf16.msra.mxu0 %v2723
  %3112 = vmatprep.subr.bf16.mxu0 0
  %3113 = vmatpush1.bf16.msra.mxu0 %v2724
  %3114 = vmatprep.subr.bf16.mxu0 0
  %3115 = vmatpush1.bf16.msra.mxu0 %v2725
  %3116 = vmatprep.subr.bf16.mxu0 0
  %3117 = vmatpush1.bf16.msra.mxu0 %v2726
  %3118 = vmatprep.subr.bf16.mxu0 0
  %3119 = vmatpush1.bf16.msra.mxu0 %v2727
  %3120 = vmatprep.mubr.bf16.mxu0 %v1852
  %3121 = vmatmul.mubr.bf16.gmra.mrb[0].mxu0 %v1851
  %v3122 = vpop.f32.mrb[0].mxu0
  %v3123 = vadd.f32 %v3083, %v3122
  %v3124 = vpop.f32.mrb[0].mxu0
  %v3125 = vpop.f32.mrb[0].mxu0
  %v3126 = vpop.f32.mrb[0].mxu0
  %3127 = vdwg.mxu0
  %3128 = vmatprep.subr.bf16.mxu0 0
  %3129 = vmatpush1.bf16.msra.mxu0 %v2728
  %3130 = vmatprep.subr.bf16.mxu0 0
  %3131 = vmatpush1.bf16.msra.mxu0 %v2729
  %3132 = vmatprep.subr.bf16.mxu0 0
  %3133 = vmatpush1.bf16.msra.mxu0 %v2730
  %3134 = vmatprep.subr.bf16.mxu0 0
  %3135 = vmatpush1.bf16.msra.mxu0 %v2731
  %3136 = vmatprep.subr.bf16.mxu0 0
  %3137 = vmatpush1.bf16.msra.mxu0 %v2732
  %3138 = vmatprep.subr.bf16.mxu0 0
  %3139 = vmatpush1.bf16.msra.mxu0 %v2733
  %3140 = vmatprep.subr.bf16.mxu0 0
  %3141 = vmatpush1.bf16.msra.mxu0 %v2734
  %3142 = vmatprep.subr.bf16.mxu0 0
  %3143 = vmatpush1.bf16.msra.mxu0 %v2735
  %3144 = vmatprep.subr.bf16.mxu0 0
  %3145 = vmatpush1.bf16.msra.mxu0 %v2736
  %3146 = vmatprep.subr.bf16.mxu0 0
  %3147 = vmatpush1.bf16.msra.mxu0 %v2737
  %3148 = vmatprep.subr.bf16.mxu0 0
  %3149 = vmatpush1.bf16.msra.mxu0 %v2738
  %3150 = vmatprep.subr.bf16.mxu0 0
  %3151 = vmatpush1.bf16.msra.mxu0 %v2739
  %3152 = vmatprep.subr.bf16.mxu0 0
  %3153 = vmatpush1.bf16.msra.mxu0 %v2740
  %3154 = vmatprep.subr.bf16.mxu0 0
  %3155 = vmatpush1.bf16.msra.mxu0 %v2741
  %3156 = vmatprep.subr.bf16.mxu0 0
  %3157 = vmatpush1.bf16.msra.mxu0 %v2742
  %3158 = vmatprep.subr.bf16.mxu0 0
  %3159 = vmatpush1.bf16.msra.mxu0 %v2743
  %3160 = vmatprep.mubr.bf16.mxu0 %v1854
  %3161 = vmatmul.mubr.bf16.gmra.mrb[0].mxu0 %v1853
  %v3162 = vpop.f32.mrb[0].mxu0
  %v3163 = vadd.f32 %v3123, %v3162
  %v3164 = vpop.f32.mrb[0].mxu0
  %v3165 = vpop.f32.mrb[0].mxu0
  %v3166 = vpop.f32.mrb[0].mxu0
  %3167 = vdwg.mxu0
  %3168 = vmatprep.subr.bf16.mxu0 0
  %3169 = vmatpush1.bf16.msra.mxu0 %v2744
  %3170 = vmatprep.subr.bf16.mxu0 0
  %3171 = vmatpush1.bf16.msra.mxu0 %v2745
  %3172 = vmatprep.subr.bf16.mxu0 0
  %3173 = vmatpush1.bf16.msra.mxu0 %v2746
  %3174 = vmatprep.subr.bf16.mxu0 0
  %3175 = vmatpush1.bf16.msra.mxu0 %v2747
  %3176 = vmatprep.subr.bf16.mxu0 0
  %3177 = vmatpush1.bf16.msra.mxu0 %v2748
  %3178 = vmatprep.subr.bf16.mxu0 0
  %3179 = vmatpush1.bf16.msra.mxu0 %v2749
  %3180 = vmatprep.subr.bf16.mxu0 0
  %3181 = vmatpush1.bf16.msra.mxu0 %v2750
  %3182 = vmatprep.subr.bf16.mxu0 0
  %3183 = vmatpush1.bf16.msra.mxu0 %v2751
  %3184 = vmatprep.subr.bf16.mxu0 0
  %3185 = vmatpush1.bf16.msra.mxu0 %v2752
  %3186 = vmatprep.subr.bf16.mxu0 0
  %3187 = vmatpush1.bf16.msra.mxu0 %v2753
  %3188 = vmatprep.subr.bf16.mxu0 0
  %3189 = vmatpush1.bf16.msra.mxu0 %v2754
  %3190 = vmatprep.subr.bf16.mxu0 0
  %3191 = vmatpush1.bf16.msra.mxu0 %v2755
  %3192 = vmatprep.subr.bf16.mxu0 0
  %3193 = vmatpush1.bf16.msra.mxu0 %v2756
  %3194 = vmatprep.subr.bf16.mxu0 0
  %3195 = vmatpush1.bf16.msra.mxu0 %v2757
  %3196 = vmatprep.subr.bf16.mxu0 0
  %3197 = vmatpush1.bf16.msra.mxu0 %v2758
  %3198 = vmatprep.subr.bf16.mxu0 0
  %3199 = vmatpush1.bf16.msra.mxu0 %v2759
  %3200 = vmatprep.mubr.bf16.mxu0 %v1856
  %3201 = vmatmul.mubr.bf16.gmra.mrb[0].mxu0 %v1855
  %v3202 = vpop.f32.mrb[0].mxu0
  %v3203 = vadd.f32 %v3163, %v3202
  %v3204 = vpop.f32.mrb[0].mxu0
  %v3205 = vpop.f32.mrb[0].mxu0
  %v3206 = vpop.f32.mrb[0].mxu0
  %3207 = vdwg.mxu0
  %v3208 = vadd.f32 %v1024, %v3203
  %v3209 = vld [vmem:[%s9] sm:$0x1]
  %v3210 = vld [vmem:[%s10] sm:$0x1]
  %v3211 = vsel %vm187, %v3208, 0.0
  %3212 = vadd.xlane.f32.xlu0 %v3211
  %v3213 = vpop.xlane.xlu0 %3212
  %v3214 = vmul.f32 %v3213, %v1000
  %v3215 = vsub.f32 %v3208, %v3214
  %v3216 = vmul.f32 %v3215, %v3215
  %v3217 = vsel %vm187, %v3216, 0.0
  %3218 = vadd.xlane.f32.xlu0 %v3217
  %v3219 = vpop.xlane.xlu0 %3218
  %v3220 = vmul.f32 %v3219, %v1000
  %v3221 = vadd.f32 %v3220, 1e-05
  %v3222 = vrsqrt.pop %v3221
  %v3223 = vmul.f32 %v3215, %v3222
  %v3225 = vlaneseq
  %v3226 = vshrl.u32 %v3225, 7
  %v3227 = vsub.s32 0, %v3226
  %v3228 = vrot.slane %v3209, %v3227
  %v3230 = vmul.f32 %v3223, %v3228
  %v3232 = vlaneseq
  %v3233 = vshrl.u32 %v3232, 7
  %v3234 = vsub.s32 0, %v3233
  %v3235 = vrot.slane %v3210, %v3234
  %v3237 = vadd.f32 %v3230, %v3235
  %v3238 = vpack.c.bf16 %v3237, %v3237
  %s3239 = scalar_lea.vmem %s3, 64
  %v3240 = vld [vmem:[%s3239] sm:$0xff]
  %v3241 = vld [vmem:[%s3239 + $0x8] sm:$0xff]
  %v3242 = vld [vmem:[%s3239 + $0x10] sm:$0xff]
  %v3243 = vld [vmem:[%s3239 + $0x18] sm:$0xff]
  %v3244 = vld [vmem:[%s3239 + $0x20] sm:$0xff]
  %v3245 = vld [vmem:[%s3239 + $0x28] sm:$0xff]
  %v3246 = vld [vmem:[%s3239 + $0x30] sm:$0xff]
  %v3247 = vld [vmem:[%s3239 + $0x38] sm:$0xff]
  %s3248 = scalar_lea.vmem %s4, 2
  %v3249 = vld [vmem:[%s3248] sm:$0x3]
  %v3251 = vlaneseq
  %v3252 = vshrl.u32 %v3251, 7
  %v3253 = vsub.s32 0, %v3252
  %v3254 = vrot.slane %v3249, %v3253
  %v3255 = vlaneseq
  %v3256 = vshrl.u32 %v3255, 7
  %v3257 = vsub.s32 1, %v3256
  %v3258 = vrot.slane %v3249, %v3257
  %v3269 = vunpack.c.l.b16 %v3240
  %v3270 = vunpack.c.h.b16 %v3240
  %v3271 = vunpack.c.l.b16 %v3241
  %v3272 = vunpack.c.h.b16 %v3241
  %v3273 = vunpack.c.l.b16 %v3242
  %v3274 = vunpack.c.h.b16 %v3242
  %v3275 = vunpack.c.l.b16 %v3243
  %v3276 = vunpack.c.h.b16 %v3243
  %v3277 = vunpack.c.l.b16 %v3244
  %v3278 = vunpack.c.h.b16 %v3244
  %v3279 = vunpack.c.l.b16 %v3245
  %v3280 = vunpack.c.h.b16 %v3245
  %v3281 = vunpack.c.l.b16 %v3246
  %v3282 = vunpack.c.h.b16 %v3246
  %v3283 = vunpack.c.l.b16 %v3247
  %v3284 = vunpack.c.h.b16 %v3247
  %v3285 = vpack.c.b16 %v3271, %v3269
  %v3286 = vpack.c.b16 %v3272, %v3270
  %v3287 = vpack.c.b16 %v3275, %v3273
  %v3288 = vpack.c.b16 %v3276, %v3274
  %v3289 = vpack.c.b16 %v3279, %v3277
  %v3290 = vpack.c.b16 %v3280, %v3278
  %v3291 = vpack.c.b16 %v3283, %v3281
  %v3292 = vpack.c.b16 %v3284, %v3282
  %v3302 = vsel %vm187, %v3238, 0
  %3304 = vmatprep.subr.bf16.mxu0 %v3286
  %3305 = vmatpush1.bf16.msra.mxu0 %v3285
  %3306 = vmatprep.subr.bf16.mxu0 %v3288
  %3307 = vmatpush1.bf16.msra.mxu0 %v3287
  %3308 = vmatprep.subr.bf16.mxu0 %v3290
  %3309 = vmatpush1.bf16.msra.mxu0 %v3289
  %3310 = vmatprep.subr.bf16.mxu0 %v3292
  %3311 = vmatpush1.bf16.msra.mxu0 %v3291
  %3312 = vmatprep.subr.bf16.mxu0 0
  %3313 = vmatpush1.bf16.msra.mxu0 0
  %3314 = vmatprep.subr.bf16.mxu0 0
  %3315 = vmatpush1.bf16.msra.mxu0 0
  %3316 = vmatprep.subr.bf16.mxu0 0
  %3317 = vmatpush1.bf16.msra.mxu0 0
  %3318 = vmatprep.subr.bf16.mxu0 0
  %3319 = vmatpush1.bf16.msra.mxu0 0
  %3320 = vmatprep.subr.bf16.mxu0 0
  %3321 = vmatpush1.bf16.msra.mxu0 0
  %3322 = vmatprep.subr.bf16.mxu0 0
  %3323 = vmatpush1.bf16.msra.mxu0 0
  %3324 = vmatprep.subr.bf16.mxu0 0
  %3325 = vmatpush1.bf16.msra.mxu0 0
  %3326 = vmatprep.subr.bf16.mxu0 0
  %3327 = vmatpush1.bf16.msra.mxu0 0
  %3328 = vmatprep.subr.bf16.mxu0 0
  %3329 = vmatpush1.bf16.msra.mxu0 0
  %3330 = vmatprep.subr.bf16.mxu0 0
  %3331 = vmatpush1.bf16.msra.mxu0 0
  %3332 = vmatprep.subr.bf16.mxu0 0
  %3333 = vmatpush1.bf16.msra.mxu0 0
  %3334 = vmatprep.subr.bf16.mxu0 0
  %3335 = vmatpush1.bf16.msra.mxu0 0
  %3336 = vmatprep.mubr.bf16.mxu0 0
  %3337 = vmatmul.mubr.bf16.gmra.mrb[0].mxu0 %v3302
  %v3338 = vpop.f32.mrb[0].mxu0
  %v3339 = vadd.f32 %v3254, %v3338
  %v3340 = vpop.f32.mrb[0].mxu0
  %v3341 = vadd.f32 %v3258, %v3340
  %v3342 = vpop.f32.mrb[0].mxu0
  %v3343 = vpop.f32.mrb[0].mxu0
  %3344 = vdwg.mxu0
  %3346 = vrot.lane.b32.xlu0 %v3339, 64
  %v3347 = vpop.permute.xlu0 %3346
  %v3348 = vsel %vm235, %v3339, 0
  %v3350 = vsel %vm235, %v3347, 0
  %3352 = vmatprep.subr.mxu0 0.0
  %3353 = vmatpush1.xpose.msra.mxu0 %v3350
  %3354 = vmatprep.subr.mxu0 0.0
  %3355 = vmatpush1.xpose.msra.mxu0 0.0
  %3356 = vmatprep.subr.mxu0 0.0
  %3357 = vmatpush1.xpose.msra.mxu0 0.0
  %3358 = vmatprep.subr.mxu0 0.0
  %3359 = vmatpush1.xpose.msra.mxu0 0.0
  %3360 = vmatprep.subr.mxu0 0.0
  %3361 = vmatpush1.xpose.msra.mxu0 0.0
  %3362 = vmatprep.subr.mxu0 0.0
  %3363 = vmatpush1.xpose.msra.mxu0 0.0
  %3364 = vmatprep.subr.mxu0 0.0
  %3365 = vmatpush1.xpose.msra.mxu0 0.0
  %3366 = vmatprep.subr.mxu0 0.0
  %3367 = vmatpush1.xpose.msra.mxu0 0.0
  %3368 = vmatprep.subr.mxu0 0.0
  %3369 = vmatpush1.xpose.msra.mxu0 0.0
  %3370 = vmatprep.subr.mxu0 0.0
  %3371 = vmatpush1.xpose.msra.mxu0 0.0
  %3372 = vmatprep.subr.mxu0 0.0
  %3373 = vmatpush1.xpose.msra.mxu0 0.0
  %3374 = vmatprep.subr.mxu0 0.0
  %3375 = vmatpush1.xpose.msra.mxu0 0.0
  %3376 = vmatprep.subr.mxu0 0.0
  %3377 = vmatpush1.xpose.msra.mxu0 0.0
  %3378 = vmatprep.subr.mxu0 0.0
  %3379 = vmatpush1.xpose.msra.mxu0 0.0
  %3380 = vmatprep.subr.mxu0 0.0
  %3381 = vmatpush1.xpose.msra.mxu0 0.0
  %3382 = vmatprep.subr.mxu0 0.0
  %3383 = vmatpush1.xpose.msra.mxu0 0.0
  %3384 = vmatprep.subr.mxu0 0.0
  %3385 = vmatpush1.xpose.msra.mxu0 0.0
  %3386 = vmatprep.subr.mxu0 0.0
  %3387 = vmatpush1.xpose.msra.mxu0 0.0
  %3388 = vmatprep.subr.mxu0 0.0
  %3389 = vmatpush1.xpose.msra.mxu0 0.0
  %3390 = vmatprep.subr.mxu0 0.0
  %3391 = vmatpush1.xpose.msra.mxu0 0.0
  %3392 = vmatprep.subr.mxu0 0.0
  %3393 = vmatpush1.xpose.msra.mxu0 0.0
  %3394 = vmatprep.subr.mxu0 0.0
  %3395 = vmatpush1.xpose.msra.mxu0 0.0
  %3396 = vmatprep.subr.mxu0 0.0
  %3397 = vmatpush1.xpose.msra.mxu0 0.0
  %3398 = vmatprep.subr.mxu0 0.0
  %3399 = vmatpush1.xpose.msra.mxu0 0.0
  %3400 = vmatprep.subr.mxu0 0.0
  %3401 = vmatpush1.xpose.msra.mxu0 0.0
  %3402 = vmatprep.subr.mxu0 0.0
  %3403 = vmatpush1.xpose.msra.mxu0 0.0
  %3404 = vmatprep.subr.mxu0 0.0
  %3405 = vmatpush1.xpose.msra.mxu0 0.0
  %3406 = vmatprep.subr.mxu0 0.0
  %3407 = vmatpush1.xpose.msra.mxu0 0.0
  %3408 = vmatprep.subr.mxu0 0.0
  %3409 = vmatpush1.xpose.msra.mxu0 0.0
  %3410 = vmatprep.subr.mxu0 0.0
  %3411 = vmatpush1.xpose.msra.mxu0 0.0
  %3412 = vmatprep.subr.mxu0 0.0
  %3413 = vmatpush1.xpose.msra.mxu0 0.0
  %3414 = vmatprep.subr.mxu0 0.0
  %3415 = vmatpush1.xpose.msra.mxu0 0.0
  %3416 = vmatprep.mubr.f32.mxu0 0.0
  %3417 = vmatmul.mubr.f32.gmra.mrb[0].mxu0 %v3348
  %v3418 = vpop.f32.mrb[0].mxu0
  %v3419 = vadd.f32 0.0, %v3418
  %v3420 = vpop.f32.mrb[0].mxu0
  %3421 = vdwg.mxu0
  %v3422 = vmul.f32 %v3419, 0.25
  %v3423 = vsel %vm311, %v3422, -inf
  %3424 = vmax.xlane.f32.xlu0 %v3423
  %v3425 = vpop.xlane.xlu0 %3424
  %v3426 = vsub.f32 %v3422, %v3425
  %v3427 = vmul.f32 %v3426, 1.442695
  %v3428 = vpow.pop %v3427
  %v3429 = vsel %vm311, %v3428, 0.0
  %3430 = vadd.xlane.f32.xlu0 %v3429
  %v3431 = vpop.xlane.xlu0 %3430
  %v3432 = vrcp.pop %v3431
  %v3433 = vmul.f32 %v3428, %v3432
  %v3435 = vsel %vm311, %v3433, 0
  %3437 = vmatprep.subr.mxu0 0.0
  %3438 = vmatpush1.msra.mxu0 %v3341
  %3439 = vmatprep.subr.mxu0 0.0
  %3440 = vmatpush1.msra.mxu0 0.0
  %3441 = vmatprep.subr.mxu0 0.0
  %3442 = vmatpush1.msra.mxu0 0.0
  %3443 = vmatprep.subr.mxu0 0.0
  %3444 = vmatpush1.msra.mxu0 0.0
  %3445 = vmatprep.subr.mxu0 0.0
  %3446 = vmatpush1.msra.mxu0 0.0
  %3447 = vmatprep.subr.mxu0 0.0
  %3448 = vmatpush1.msra.mxu0 0.0
  %3449 = vmatprep.subr.mxu0 0.0
  %3450 = vmatpush1.msra.mxu0 0.0
  %3451 = vmatprep.subr.mxu0 0.0
  %3452 = vmatpush1.msra.mxu0 0.0
  %3453 = vmatprep.subr.mxu0 0.0
  %3454 = vmatpush1.msra.mxu0 0.0
  %3455 = vmatprep.subr.mxu0 0.0
  %3456 = vmatpush1.msra.mxu0 0.0
  %3457 = vmatprep.subr.mxu0 0.0
  %3458 = vmatpush1.msra.mxu0 0.0
  %3459 = vmatprep.subr.mxu0 0.0
  %3460 = vmatpush1.msra.mxu0 0.0
  %3461 = vmatprep.subr.mxu0 0.0
  %3462 = vmatpush1.msra.mxu0 0.0
  %3463 = vmatprep.subr.mxu0 0.0
  %3464 = vmatpush1.msra.mxu0 0.0
  %3465 = vmatprep.subr.mxu0 0.0
  %3466 = vmatpush1.msra.mxu0 0.0
  %3467 = vmatprep.subr.mxu0 0.0
  %3468 = vmatpush1.msra.mxu0 0.0
  %3469 = vmatprep.subr.mxu0 0.0
  %3470 = vmatpush1.msra.mxu0 0.0
  %3471 = vmatprep.subr.mxu0 0.0
  %3472 = vmatpush1.msra.mxu0 0.0
  %3473 = vmatprep.subr.mxu0 0.0
  %3474 = vmatpush1.msra.mxu0 0.0
  %3475 = vmatprep.subr.mxu0 0.0
  %3476 = vmatpush1.msra.mxu0 0.0
  %3477 = vmatprep.subr.mxu0 0.0
  %3478 = vmatpush1.msra.mxu0 0.0
  %3479 = vmatprep.subr.mxu0 0.0
  %3480 = vmatpush1.msra.mxu0 0.0
  %3481 = vmatprep.subr.mxu0 0.0
  %3482 = vmatpush1.msra.mxu0 0.0
  %3483 = vmatprep.subr.mxu0 0.0
  %3484 = vmatpush1.msra.mxu0 0.0
  %3485 = vmatprep.subr.mxu0 0.0
  %3486 = vmatpush1.msra.mxu0 0.0
  %3487 = vmatprep.subr.mxu0 0.0
  %3488 = vmatpush1.msra.mxu0 0.0
  %3489 = vmatprep.subr.mxu0 0.0
  %3490 = vmatpush1.msra.mxu0 0.0
  %3491 = vmatprep.subr.mxu0 0.0
  %3492 = vmatpush1.msra.mxu0 0.0
  %3493 = vmatprep.subr.mxu0 0.0
  %3494 = vmatpush1.msra.mxu0 0.0
  %3495 = vmatprep.subr.mxu0 0.0
  %3496 = vmatpush1.msra.mxu0 0.0
  %3497 = vmatprep.subr.mxu0 0.0
  %3498 = vmatpush1.msra.mxu0 0.0
  %3499 = vmatprep.subr.mxu0 0.0
  %3500 = vmatpush1.msra.mxu0 0.0
  %3501 = vmatprep.mubr.f32.mxu0 0.0
  %3502 = vmatmul.mubr.f32.gmra.mrb[0].mxu0 %v3435
  %v3503 = vpop.f32.mrb[0].mxu0
  %v3504 = vadd.f32 0.0, %v3503
  %v3505 = vpop.f32.mrb[0].mxu0
  %3506 = vdwg.mxu0
  %3507 = vrot.lane.b32.xlu0 %v3339, 112
  %v3508 = vpop.permute.xlu0 %3507
  %3509 = vrot.lane.b32.xlu0 %v3339, 48
  %v3510 = vpop.permute.xlu0 %3509
  %v3511 = vsel %vm235, %v3508, 0
  %v3513 = vsel %vm235, %v3510, 0
  %3515 = vmatprep.subr.mxu0 0.0
  %3516 = vmatpush1.xpose.msra.mxu0 %v3513
  %3517 = vmatprep.subr.mxu0 0.0
  %3518 = vmatpush1.xpose.msra.mxu0 0.0
  %3519 = vmatprep.subr.mxu0 0.0
  %3520 = vmatpush1.xpose.msra.mxu0 0.0
  %3521 = vmatprep.subr.mxu0 0.0
  %3522 = vmatpush1.xpose.msra.mxu0 0.0
  %3523 = vmatprep.subr.mxu0 0.0
  %3524 = vmatpush1.xpose.msra.mxu0 0.0
  %3525 = vmatprep.subr.mxu0 0.0
  %3526 = vmatpush1.xpose.msra.mxu0 0.0
  %3527 = vmatprep.subr.mxu0 0.0
  %3528 = vmatpush1.xpose.msra.mxu0 0.0
  %3529 = vmatprep.subr.mxu0 0.0
  %3530 = vmatpush1.xpose.msra.mxu0 0.0
  %3531 = vmatprep.subr.mxu0 0.0
  %3532 = vmatpush1.xpose.msra.mxu0 0.0
  %3533 = vmatprep.subr.mxu0 0.0
  %3534 = vmatpush1.xpose.msra.mxu0 0.0
  %3535 = vmatprep.subr.mxu0 0.0
  %3536 = vmatpush1.xpose.msra.mxu0 0.0
  %3537 = vmatprep.subr.mxu0 0.0
  %3538 = vmatpush1.xpose.msra.mxu0 0.0
  %3539 = vmatprep.subr.mxu0 0.0
  %3540 = vmatpush1.xpose.msra.mxu0 0.0
  %3541 = vmatprep.subr.mxu0 0.0
  %3542 = vmatpush1.xpose.msra.mxu0 0.0
  %3543 = vmatprep.subr.mxu0 0.0
  %3544 = vmatpush1.xpose.msra.mxu0 0.0
  %3545 = vmatprep.subr.mxu0 0.0
  %3546 = vmatpush1.xpose.msra.mxu0 0.0
  %3547 = vmatprep.subr.mxu0 0.0
  %3548 = vmatpush1.xpose.msra.mxu0 0.0
  %3549 = vmatprep.subr.mxu0 0.0
  %3550 = vmatpush1.xpose.msra.mxu0 0.0
  %3551 = vmatprep.subr.mxu0 0.0
  %3552 = vmatpush1.xpose.msra.mxu0 0.0
  %3553 = vmatprep.subr.mxu0 0.0
  %3554 = vmatpush1.xpose.msra.mxu0 0.0
  %3555 = vmatprep.subr.mxu0 0.0
  %3556 = vmatpush1.xpose.msra.mxu0 0.0
  %3557 = vmatprep.subr.mxu0 0.0
  %3558 = vmatpush1.xpose.msra.mxu0 0.0
  %3559 = vmatprep.subr.mxu0 0.0
  %3560 = vmatpush1.xpose.msra.mxu0 0.0
  %3561 = vmatprep.subr.mxu0 0.0
  %3562 = vmatpush1.xpose.msra.mxu0 0.0
  %3563 = vmatprep.subr.mxu0 0.0
  %3564 = vmatpush1.xpose.msra.mxu0 0.0
  %3565 = vmatprep.subr.mxu0 0.0
  %3566 = vmatpush1.xpose.msra.mxu0 0.0
  %3567 = vmatprep.subr.mxu0 0.0
  %3568 = vmatpush1.xpose.msra.mxu0 0.0
  %3569 = vmatprep.subr.mxu0 0.0
  %3570 = vmatpush1.xpose.msra.mxu0 0.0
  %3571 = vmatprep.subr.mxu0 0.0
  %3572 = vmatpush1.xpose.msra.mxu0 0.0
  %3573 = vmatprep.subr.mxu0 0.0
  %3574 = vmatpush1.xpose.msra.mxu0 0.0
  %3575 = vmatprep.subr.mxu0 0.0
  %3576 = vmatpush1.xpose.msra.mxu0 0.0
  %3577 = vmatprep.subr.mxu0 0.0
  %3578 = vmatpush1.xpose.msra.mxu0 0.0
  %3579 = vmatprep.mubr.f32.mxu0 0.0
  %3580 = vmatmul.mubr.f32.gmra.mrb[0].mxu0 %v3511
  %v3581 = vpop.f32.mrb[0].mxu0
  %v3582 = vadd.f32 0.0, %v3581
  %v3583 = vpop.f32.mrb[0].mxu0
  %3584 = vdwg.mxu0
  %v3585 = vmul.f32 %v3582, 0.25
  %v3586 = vsel %vm311, %v3585, -inf
  %3587 = vmax.xlane.f32.xlu0 %v3586
  %v3588 = vpop.xlane.xlu0 %3587
  %v3589 = vsub.f32 %v3585, %v3588
  %v3590 = vmul.f32 %v3589, 1.442695
  %v3591 = vpow.pop %v3590
  %v3592 = vsel %vm311, %v3591, 0.0
  %3593 = vadd.xlane.f32.xlu0 %v3592
  %v3594 = vpop.xlane.xlu0 %3593
  %v3595 = vrcp.pop %v3594
  %v3596 = vmul.f32 %v3591, %v3595
  %3598 = vrot.lane.b32.xlu0 %v3341, 112
  %v3599 = vpop.permute.xlu0 %3598
  %v3602 = vsel %vm311, %v3596, 0
  %3604 = vmatprep.subr.mxu0 0.0
  %3605 = vmatpush1.msra.mxu0 %v3599
  %3606 = vmatprep.subr.mxu0 0.0
  %3607 = vmatpush1.msra.mxu0 0.0
  %3608 = vmatprep.subr.mxu0 0.0
  %3609 = vmatpush1.msra.mxu0 0.0
  %3610 = vmatprep.subr.mxu0 0.0
  %3611 = vmatpush1.msra.mxu0 0.0
  %3612 = vmatprep.subr.mxu0 0.0
  %3613 = vmatpush1.msra.mxu0 0.0
  %3614 = vmatprep.subr.mxu0 0.0
  %3615 = vmatpush1.msra.mxu0 0.0
  %3616 = vmatprep.subr.mxu0 0.0
  %3617 = vmatpush1.msra.mxu0 0.0
  %3618 = vmatprep.subr.mxu0 0.0
  %3619 = vmatpush1.msra.mxu0 0.0
  %3620 = vmatprep.subr.mxu0 0.0
  %3621 = vmatpush1.msra.mxu0 0.0
  %3622 = vmatprep.subr.mxu0 0.0
  %3623 = vmatpush1.msra.mxu0 0.0
  %3624 = vmatprep.subr.mxu0 0.0
  %3625 = vmatpush1.msra.mxu0 0.0
  %3626 = vmatprep.subr.mxu0 0.0
  %3627 = vmatpush1.msra.mxu0 0.0
  %3628 = vmatprep.subr.mxu0 0.0
  %3629 = vmatpush1.msra.mxu0 0.0
  %3630 = vmatprep.subr.mxu0 0.0
  %3631 = vmatpush1.msra.mxu0 0.0
  %3632 = vmatprep.subr.mxu0 0.0
  %3633 = vmatpush1.msra.mxu0 0.0
  %3634 = vmatprep.subr.mxu0 0.0
  %3635 = vmatpush1.msra.mxu0 0.0
  %3636 = vmatprep.subr.mxu0 0.0
  %3637 = vmatpush1.msra.mxu0 0.0
  %3638 = vmatprep.subr.mxu0 0.0
  %3639 = vmatpush1.msra.mxu0 0.0
  %3640 = vmatprep.subr.mxu0 0.0
  %3641 = vmatpush1.msra.mxu0 0.0
  %3642 = vmatprep.subr.mxu0 0.0
  %3643 = vmatpush1.msra.mxu0 0.0
  %3644 = vmatprep.subr.mxu0 0.0
  %3645 = vmatpush1.msra.mxu0 0.0
  %3646 = vmatprep.subr.mxu0 0.0
  %3647 = vmatpush1.msra.mxu0 0.0
  %3648 = vmatprep.subr.mxu0 0.0
  %3649 = vmatpush1.msra.mxu0 0.0
  %3650 = vmatprep.subr.mxu0 0.0
  %3651 = vmatpush1.msra.mxu0 0.0
  %3652 = vmatprep.subr.mxu0 0.0
  %3653 = vmatpush1.msra.mxu0 0.0
  %3654 = vmatprep.subr.mxu0 0.0
  %3655 = vmatpush1.msra.mxu0 0.0
  %3656 = vmatprep.subr.mxu0 0.0
  %3657 = vmatpush1.msra.mxu0 0.0
  %3658 = vmatprep.subr.mxu0 0.0
  %3659 = vmatpush1.msra.mxu0 0.0
  %3660 = vmatprep.subr.mxu0 0.0
  %3661 = vmatpush1.msra.mxu0 0.0
  %3662 = vmatprep.subr.mxu0 0.0
  %3663 = vmatpush1.msra.mxu0 0.0
  %3664 = vmatprep.subr.mxu0 0.0
  %3665 = vmatpush1.msra.mxu0 0.0
  %3666 = vmatprep.subr.mxu0 0.0
  %3667 = vmatpush1.msra.mxu0 0.0
  %3668 = vmatprep.mubr.f32.mxu0 0.0
  %3669 = vmatmul.mubr.f32.gmra.mrb[0].mxu0 %v3602
  %v3670 = vpop.f32.mrb[0].mxu0
  %v3671 = vadd.f32 0.0, %v3670
  %v3672 = vpop.f32.mrb[0].mxu0
  %3673 = vdwg.mxu0
  %3674 = vrot.lane.b32.xlu0 %v3339, 96
  %v3675 = vpop.permute.xlu0 %3674
  %3676 = vrot.lane.b32.xlu0 %v3339, 32
  %v3677 = vpop.permute.xlu0 %3676
  %v3678 = vsel %vm235, %v3675, 0
  %v3680 = vsel %vm235, %v3677, 0
  %3682 = vmatprep.subr.mxu0 0.0
  %3683 = vmatpush1.xpose.msra.mxu0 %v3680
  %3684 = vmatprep.subr.mxu0 0.0
  %3685 = vmatpush1.xpose.msra.mxu0 0.0
  %3686 = vmatprep.subr.mxu0 0.0
  %3687 = vmatpush1.xpose.msra.mxu0 0.0
  %3688 = vmatprep.subr.mxu0 0.0
  %3689 = vmatpush1.xpose.msra.mxu0 0.0
  %3690 = vmatprep.subr.mxu0 0.0
  %3691 = vmatpush1.xpose.msra.mxu0 0.0
  %3692 = vmatprep.subr.mxu0 0.0
  %3693 = vmatpush1.xpose.msra.mxu0 0.0
  %3694 = vmatprep.subr.mxu0 0.0
  %3695 = vmatpush1.xpose.msra.mxu0 0.0
  %3696 = vmatprep.subr.mxu0 0.0
  %3697 = vmatpush1.xpose.msra.mxu0 0.0
  %3698 = vmatprep.subr.mxu0 0.0
  %3699 = vmatpush1.xpose.msra.mxu0 0.0
  %3700 = vmatprep.subr.mxu0 0.0
  %3701 = vmatpush1.xpose.msra.mxu0 0.0
  %3702 = vmatprep.subr.mxu0 0.0
  %3703 = vmatpush1.xpose.msra.mxu0 0.0
  %3704 = vmatprep.subr.mxu0 0.0
  %3705 = vmatpush1.xpose.msra.mxu0 0.0
  %3706 = vmatprep.subr.mxu0 0.0
  %3707 = vmatpush1.xpose.msra.mxu0 0.0
  %3708 = vmatprep.subr.mxu0 0.0
  %3709 = vmatpush1.xpose.msra.mxu0 0.0
  %3710 = vmatprep.subr.mxu0 0.0
  %3711 = vmatpush1.xpose.msra.mxu0 0.0
  %3712 = vmatprep.subr.mxu0 0.0
  %3713 = vmatpush1.xpose.msra.mxu0 0.0
  %3714 = vmatprep.subr.mxu0 0.0
  %3715 = vmatpush1.xpose.msra.mxu0 0.0
  %3716 = vmatprep.subr.mxu0 0.0
  %3717 = vmatpush1.xpose.msra.mxu0 0.0
  %3718 = vmatprep.subr.mxu0 0.0
  %3719 = vmatpush1.xpose.msra.mxu0 0.0
  %3720 = vmatprep.subr.mxu0 0.0
  %3721 = vmatpush1.xpose.msra.mxu0 0.0
  %3722 = vmatprep.subr.mxu0 0.0
  %3723 = vmatpush1.xpose.msra.mxu0 0.0
  %3724 = vmatprep.subr.mxu0 0.0
  %3725 = vmatpush1.xpose.msra.mxu0 0.0
  %3726 = vmatprep.subr.mxu0 0.0
  %3727 = vmatpush1.xpose.msra.mxu0 0.0
  %3728 = vmatprep.subr.mxu0 0.0
  %3729 = vmatpush1.xpose.msra.mxu0 0.0
  %3730 = vmatprep.subr.mxu0 0.0
  %3731 = vmatpush1.xpose.msra.mxu0 0.0
  %3732 = vmatprep.subr.mxu0 0.0
  %3733 = vmatpush1.xpose.msra.mxu0 0.0
  %3734 = vmatprep.subr.mxu0 0.0
  %3735 = vmatpush1.xpose.msra.mxu0 0.0
  %3736 = vmatprep.subr.mxu0 0.0
  %3737 = vmatpush1.xpose.msra.mxu0 0.0
  %3738 = vmatprep.subr.mxu0 0.0
  %3739 = vmatpush1.xpose.msra.mxu0 0.0
  %3740 = vmatprep.subr.mxu0 0.0
  %3741 = vmatpush1.xpose.msra.mxu0 0.0
  %3742 = vmatprep.subr.mxu0 0.0
  %3743 = vmatpush1.xpose.msra.mxu0 0.0
  %3744 = vmatprep.subr.mxu0 0.0
  %3745 = vmatpush1.xpose.msra.mxu0 0.0
  %3746 = vmatprep.mubr.f32.mxu0 0.0
  %3747 = vmatmul.mubr.f32.gmra.mrb[0].mxu0 %v3678
  %v3748 = vpop.f32.mrb[0].mxu0
  %v3749 = vadd.f32 0.0, %v3748
  %v3750 = vpop.f32.mrb[0].mxu0
  %3751 = vdwg.mxu0
  %v3752 = vmul.f32 %v3749, 0.25
  %v3753 = vsel %vm311, %v3752, -inf
  %3754 = vmax.xlane.f32.xlu0 %v3753
  %v3755 = vpop.xlane.xlu0 %3754
  %v3756 = vsub.f32 %v3752, %v3755
  %v3757 = vmul.f32 %v3756, 1.442695
  %v3758 = vpow.pop %v3757
  %v3759 = vsel %vm311, %v3758, 0.0
  %3760 = vadd.xlane.f32.xlu0 %v3759
  %v3761 = vpop.xlane.xlu0 %3760
  %v3762 = vrcp.pop %v3761
  %v3763 = vmul.f32 %v3758, %v3762
  %3764 = vrot.lane.b32.xlu0 %v3341, 96
  %v3765 = vpop.permute.xlu0 %3764
  %v3768 = vsel %vm311, %v3763, 0
  %3770 = vmatprep.subr.mxu0 0.0
  %3771 = vmatpush1.msra.mxu0 %v3765
  %3772 = vmatprep.subr.mxu0 0.0
  %3773 = vmatpush1.msra.mxu0 0.0
  %3774 = vmatprep.subr.mxu0 0.0
  %3775 = vmatpush1.msra.mxu0 0.0
  %3776 = vmatprep.subr.mxu0 0.0
  %3777 = vmatpush1.msra.mxu0 0.0
  %3778 = vmatprep.subr.mxu0 0.0
  %3779 = vmatpush1.msra.mxu0 0.0
  %3780 = vmatprep.subr.mxu0 0.0
  %3781 = vmatpush1.msra.mxu0 0.0
  %3782 = vmatprep.subr.mxu0 0.0
  %3783 = vmatpush1.msra.mxu0 0.0
  %3784 = vmatprep.subr.mxu0 0.0
  %3785 = vmatpush1.msra.mxu0 0.0
  %3786 = vmatprep.subr.mxu0 0.0
  %3787 = vmatpush1.msra.mxu0 0.0
  %3788 = vmatprep.subr.mxu0 0.0
  %3789 = vmatpush1.msra.mxu0 0.0
  %3790 = vmatprep.subr.mxu0 0.0
  %3791 = vmatpush1.msra.mxu0 0.0
  %3792 = vmatprep.subr.mxu0 0.0
  %3793 = vmatpush1.msra.mxu0 0.0
  %3794 = vmatprep.subr.mxu0 0.0
  %3795 = vmatpush1.msra.mxu0 0.0
  %3796 = vmatprep.subr.mxu0 0.0
  %3797 = vmatpush1.msra.mxu0 0.0
  %3798 = vmatprep.subr.mxu0 0.0
  %3799 = vmatpush1.msra.mxu0 0.0
  %3800 = vmatprep.subr.mxu0 0.0
  %3801 = vmatpush1.msra.mxu0 0.0
  %3802 = vmatprep.subr.mxu0 0.0
  %3803 = vmatpush1.msra.mxu0 0.0
  %3804 = vmatprep.subr.mxu0 0.0
  %3805 = vmatpush1.msra.mxu0 0.0
  %3806 = vmatprep.subr.mxu0 0.0
  %3807 = vmatpush1.msra.mxu0 0.0
  %3808 = vmatprep.subr.mxu0 0.0
  %3809 = vmatpush1.msra.mxu0 0.0
  %3810 = vmatprep.subr.mxu0 0.0
  %3811 = vmatpush1.msra.mxu0 0.0
  %3812 = vmatprep.subr.mxu0 0.0
  %3813 = vmatpush1.msra.mxu0 0.0
  %3814 = vmatprep.subr.mxu0 0.0
  %3815 = vmatpush1.msra.mxu0 0.0
  %3816 = vmatprep.subr.mxu0 0.0
  %3817 = vmatpush1.msra.mxu0 0.0
  %3818 = vmatprep.subr.mxu0 0.0
  %3819 = vmatpush1.msra.mxu0 0.0
  %3820 = vmatprep.subr.mxu0 0.0
  %3821 = vmatpush1.msra.mxu0 0.0
  %3822 = vmatprep.subr.mxu0 0.0
  %3823 = vmatpush1.msra.mxu0 0.0
  %3824 = vmatprep.subr.mxu0 0.0
  %3825 = vmatpush1.msra.mxu0 0.0
  %3826 = vmatprep.subr.mxu0 0.0
  %3827 = vmatpush1.msra.mxu0 0.0
  %3828 = vmatprep.subr.mxu0 0.0
  %3829 = vmatpush1.msra.mxu0 0.0
  %3830 = vmatprep.subr.mxu0 0.0
  %3831 = vmatpush1.msra.mxu0 0.0
  %3832 = vmatprep.subr.mxu0 0.0
  %3833 = vmatpush1.msra.mxu0 0.0
  %3834 = vmatprep.mubr.f32.mxu0 0.0
  %3835 = vmatmul.mubr.f32.gmra.mrb[0].mxu0 %v3768
  %v3836 = vpop.f32.mrb[0].mxu0
  %v3837 = vadd.f32 0.0, %v3836
  %v3838 = vpop.f32.mrb[0].mxu0
  %3839 = vdwg.mxu0
  %3840 = vrot.lane.b32.xlu0 %v3339, 80
  %v3841 = vpop.permute.xlu0 %3840
  %3842 = vrot.lane.b32.xlu0 %v3339, 16
  %v3843 = vpop.permute.xlu0 %3842
  %v3844 = vsel %vm235, %v3841, 0
  %v3846 = vsel %vm235, %v3843, 0
  %3848 = vmatprep.subr.mxu0 0.0
  %3849 = vmatpush1.xpose.msra.mxu0 %v3846
  %3850 = vmatprep.subr.mxu0 0.0
  %3851 = vmatpush1.xpose.msra.mxu0 0.0
  %3852 = vmatprep.subr.mxu0 0.0
  %3853 = vmatpush1.xpose.msra.mxu0 0.0
  %3854 = vmatprep.subr.mxu0 0.0
  %3855 = vmatpush1.xpose.msra.mxu0 0.0
  %3856 = vmatprep.subr.mxu0 0.0
  %3857 = vmatpush1.xpose.msra.mxu0 0.0
  %3858 = vmatprep.subr.mxu0 0.0
  %3859 = vmatpush1.xpose.msra.mxu0 0.0
  %3860 = vmatprep.subr.mxu0 0.0
  %3861 = vmatpush1.xpose.msra.mxu0 0.0
  %3862 = vmatprep.subr.mxu0 0.0
  %3863 = vmatpush1.xpose.msra.mxu0 0.0
  %3864 = vmatprep.subr.mxu0 0.0
  %3865 = vmatpush1.xpose.msra.mxu0 0.0
  %3866 = vmatprep.subr.mxu0 0.0
  %3867 = vmatpush1.xpose.msra.mxu0 0.0
  %3868 = vmatprep.subr.mxu0 0.0
  %3869 = vmatpush1.xpose.msra.mxu0 0.0
  %3870 = vmatprep.subr.mxu0 0.0
  %3871 = vmatpush1.xpose.msra.mxu0 0.0
  %3872 = vmatprep.subr.mxu0 0.0
  %3873 = vmatpush1.xpose.msra.mxu0 0.0
  %3874 = vmatprep.subr.mxu0 0.0
  %3875 = vmatpush1.xpose.msra.mxu0 0.0
  %3876 = vmatprep.subr.mxu0 0.0
  %3877 = vmatpush1.xpose.msra.mxu0 0.0
  %3878 = vmatprep.subr.mxu0 0.0
  %3879 = vmatpush1.xpose.msra.mxu0 0.0
  %3880 = vmatprep.subr.mxu0 0.0
  %3881 = vmatpush1.xpose.msra.mxu0 0.0
  %3882 = vmatprep.subr.mxu0 0.0
  %3883 = vmatpush1.xpose.msra.mxu0 0.0
  %3884 = vmatprep.subr.mxu0 0.0
  %3885 = vmatpush1.xpose.msra.mxu0 0.0
  %3886 = vmatprep.subr.mxu0 0.0
  %3887 = vmatpush1.xpose.msra.mxu0 0.0
  %3888 = vmatprep.subr.mxu0 0.0
  %3889 = vmatpush1.xpose.msra.mxu0 0.0
  %3890 = vmatprep.subr.mxu0 0.0
  %3891 = vmatpush1.xpose.msra.mxu0 0.0
  %3892 = vmatprep.subr.mxu0 0.0
  %3893 = vmatpush1.xpose.msra.mxu0 0.0
  %3894 = vmatprep.subr.mxu0 0.0
  %3895 = vmatpush1.xpose.msra.mxu0 0.0
  %3896 = vmatprep.subr.mxu0 0.0
  %3897 = vmatpush1.xpose.msra.mxu0 0.0
  %3898 = vmatprep.subr.mxu0 0.0
  %3899 = vmatpush1.xpose.msra.mxu0 0.0
  %3900 = vmatprep.subr.mxu0 0.0
  %3901 = vmatpush1.xpose.msra.mxu0 0.0
  %3902 = vmatprep.subr.mxu0 0.0
  %3903 = vmatpush1.xpose.msra.mxu0 0.0
  %3904 = vmatprep.subr.mxu0 0.0
  %3905 = vmatpush1.xpose.msra.mxu0 0.0
  %3906 = vmatprep.subr.mxu0 0.0
  %3907 = vmatpush1.xpose.msra.mxu0 0.0
  %3908 = vmatprep.subr.mxu0 0.0
  %3909 = vmatpush1.xpose.msra.mxu0 0.0
  %3910 = vmatprep.subr.mxu0 0.0
  %3911 = vmatpush1.xpose.msra.mxu0 0.0
  %3912 = vmatprep.mubr.f32.mxu0 0.0
  %3913 = vmatmul.mubr.f32.gmra.mrb[0].mxu0 %v3844
  %v3914 = vpop.f32.mrb[0].mxu0
  %v3915 = vadd.f32 0.0, %v3914
  %v3916 = vpop.f32.mrb[0].mxu0
  %3917 = vdwg.mxu0
  %v3918 = vmul.f32 %v3915, 0.25
  %v3919 = vsel %vm311, %v3918, -inf
  %3920 = vmax.xlane.f32.xlu0 %v3919
  %v3921 = vpop.xlane.xlu0 %3920
  %v3922 = vsub.f32 %v3918, %v3921
  %v3923 = vmul.f32 %v3922, 1.442695
  %v3924 = vpow.pop %v3923
  %v3925 = vsel %vm311, %v3924, 0.0
  %3926 = vadd.xlane.f32.xlu0 %v3925
  %v3927 = vpop.xlane.xlu0 %3926
  %v3928 = vrcp.pop %v3927
  %v3929 = vmul.f32 %v3924, %v3928
  %3930 = vrot.lane.b32.xlu0 %v3341, 80
  %v3931 = vpop.permute.xlu0 %3930
  %v3934 = vsel %vm311, %v3929, 0
  %3936 = vmatprep.subr.mxu0 0.0
  %3937 = vmatpush1.msra.mxu0 %v3931
  %3938 = vmatprep.subr.mxu0 0.0
  %3939 = vmatpush1.msra.mxu0 0.0
  %3940 = vmatprep.subr.mxu0 0.0
  %3941 = vmatpush1.msra.mxu0 0.0
  %3942 = vmatprep.subr.mxu0 0.0
  %3943 = vmatpush1.msra.mxu0 0.0
  %3944 = vmatprep.subr.mxu0 0.0
  %3945 = vmatpush1.msra.mxu0 0.0
  %3946 = vmatprep.subr.mxu0 0.0
  %3947 = vmatpush1.msra.mxu0 0.0
  %3948 = vmatprep.subr.mxu0 0.0
  %3949 = vmatpush1.msra.mxu0 0.0
  %3950 = vmatprep.subr.mxu0 0.0
  %3951 = vmatpush1.msra.mxu0 0.0
  %3952 = vmatprep.subr.mxu0 0.0
  %3953 = vmatpush1.msra.mxu0 0.0
  %3954 = vmatprep.subr.mxu0 0.0
  %3955 = vmatpush1.msra.mxu0 0.0
  %3956 = vmatprep.subr.mxu0 0.0
  %3957 = vmatpush1.msra.mxu0 0.0
  %3958 = vmatprep.subr.mxu0 0.0
  %3959 = vmatpush1.msra.mxu0 0.0
  %3960 = vmatprep.subr.mxu0 0.0
  %3961 = vmatpush1.msra.mxu0 0.0
  %3962 = vmatprep.subr.mxu0 0.0
  %3963 = vmatpush1.msra.mxu0 0.0
  %3964 = vmatprep.subr.mxu0 0.0
  %3965 = vmatpush1.msra.mxu0 0.0
  %3966 = vmatprep.subr.mxu0 0.0
  %3967 = vmatpush1.msra.mxu0 0.0
  %3968 = vmatprep.subr.mxu0 0.0
  %3969 = vmatpush1.msra.mxu0 0.0
  %3970 = vmatprep.subr.mxu0 0.0
  %3971 = vmatpush1.msra.mxu0 0.0
  %3972 = vmatprep.subr.mxu0 0.0
  %3973 = vmatpush1.msra.mxu0 0.0
  %3974 = vmatprep.subr.mxu0 0.0
  %3975 = vmatpush1.msra.mxu0 0.0
  %3976 = vmatprep.subr.mxu0 0.0
  %3977 = vmatpush1.msra.mxu0 0.0
  %3978 = vmatprep.subr.mxu0 0.0
  %3979 = vmatpush1.msra.mxu0 0.0
  %3980 = vmatprep.subr.mxu0 0.0
  %3981 = vmatpush1.msra.mxu0 0.0
  %3982 = vmatprep.subr.mxu0 0.0
  %3983 = vmatpush1.msra.mxu0 0.0
  %3984 = vmatprep.subr.mxu0 0.0
  %3985 = vmatpush1.msra.mxu0 0.0
  %3986 = vmatprep.subr.mxu0 0.0
  %3987 = vmatpush1.msra.mxu0 0.0
  %3988 = vmatprep.subr.mxu0 0.0
  %3989 = vmatpush1.msra.mxu0 0.0
  %3990 = vmatprep.subr.mxu0 0.0
  %3991 = vmatpush1.msra.mxu0 0.0
  %3992 = vmatprep.subr.mxu0 0.0
  %3993 = vmatpush1.msra.mxu0 0.0
  %3994 = vmatprep.subr.mxu0 0.0
  %3995 = vmatpush1.msra.mxu0 0.0
  %3996 = vmatprep.subr.mxu0 0.0
  %3997 = vmatpush1.msra.mxu0 0.0
  %3998 = vmatprep.subr.mxu0 0.0
  %3999 = vmatpush1.msra.mxu0 0.0
  %4000 = vmatprep.mubr.f32.mxu0 0.0
  %4001 = vmatmul.mubr.f32.gmra.mrb[0].mxu0 %v3934
  %v4002 = vpop.f32.mrb[0].mxu0
  %v4003 = vadd.f32 0.0, %v4002
  %v4004 = vpop.f32.mrb[0].mxu0
  %4005 = vdwg.mxu0
  %4007 = vrot.lane.b32.xlu0 %v3671, 16
  %v4008 = vpop.permute.xlu0 %4007
  %4011 = vrot.lane.b32.xlu0 %v3837, 32
  %v4012 = vpop.permute.xlu0 %4011
  %4015 = vrot.lane.b32.xlu0 %v4003, 48
  %v4016 = vpop.permute.xlu0 %4015
  %v4018 = vsel %vm235, %v3504, %v4008
  %v4019 = vsel %vm82, %v4018, %v4012
  %v4020 = vsel %vm909, %v4019, %v4016
  %v4021 = vpack.c.bf16 %v4020, %v4020
  %s4022 = scalar_lea.vmem %s5, 32
  %v4023 = vld [vmem:[%s4022] sm:$0xf]
  %v4024 = vld [vmem:[%s4022 + $0x4] sm:$0xf]
  %v4025 = vld [vmem:[%s4022 + $0x8] sm:$0xf]
  %v4026 = vld [vmem:[%s4022 + $0xc] sm:$0xf]
  %v4027 = vld [vmem:[%s4022 + $0x10] sm:$0xf]
  %v4028 = vld [vmem:[%s4022 + $0x14] sm:$0xf]
  %v4029 = vld [vmem:[%s4022 + $0x18] sm:$0xf]
  %v4030 = vld [vmem:[%s4022 + $0x1c] sm:$0xf]
  %s4031 = scalar_lea.vmem %s6, 1
  %v4032 = vld [vmem:[%s4031] sm:$0x1]
  %v4034 = vlaneseq
  %v4035 = vshrl.u32 %v4034, 7
  %v4036 = vsub.s32 0, %v4035
  %v4037 = vrot.slane %v4032, %v4036
  %v4047 = vunpack.c.l.b16 %v4023
  %v4048 = vunpack.c.l.b16 %v4024
  %v4049 = vunpack.c.l.b16 %v4025
  %v4050 = vunpack.c.l.b16 %v4026
  %v4051 = vunpack.c.l.b16 %v4027
  %v4052 = vunpack.c.l.b16 %v4028
  %v4053 = vunpack.c.l.b16 %v4029
  %v4054 = vunpack.c.l.b16 %v4030
  %v4055 = vpack.c.b16 %v4048, %v4047
  %v4056 = vpack.c.b16 %v4050, %v4049
  %v4057 = vpack.c.b16 %v4052, %v4051
  %v4058 = vpack.c.b16 %v4054, %v4053
  %v4064 = vsel %vm187, %v4021, 0
  %4066 = vmatprep.subr.bf16.mxu0 0
  %4067 = vmatpush1.bf16.msra.mxu0 %v4055
  %4068 = vmatprep.subr.bf16.mxu0 0
  %4069 = vmatpush1.bf16.msra.mxu0 %v4056
  %4070 = vmatprep.subr.bf16.mxu0 0
  %4071 = vmatpush1.bf16.msra.mxu0 %v4057
  %4072 = vmatprep.subr.bf16.mxu0 0
  %4073 = vmatpush1.bf16.msra.mxu0 %v4058
  %4074 = vmatprep.subr.bf16.mxu0 0
  %4075 = vmatpush1.bf16.msra.mxu0 0
  %4076 = vmatprep.subr.bf16.mxu0 0
  %4077 = vmatpush1.bf16.msra.mxu0 0
  %4078 = vmatprep.subr.bf16.mxu0 0
  %4079 = vmatpush1.bf16.msra.mxu0 0
  %4080 = vmatprep.subr.bf16.mxu0 0
  %4081 = vmatpush1.bf16.msra.mxu0 0
  %4082 = vmatprep.subr.bf16.mxu0 0
  %4083 = vmatpush1.bf16.msra.mxu0 0
  %4084 = vmatprep.subr.bf16.mxu0 0
  %4085 = vmatpush1.bf16.msra.mxu0 0
  %4086 = vmatprep.subr.bf16.mxu0 0
  %4087 = vmatpush1.bf16.msra.mxu0 0
  %4088 = vmatprep.subr.bf16.mxu0 0
  %4089 = vmatpush1.bf16.msra.mxu0 0
  %4090 = vmatprep.subr.bf16.mxu0 0
  %4091 = vmatpush1.bf16.msra.mxu0 0
  %4092 = vmatprep.subr.bf16.mxu0 0
  %4093 = vmatpush1.bf16.msra.mxu0 0
  %4094 = vmatprep.subr.bf16.mxu0 0
  %4095 = vmatpush1.bf16.msra.mxu0 0
  %4096 = vmatprep.subr.bf16.mxu0 0
  %4097 = vmatpush1.bf16.msra.mxu0 0
  %4098 = vmatprep.mubr.bf16.mxu0 0
  %4099 = vmatmul.mubr.bf16.gmra.mrb[0].mxu0 %v4064
  %v4100 = vpop.f32.mrb[0].mxu0
  %v4101 = vadd.f32 %v4037, %v4100
  %v4102 = vpop.f32.mrb[0].mxu0
  %v4103 = vpop.f32.mrb[0].mxu0
  %v4104 = vpop.f32.mrb[0].mxu0
  %4105 = vdwg.mxu0
  %v4106 = vadd.f32 %v3237, %v4101
  %s4107 = scalar_lea.vmem %s7, 1
  %v4108 = vld [vmem:[%s4107] sm:$0x1]
  %s4109 = scalar_lea.vmem %s8, 1
  %v4110 = vld [vmem:[%s4109] sm:$0x1]
  %v4111 = vsel %vm187, %v4106, 0.0
  %4112 = vadd.xlane.f32.xlu0 %v4111
  %v4113 = vpop.xlane.xlu0 %4112
  %v4114 = vmul.f32 %v4113, %v1000
  %v4115 = vsub.f32 %v4106, %v4114
  %v4116 = vmul.f32 %v4115, %v4115
  %v4117 = vsel %vm187, %v4116, 0.0
  %4118 = vadd.xlane.f32.xlu0 %v4117
  %v4119 = vpop.xlane.xlu0 %4118
  %v4120 = vmul.f32 %v4119, %v1000
  %v4121 = vadd.f32 %v4120, 1e-05
  %v4122 = vrsqrt.pop %v4121
  %v4123 = vmul.f32 %v4115, %v4122
  %v4125 = vlaneseq
  %v4126 = vshrl.u32 %v4125, 7
  %v4127 = vsub.s32 0, %v4126
  %v4128 = vrot.slane %v4108, %v4127
  %v4130 = vmul.f32 %v4123, %v4128
  %v4132 = vlaneseq
  %v4133 = vshrl.u32 %v4132, 7
  %v4134 = vsub.s32 0, %v4133
  %v4135 = vrot.slane %v4110, %v4134
  %v4137 = vadd.f32 %v4130, %v4135
  %v4138 = vpack.c.bf16 %v4137, %v4137
  %s4139 = scalar_lea.vmem %s11, 512
  %v4140 = vld [vmem:[%s4139] sm:$0xff]
  %v4141 = vld [vmem:[%s4139 + $0x8] sm:$0xff]
  %v4142 = vld [vmem:[%s4139 + $0x10] sm:$0xff]
  %v4143 = vld [vmem:[%s4139 + $0x18] sm:$0xff]
  %v4144 = vld [vmem:[%s4139 + $0x20] sm:$0xff]
  %v4145 = vld [vmem:[%s4139 + $0x28] sm:$0xff]
  %v4146 = vld [vmem:[%s4139 + $0x30] sm:$0xff]
  %v4147 = vld [vmem:[%s4139 + $0x38] sm:$0xff]
  %v4148 = vld [vmem:[%s4139 + $0x40] sm:$0xff]
  %v4149 = vld [vmem:[%s4139 + $0x48] sm:$0xff]
  %v4150 = vld [vmem:[%s4139 + $0x50] sm:$0xff]
  %v4151 = vld [vmem:[%s4139 + $0x58] sm:$0xff]
  %v4152 = vld [vmem:[%s4139 + $0x60] sm:$0xff]
  %v4153 = vld [vmem:[%s4139 + $0x68] sm:$0xff]
  %v4154 = vld [vmem:[%s4139 + $0x70] sm:$0xff]
  %v4155 = vld [vmem:[%s4139 + $0x78] sm:$0xff]
  %v4156 = vld [vmem:[%s4139 + $0x80] sm:$0xff]
  %v4157 = vld [vmem:[%s4139 + $0x88] sm:$0xff]
  %v4158 = vld [vmem:[%s4139 + $0x90] sm:$0xff]
  %v4159 = vld [vmem:[%s4139 + $0x98] sm:$0xff]
  %v4160 = vld [vmem:[%s4139 + $0xa0] sm:$0xff]
  %v4161 = vld [vmem:[%s4139 + $0xa8] sm:$0xff]
  %v4162 = vld [vmem:[%s4139 + $0xb0] sm:$0xff]
  %v4163 = vld [vmem:[%s4139 + $0xb8] sm:$0xff]
  %v4164 = vld [vmem:[%s4139 + $0xc0] sm:$0xff]
  %v4165 = vld [vmem:[%s4139 + $0xc8] sm:$0xff]
  %v4166 = vld [vmem:[%s4139 + $0xd0] sm:$0xff]
  %v4167 = vld [vmem:[%s4139 + $0xd8] sm:$0xff]
  %v4168 = vld [vmem:[%s4139 + $0xe0] sm:$0xff]
  %v4169 = vld [vmem:[%s4139 + $0xe8] sm:$0xff]
  %v4170 = vld [vmem:[%s4139 + $0xf0] sm:$0xff]
  %v4171 = vld [vmem:[%s4139 + $0xf8] sm:$0xff]
  %v4172 = vld [vmem:[%s4139 + $0x100] sm:$0xff]
  %v4173 = vld [vmem:[%s4139 + $0x108] sm:$0xff]
  %v4174 = vld [vmem:[%s4139 + $0x110] sm:$0xff]
  %v4175 = vld [vmem:[%s4139 + $0x118] sm:$0xff]
  %v4176 = vld [vmem:[%s4139 + $0x120] sm:$0xff]
  %v4177 = vld [vmem:[%s4139 + $0x128] sm:$0xff]
  %v4178 = vld [vmem:[%s4139 + $0x130] sm:$0xff]
  %v4179 = vld [vmem:[%s4139 + $0x138] sm:$0xff]
  %v4180 = vld [vmem:[%s4139 + $0x140] sm:$0xff]
  %v4181 = vld [vmem:[%s4139 + $0x148] sm:$0xff]
  %v4182 = vld [vmem:[%s4139 + $0x150] sm:$0xff]
  %v4183 = vld [vmem:[%s4139 + $0x158] sm:$0xff]
  %v4184 = vld [vmem:[%s4139 + $0x160] sm:$0xff]
  %v4185 = vld [vmem:[%s4139 + $0x168] sm:$0xff]
  %v4186 = vld [vmem:[%s4139 + $0x170] sm:$0xff]
  %v4187 = vld [vmem:[%s4139 + $0x178] sm:$0xff]
  %v4188 = vld [vmem:[%s4139 + $0x180] sm:$0xff]
  %v4189 = vld [vmem:[%s4139 + $0x188] sm:$0xff]
  %v4190 = vld [vmem:[%s4139 + $0x190] sm:$0xff]
  %v4191 = vld [vmem:[%s4139 + $0x198] sm:$0xff]
  %v4192 = vld [vmem:[%s4139 + $0x1a0] sm:$0xff]
  %v4193 = vld [vmem:[%s4139 + $0x1a8] sm:$0xff]
  %v4194 = vld [vmem:[%s4139 + $0x1b0] sm:$0xff]
  %v4195 = vld [vmem:[%s4139 + $0x1b8] sm:$0xff]
  %v4196 = vld [vmem:[%s4139 + $0x1c0] sm:$0xff]
  %v4197 = vld [vmem:[%s4139 + $0x1c8] sm:$0xff]
  %v4198 = vld [vmem:[%s4139 + $0x1d0] sm:$0xff]
  %v4199 = vld [vmem:[%s4139 + $0x1d8] sm:$0xff]
  %v4200 = vld [vmem:[%s4139 + $0x1e0] sm:$0xff]
  %v4201 = vld [vmem:[%s4139 + $0x1e8] sm:$0xff]
  %v4202 = vld [vmem:[%s4139 + $0x1f0] sm:$0xff]
  %v4203 = vld [vmem:[%s4139 + $0x1f8] sm:$0xff]
  %s4204 = scalar_lea.vmem %s12, 16
  %v4205 = vld [vmem:[%s4204] sm:$0xff]
  %v4206 = vld [vmem:[%s4204 + $0x8] sm:$0xff]
  %v4209 = vlaneseq
  %v4210 = vshrl.u32 %v4209, 7
  %v4211 = vsub.s32 0, %v4210
  %v4212 = vrot.slane %v4205, %v4211
  %v4213 = vlaneseq
  %v4214 = vshrl.u32 %v4213, 7
  %v4215 = vsub.s32 1, %v4214
  %v4216 = vrot.slane %v4205, %v4215
  %v4217 = vlaneseq
  %v4218 = vshrl.u32 %v4217, 7
  %v4219 = vsub.s32 2, %v4218
  %v4220 = vrot.slane %v4205, %v4219
  %v4221 = vlaneseq
  %v4222 = vshrl.u32 %v4221, 7
  %v4223 = vsub.s32 3, %v4222
  %v4224 = vrot.slane %v4205, %v4223
  %v4225 = vlaneseq
  %v4226 = vshrl.u32 %v4225, 7
  %v4227 = vsub.s32 4, %v4226
  %v4228 = vrot.slane %v4205, %v4227
  %v4229 = vlaneseq
  %v4230 = vshrl.u32 %v4229, 7
  %v4231 = vsub.s32 5, %v4230
  %v4232 = vrot.slane %v4205, %v4231
  %v4233 = vlaneseq
  %v4234 = vshrl.u32 %v4233, 7
  %v4235 = vsub.s32 6, %v4234
  %v4236 = vrot.slane %v4205, %v4235
  %v4237 = vlaneseq
  %v4238 = vshrl.u32 %v4237, 7
  %v4239 = vsub.s32 7, %v4238
  %v4240 = vrot.slane %v4205, %v4239
  %v4241 = vlaneseq
  %v4242 = vshrl.u32 %v4241, 7
  %v4243 = vsub.s32 0, %v4242
  %v4244 = vrot.slane %v4206, %v4243
  %v4245 = vlaneseq
  %v4246 = vshrl.u32 %v4245, 7
  %v4247 = vsub.s32 1, %v4246
  %v4248 = vrot.slane %v4206, %v4247
  %v4249 = vlaneseq
  %v4250 = vshrl.u32 %v4249, 7
  %v4251 = vsub.s32 2, %v4250
  %v4252 = vrot.slane %v4206, %v4251
  %v4253 = vlaneseq
  %v4254 = vshrl.u32 %v4253, 7
  %v4255 = vsub.s32 3, %v4254
  %v4256 = vrot.slane %v4206, %v4255
  %v4257 = vlaneseq
  %v4258 = vshrl.u32 %v4257, 7
  %v4259 = vsub.s32 4, %v4258
  %v4260 = vrot.slane %v4206, %v4259
  %v4261 = vlaneseq
  %v4262 = vshrl.u32 %v4261, 7
  %v4263 = vsub.s32 5, %v4262
  %v4264 = vrot.slane %v4206, %v4263
  %v4265 = vlaneseq
  %v4266 = vshrl.u32 %v4265, 7
  %v4267 = vsub.s32 6, %v4266
  %v4268 = vrot.slane %v4206, %v4267
  %v4269 = vlaneseq
  %v4270 = vshrl.u32 %v4269, 7
  %v4271 = vsub.s32 7, %v4270
  %v4272 = vrot.slane %v4206, %v4271
  %v4353 = vunpack.c.l.b16 %v4140
  %v4354 = vunpack.c.h.b16 %v4140
  %v4355 = vunpack.c.l.b16 %v4141
  %v4356 = vunpack.c.h.b16 %v4141
  %v4357 = vunpack.c.l.b16 %v4142
  %v4358 = vunpack.c.h.b16 %v4142
  %v4359 = vunpack.c.l.b16 %v4143
  %v4360 = vunpack.c.h.b16 %v4143
  %v4361 = vunpack.c.l.b16 %v4144
  %v4362 = vunpack.c.h.b16 %v4144
  %v4363 = vunpack.c.l.b16 %v4145
  %v4364 = vunpack.c.h.b16 %v4145
  %v4365 = vunpack.c.l.b16 %v4146
  %v4366 = vunpack.c.h.b16 %v4146
  %v4367 = vunpack.c.l.b16 %v4147
  %v4368 = vunpack.c.h.b16 %v4147
  %v4369 = vunpack.c.l.b16 %v4148
  %v4370 = vunpack.c.h.b16 %v4148
  %v4371 = vunpack.c.l.b16 %v4149
  %v4372 = vunpack.c.h.b16 %v4149
  %v4373 = vunpack.c.l.b16 %v4150
  %v4374 = vunpack.c.h.b16 %v4150
  %v4375 = vunpack.c.l.b16 %v4151
  %v4376 = vunpack.c.h.b16 %v4151
  %v4377 = vunpack.c.l.b16 %v4152
  %v4378 = vunpack.c.h.b16 %v4152
  %v4379 = vunpack.c.l.b16 %v4153
  %v4380 = vunpack.c.h.b16 %v4153
  %v4381 = vunpack.c.l.b16 %v4154
  %v4382 = vunpack.c.h.b16 %v4154
  %v4383 = vunpack.c.l.b16 %v4155
  %v4384 = vunpack.c.h.b16 %v4155
  %v4385 = vunpack.c.l.b16 %v4156
  %v4386 = vunpack.c.h.b16 %v4156
  %v4387 = vunpack.c.l.b16 %v4157
  %v4388 = vunpack.c.h.b16 %v4157
  %v4389 = vunpack.c.l.b16 %v4158
  %v4390 = vunpack.c.h.b16 %v4158
  %v4391 = vunpack.c.l.b16 %v4159
  %v4392 = vunpack.c.h.b16 %v4159
  %v4393 = vunpack.c.l.b16 %v4160
  %v4394 = vunpack.c.h.b16 %v4160
  %v4395 = vunpack.c.l.b16 %v4161
  %v4396 = vunpack.c.h.b16 %v4161
  %v4397 = vunpack.c.l.b16 %v4162
  %v4398 = vunpack.c.h.b16 %v4162
  %v4399 = vunpack.c.l.b16 %v4163
  %v4400 = vunpack.c.h.b16 %v4163
  %v4401 = vunpack.c.l.b16 %v4164
  %v4402 = vunpack.c.h.b16 %v4164
  %v4403 = vunpack.c.l.b16 %v4165
  %v4404 = vunpack.c.h.b16 %v4165
  %v4405 = vunpack.c.l.b16 %v4166
  %v4406 = vunpack.c.h.b16 %v4166
  %v4407 = vunpack.c.l.b16 %v4167
  %v4408 = vunpack.c.h.b16 %v4167
  %v4409 = vunpack.c.l.b16 %v4168
  %v4410 = vunpack.c.h.b16 %v4168
  %v4411 = vunpack.c.l.b16 %v4169
  %v4412 = vunpack.c.h.b16 %v4169
  %v4413 = vunpack.c.l.b16 %v4170
  %v4414 = vunpack.c.h.b16 %v4170
  %v4415 = vunpack.c.l.b16 %v4171
  %v4416 = vunpack.c.h.b16 %v4171
  %v4417 = vunpack.c.l.b16 %v4172
  %v4418 = vunpack.c.h.b16 %v4172
  %v4419 = vunpack.c.l.b16 %v4173
  %v4420 = vunpack.c.h.b16 %v4173
  %v4421 = vunpack.c.l.b16 %v4174
  %v4422 = vunpack.c.h.b16 %v4174
  %v4423 = vunpack.c.l.b16 %v4175
  %v4424 = vunpack.c.h.b16 %v4175
  %v4425 = vunpack.c.l.b16 %v4176
  %v4426 = vunpack.c.h.b16 %v4176
  %v4427 = vunpack.c.l.b16 %v4177
  %v4428 = vunpack.c.h.b16 %v4177
  %v4429 = vunpack.c.l.b16 %v4178
  %v4430 = vunpack.c.h.b16 %v4178
  %v4431 = vunpack.c.l.b16 %v4179
  %v4432 = vunpack.c.h.b16 %v4179
  %v4433 = vunpack.c.l.b16 %v4180
  %v4434 = vunpack.c.h.b16 %v4180
  %v4435 = vunpack.c.l.b16 %v4181
  %v4436 = vunpack.c.h.b16 %v4181
  %v4437 = vunpack.c.l.b16 %v4182
  %v4438 = vunpack.c.h.b16 %v4182
  %v4439 = vunpack.c.l.b16 %v4183
  %v4440 = vunpack.c.h.b16 %v4183
  %v4441 = vunpack.c.l.b16 %v4184
  %v4442 = vunpack.c.h.b16 %v4184
  %v4443 = vunpack.c.l.b16 %v4185
  %v4444 = vunpack.c.h.b16 %v4185
  %v4445 = vunpack.c.l.b16 %v4186
  %v4446 = vunpack.c.h.b16 %v4186
  %v4447 = vunpack.c.l.b16 %v4187
  %v4448 = vunpack.c.h.b16 %v4187
  %v4449 = vunpack.c.l.b16 %v4188
  %v4450 = vunpack.c.h.b16 %v4188
  %v4451 = vunpack.c.l.b16 %v4189
  %v4452 = vunpack.c.h.b16 %v4189
  %v4453 = vunpack.c.l.b16 %v4190
  %v4454 = vunpack.c.h.b16 %v4190
  %v4455 = vunpack.c.l.b16 %v4191
  %v4456 = vunpack.c.h.b16 %v4191
  %v4457 = vunpack.c.l.b16 %v4192
  %v4458 = vunpack.c.h.b16 %v4192
  %v4459 = vunpack.c.l.b16 %v4193
  %v4460 = vunpack.c.h.b16 %v4193
  %v4461 = vunpack.c.l.b16 %v4194
  %v4462 = vunpack.c.h.b16 %v4194
  %v4463 = vunpack.c.l.b16 %v4195
  %v4464 = vunpack.c.h.b16 %v4195
  %v4465 = vunpack.c.l.b16 %v4196
  %v4466 = vunpack.c.h.b16 %v4196
  %v4467 = vunpack.c.l.b16 %v4197
  %v4468 = vunpack.c.h.b16 %v4197
  %v4469 = vunpack.c.l.b16 %v4198
  %v4470 = vunpack.c.h.b16 %v4198
  %v4471 = vunpack.c.l.b16 %v4199
  %v4472 = vunpack.c.h.b16 %v4199
  %v4473 = vunpack.c.l.b16 %v4200
  %v4474 = vunpack.c.h.b16 %v4200
  %v4475 = vunpack.c.l.b16 %v4201
  %v4476 = vunpack.c.h.b16 %v4201
  %v4477 = vunpack.c.l.b16 %v4202
  %v4478 = vunpack.c.h.b16 %v4202
  %v4479 = vunpack.c.l.b16 %v4203
  %v4480 = vunpack.c.h.b16 %v4203
  %v4481 = vpack.c.b16 %v4369, %v4353
  %v4482 = vpack.c.b16 %v4370, %v4354
  %v4483 = vpack.c.b16 %v4371, %v4355
  %v4484 = vpack.c.b16 %v4372, %v4356
  %v4485 = vpack.c.b16 %v4373, %v4357
  %v4486 = vpack.c.b16 %v4374, %v4358
  %v4487 = vpack.c.b16 %v4375, %v4359
  %v4488 = vpack.c.b16 %v4376, %v4360
  %v4489 = vpack.c.b16 %v4377, %v4361
  %v4490 = vpack.c.b16 %v4378, %v4362
  %v4491 = vpack.c.b16 %v4379, %v4363
  %v4492 = vpack.c.b16 %v4380, %v4364
  %v4493 = vpack.c.b16 %v4381, %v4365
  %v4494 = vpack.c.b16 %v4382, %v4366
  %v4495 = vpack.c.b16 %v4383, %v4367
  %v4496 = vpack.c.b16 %v4384, %v4368
  %v4497 = vpack.c.b16 %v4401, %v4385
  %v4498 = vpack.c.b16 %v4402, %v4386
  %v4499 = vpack.c.b16 %v4403, %v4387
  %v4500 = vpack.c.b16 %v4404, %v4388
  %v4501 = vpack.c.b16 %v4405, %v4389
  %v4502 = vpack.c.b16 %v4406, %v4390
  %v4503 = vpack.c.b16 %v4407, %v4391
  %v4504 = vpack.c.b16 %v4408, %v4392
  %v4505 = vpack.c.b16 %v4409, %v4393
  %v4506 = vpack.c.b16 %v4410, %v4394
  %v4507 = vpack.c.b16 %v4411, %v4395
  %v4508 = vpack.c.b16 %v4412, %v4396
  %v4509 = vpack.c.b16 %v4413, %v4397
  %v4510 = vpack.c.b16 %v4414, %v4398
  %v4511 = vpack.c.b16 %v4415, %v4399
  %v4512 = vpack.c.b16 %v4416, %v4400
  %v4513 = vpack.c.b16 %v4433, %v4417
  %v4514 = vpack.c.b16 %v4434, %v4418
  %v4515 = vpack.c.b16 %v4435, %v4419
  %v4516 = vpack.c.b16 %v4436, %v4420
  %v4517 = vpack.c.b16 %v4437, %v4421
  %v4518 = vpack.c.b16 %v4438, %v4422
  %v4519 = vpack.c.b16 %v4439, %v4423
  %v4520 = vpack.c.b16 %v4440, %v4424
  %v4521 = vpack.c.b16 %v4441, %v4425
  %v4522 = vpack.c.b16 %v4442, %v4426
  %v4523 = vpack.c.b16 %v4443, %v4427
  %v4524 = vpack.c.b16 %v4444, %v4428
  %v4525 = vpack.c.b16 %v4445, %v4429
  %v4526 = vpack.c.b16 %v4446, %v4430
  %v4527 = vpack.c.b16 %v4447, %v4431
  %v4528 = vpack.c.b16 %v4448, %v4432
  %v4529 = vpack.c.b16 %v4465, %v4449
  %v4530 = vpack.c.b16 %v4466, %v4450
  %v4531 = vpack.c.b16 %v4467, %v4451
  %v4532 = vpack.c.b16 %v4468, %v4452
  %v4533 = vpack.c.b16 %v4469, %v4453
  %v4534 = vpack.c.b16 %v4470, %v4454
  %v4535 = vpack.c.b16 %v4471, %v4455
  %v4536 = vpack.c.b16 %v4472, %v4456
  %v4537 = vpack.c.b16 %v4473, %v4457
  %v4538 = vpack.c.b16 %v4474, %v4458
  %v4539 = vpack.c.b16 %v4475, %v4459
  %v4540 = vpack.c.b16 %v4476, %v4460
  %v4541 = vpack.c.b16 %v4477, %v4461
  %v4542 = vpack.c.b16 %v4478, %v4462
  %v4543 = vpack.c.b16 %v4479, %v4463
  %v4544 = vpack.c.b16 %v4480, %v4464
  %v4610 = vsel %vm187, %v4138, 0
  %4612 = vmatprep.subr.bf16.mxu0 %v4482
  %4613 = vmatpush1.bf16.msra.mxu0 %v4481
  %4614 = vmatprep.subr.bf16.mxu0 %v4498
  %4615 = vmatpush1.bf16.msra.mxu0 %v4497
  %4616 = vmatprep.subr.bf16.mxu0 %v4514
  %4617 = vmatpush1.bf16.msra.mxu0 %v4513
  %4618 = vmatprep.subr.bf16.mxu0 %v4530
  %4619 = vmatpush1.bf16.msra.mxu0 %v4529
  %4620 = vmatprep.subr.bf16.mxu0 0
  %4621 = vmatpush1.bf16.msra.mxu0 0
  %4622 = vmatprep.subr.bf16.mxu0 0
  %4623 = vmatpush1.bf16.msra.mxu0 0
  %4624 = vmatprep.subr.bf16.mxu0 0
  %4625 = vmatpush1.bf16.msra.mxu0 0
  %4626 = vmatprep.subr.bf16.mxu0 0
  %4627 = vmatpush1.bf16.msra.mxu0 0
  %4628 = vmatprep.subr.bf16.mxu0 0
  %4629 = vmatpush1.bf16.msra.mxu0 0
  %4630 = vmatprep.subr.bf16.mxu0 0
  %4631 = vmatpush1.bf16.msra.mxu0 0
  %4632 = vmatprep.subr.bf16.mxu0 0
  %4633 = vmatpush1.bf16.msra.mxu0 0
  %4634 = vmatprep.subr.bf16.mxu0 0
  %4635 = vmatpush1.bf16.msra.mxu0 0
  %4636 = vmatprep.subr.bf16.mxu0 0
  %4637 = vmatpush1.bf16.msra.mxu0 0
  %4638 = vmatprep.subr.bf16.mxu0 0
  %4639 = vmatpush1.bf16.msra.mxu0 0
  %4640 = vmatprep.subr.bf16.mxu0 0
  %4641 = vmatpush1.bf16.msra.mxu0 0
  %4642 = vmatprep.subr.bf16.mxu0 0
  %4643 = vmatpush1.bf16.msra.mxu0 0
  %4644 = vmatprep.mubr.bf16.mxu0 0
  %4645 = vmatmul.mubr.bf16.gmra.mrb[0].mxu0 %v4610
  %v4646 = vpop.f32.mrb[0].mxu0
  %v4647 = vadd.f32 %v4212, %v4646
  %v4648 = vpop.f32.mrb[0].mxu0
  %v4649 = vadd.f32 %v4216, %v4648
  %v4650 = vpop.f32.mrb[0].mxu0
  %v4651 = vpop.f32.mrb[0].mxu0
  %4652 = vdwg.mxu0
  %4653 = vmatprep.subr.bf16.mxu0 %v4484
  %4654 = vmatpush1.bf16.msra.mxu0 %v4483
  %4655 = vmatprep.subr.bf16.mxu0 %v4500
  %4656 = vmatpush1.bf16.msra.mxu0 %v4499
  %4657 = vmatprep.subr.bf16.mxu0 %v4516
  %4658 = vmatpush1.bf16.msra.mxu0 %v4515
  %4659 = vmatprep.subr.bf16.mxu0 %v4532
  %4660 = vmatpush1.bf16.msra.mxu0 %v4531
  %4661 = vmatprep.subr.bf16.mxu0 0
  %4662 = vmatpush1.bf16.msra.mxu0 0
  %4663 = vmatprep.subr.bf16.mxu0 0
  %4664 = vmatpush1.bf16.msra.mxu0 0
  %4665 = vmatprep.subr.bf16.mxu0 0
  %4666 = vmatpush1.bf16.msra.mxu0 0
  %4667 = vmatprep.subr.bf16.mxu0 0
  %4668 = vmatpush1.bf16.msra.mxu0 0
  %4669 = vmatprep.subr.bf16.mxu0 0
  %4670 = vmatpush1.bf16.msra.mxu0 0
  %4671 = vmatprep.subr.bf16.mxu0 0
  %4672 = vmatpush1.bf16.msra.mxu0 0
  %4673 = vmatprep.subr.bf16.mxu0 0
  %4674 = vmatpush1.bf16.msra.mxu0 0
  %4675 = vmatprep.subr.bf16.mxu0 0
  %4676 = vmatpush1.bf16.msra.mxu0 0
  %4677 = vmatprep.subr.bf16.mxu0 0
  %4678 = vmatpush1.bf16.msra.mxu0 0
  %4679 = vmatprep.subr.bf16.mxu0 0
  %4680 = vmatpush1.bf16.msra.mxu0 0
  %4681 = vmatprep.subr.bf16.mxu0 0
  %4682 = vmatpush1.bf16.msra.mxu0 0
  %4683 = vmatprep.subr.bf16.mxu0 0
  %4684 = vmatpush1.bf16.msra.mxu0 0
  %4685 = vmatprep.mubr.bf16.mxu0 0
  %4686 = vmatmul.mubr.bf16.gmra.mrb[0].mxu0 %v4610
  %v4687 = vpop.f32.mrb[0].mxu0
  %v4688 = vadd.f32 %v4220, %v4687
  %v4689 = vpop.f32.mrb[0].mxu0
  %v4690 = vadd.f32 %v4224, %v4689
  %v4691 = vpop.f32.mrb[0].mxu0
  %v4692 = vpop.f32.mrb[0].mxu0
  %4693 = vdwg.mxu0
  %4694 = vmatprep.subr.bf16.mxu0 %v4486
  %4695 = vmatpush1.bf16.msra.mxu0 %v4485
  %4696 = vmatprep.subr.bf16.mxu0 %v4502
  %4697 = vmatpush1.bf16.msra.mxu0 %v4501
  %4698 = vmatprep.subr.bf16.mxu0 %v4518
  %4699 = vmatpush1.bf16.msra.mxu0 %v4517
  %4700 = vmatprep.subr.bf16.mxu0 %v4534
  %4701 = vmatpush1.bf16.msra.mxu0 %v4533
  %4702 = vmatprep.subr.bf16.mxu0 0
  %4703 = vmatpush1.bf16.msra.mxu0 0
  %4704 = vmatprep.subr.bf16.mxu0 0
  %4705 = vmatpush1.bf16.msra.mxu0 0
  %4706 = vmatprep.subr.bf16.mxu0 0
  %4707 = vmatpush1.bf16.msra.mxu0 0
  %4708 = vmatprep.subr.bf16.mxu0 0
  %4709 = vmatpush1.bf16.msra.mxu0 0
  %4710 = vmatprep.subr.bf16.mxu0 0
  %4711 = vmatpush1.bf16.msra.mxu0 0
  %4712 = vmatprep.subr.bf16.mxu0 0
  %4713 = vmatpush1.bf16.msra.mxu0 0
  %4714 = vmatprep.subr.bf16.mxu0 0
  %4715 = vmatpush1.bf16.msra.mxu0 0
  %4716 = vmatprep.subr.bf16.mxu0 0
  %4717 = vmatpush1.bf16.msra.mxu0 0
  %4718 = vmatprep.subr.bf16.mxu0 0
  %4719 = vmatpush1.bf16.msra.mxu0 0
  %4720 = vmatprep.subr.bf16.mxu0 0
  %4721 = vmatpush1.bf16.msra.mxu0 0
  %4722 = vmatprep.subr.bf16.mxu0 0
  %4723 = vmatpush1.bf16.msra.mxu0 0
  %4724 = vmatprep.subr.bf16.mxu0 0
  %4725 = vmatpush1.bf16.msra.mxu0 0
  %4726 = vmatprep.mubr.bf16.mxu0 0
  %4727 = vmatmul.mubr.bf16.gmra.mrb[0].mxu0 %v4610
  %v4728 = vpop.f32.mrb[0].mxu0
  %v4729 = vadd.f32 %v4228, %v4728
  %v4730 = vpop.f32.mrb[0].mxu0
  %v4731 = vadd.f32 %v4232, %v4730
  %v4732 = vpop.f32.mrb[0].mxu0
  %v4733 = vpop.f32.mrb[0].mxu0
  %4734 = vdwg.mxu0
  %4735 = vmatprep.subr.bf16.mxu0 %v4488
  %4736 = vmatpush1.bf16.msra.mxu0 %v4487
  %4737 = vmatprep.subr.bf16.mxu0 %v4504
  %4738 = vmatpush1.bf16.msra.mxu0 %v4503
  %4739 = vmatprep.subr.bf16.mxu0 %v4520
  %4740 = vmatpush1.bf16.msra.mxu0 %v4519
  %4741 = vmatprep.subr.bf16.mxu0 %v4536
  %4742 = vmatpush1.bf16.msra.mxu0 %v4535
  %4743 = vmatprep.subr.bf16.mxu0 0
  %4744 = vmatpush1.bf16.msra.mxu0 0
  %4745 = vmatprep.subr.bf16.mxu0 0
  %4746 = vmatpush1.bf16.msra.mxu0 0
  %4747 = vmatprep.subr.bf16.mxu0 0
  %4748 = vmatpush1.bf16.msra.mxu0 0
  %4749 = vmatprep.subr.bf16.mxu0 0
  %4750 = vmatpush1.bf16.msra.mxu0 0
  %4751 = vmatprep.subr.bf16.mxu0 0
  %4752 = vmatpush1.bf16.msra.mxu0 0
  %4753 = vmatprep.subr.bf16.mxu0 0
  %4754 = vmatpush1.bf16.msra.mxu0 0
  %4755 = vmatprep.subr.bf16.mxu0 0
  %4756 = vmatpush1.bf16.msra.mxu0 0
  %4757 = vmatprep.subr.bf16.mxu0 0
  %4758 = vmatpush1.bf16.msra.mxu0 0
  %4759 = vmatprep.subr.bf16.mxu0 0
  %4760 = vmatpush1.bf16.msra.mxu0 0
  %4761 = vmatprep.subr.bf16.mxu0 0
  %4762 = vmatpush1.bf16.msra.mxu0 0
  %4763 = vmatprep.subr.bf16.mxu0 0
  %4764 = vmatpush1.bf16.msra.mxu0 0
  %4765 = vmatprep.subr.bf16.mxu0 0
  %4766 = vmatpush1.bf16.msra.mxu0 0
  %4767 = vmatprep.mubr.bf16.mxu0 0
  %4768 = vmatmul.mubr.bf16.gmra.mrb[0].mxu0 %v4610
  %v4769 = vpop.f32.mrb[0].mxu0
  %v4770 = vadd.f32 %v4236, %v4769
  %v4771 = vpop.f32.mrb[0].mxu0
  %v4772 = vadd.f32 %v4240, %v4771
  %v4773 = vpop.f32.mrb[0].mxu0
  %v4774 = vpop.f32.mrb[0].mxu0
  %4775 = vdwg.mxu0
  %4776 = vmatprep.subr.bf16.mxu0 %v4490
  %4777 = vmatpush1.bf16.msra.mxu0 %v4489
  %4778 = vmatprep.subr.bf16.mxu0 %v4506
  %4779 = vmatpush1.bf16.msra.mxu0 %v4505
  %4780 = vmatprep.subr.bf16.mxu0 %v4522
  %4781 = vmatpush1.bf16.msra.mxu0 %v4521
  %4782 = vmatprep.subr.bf16.mxu0 %v4538
  %4783 = vmatpush1.bf16.msra.mxu0 %v4537
  %4784 = vmatprep.subr.bf16.mxu0 0
  %4785 = vmatpush1.bf16.msra.mxu0 0
  %4786 = vmatprep.subr.bf16.mxu0 0
  %4787 = vmatpush1.bf16.msra.mxu0 0
  %4788 = vmatprep.subr.bf16.mxu0 0
  %4789 = vmatpush1.bf16.msra.mxu0 0
  %4790 = vmatprep.subr.bf16.mxu0 0
  %4791 = vmatpush1.bf16.msra.mxu0 0
  %4792 = vmatprep.subr.bf16.mxu0 0
  %4793 = vmatpush1.bf16.msra.mxu0 0
  %4794 = vmatprep.subr.bf16.mxu0 0
  %4795 = vmatpush1.bf16.msra.mxu0 0
  %4796 = vmatprep.subr.bf16.mxu0 0
  %4797 = vmatpush1.bf16.msra.mxu0 0
  %4798 = vmatprep.subr.bf16.mxu0 0
  %4799 = vmatpush1.bf16.msra.mxu0 0
  %4800 = vmatprep.subr.bf16.mxu0 0
  %4801 = vmatpush1.bf16.msra.mxu0 0
  %4802 = vmatprep.subr.bf16.mxu0 0
  %4803 = vmatpush1.bf16.msra.mxu0 0
  %4804 = vmatprep.subr.bf16.mxu0 0
  %4805 = vmatpush1.bf16.msra.mxu0 0
  %4806 = vmatprep.subr.bf16.mxu0 0
  %4807 = vmatpush1.bf16.msra.mxu0 0
  %4808 = vmatprep.mubr.bf16.mxu0 0
  %4809 = vmatmul.mubr.bf16.gmra.mrb[0].mxu0 %v4610
  %v4810 = vpop.f32.mrb[0].mxu0
  %v4811 = vadd.f32 %v4244, %v4810
  %v4812 = vpop.f32.mrb[0].mxu0
  %v4813 = vadd.f32 %v4248, %v4812
  %v4814 = vpop.f32.mrb[0].mxu0
  %v4815 = vpop.f32.mrb[0].mxu0
  %4816 = vdwg.mxu0
  %4817 = vmatprep.subr.bf16.mxu0 %v4492
  %4818 = vmatpush1.bf16.msra.mxu0 %v4491
  %4819 = vmatprep.subr.bf16.mxu0 %v4508
  %4820 = vmatpush1.bf16.msra.mxu0 %v4507
  %4821 = vmatprep.subr.bf16.mxu0 %v4524
  %4822 = vmatpush1.bf16.msra.mxu0 %v4523
  %4823 = vmatprep.subr.bf16.mxu0 %v4540
  %4824 = vmatpush1.bf16.msra.mxu0 %v4539
  %4825 = vmatprep.subr.bf16.mxu0 0
  %4826 = vmatpush1.bf16.msra.mxu0 0
  %4827 = vmatprep.subr.bf16.mxu0 0
  %4828 = vmatpush1.bf16.msra.mxu0 0
  %4829 = vmatprep.subr.bf16.mxu0 0
  %4830 = vmatpush1.bf16.msra.mxu0 0
  %4831 = vmatprep.subr.bf16.mxu0 0
  %4832 = vmatpush1.bf16.msra.mxu0 0
  %4833 = vmatprep.subr.bf16.mxu0 0
  %4834 = vmatpush1.bf16.msra.mxu0 0
  %4835 = vmatprep.subr.bf16.mxu0 0
  %4836 = vmatpush1.bf16.msra.mxu0 0
  %4837 = vmatprep.subr.bf16.mxu0 0
  %4838 = vmatpush1.bf16.msra.mxu0 0
  %4839 = vmatprep.subr.bf16.mxu0 0
  %4840 = vmatpush1.bf16.msra.mxu0 0
  %4841 = vmatprep.subr.bf16.mxu0 0
  %4842 = vmatpush1.bf16.msra.mxu0 0
  %4843 = vmatprep.subr.bf16.mxu0 0
  %4844 = vmatpush1.bf16.msra.mxu0 0
  %4845 = vmatprep.subr.bf16.mxu0 0
  %4846 = vmatpush1.bf16.msra.mxu0 0
  %4847 = vmatprep.subr.bf16.mxu0 0
  %4848 = vmatpush1.bf16.msra.mxu0 0
  %4849 = vmatprep.mubr.bf16.mxu0 0
  %4850 = vmatmul.mubr.bf16.gmra.mrb[0].mxu0 %v4610
  %v4851 = vpop.f32.mrb[0].mxu0
  %v4852 = vadd.f32 %v4252, %v4851
  %v4853 = vpop.f32.mrb[0].mxu0
  %v4854 = vadd.f32 %v4256, %v4853
  %v4855 = vpop.f32.mrb[0].mxu0
  %v4856 = vpop.f32.mrb[0].mxu0
  %4857 = vdwg.mxu0
  %4858 = vmatprep.subr.bf16.mxu0 %v4494
  %4859 = vmatpush1.bf16.msra.mxu0 %v4493
  %4860 = vmatprep.subr.bf16.mxu0 %v4510
  %4861 = vmatpush1.bf16.msra.mxu0 %v4509
  %4862 = vmatprep.subr.bf16.mxu0 %v4526
  %4863 = vmatpush1.bf16.msra.mxu0 %v4525
  %4864 = vmatprep.subr.bf16.mxu0 %v4542
  %4865 = vmatpush1.bf16.msra.mxu0 %v4541
  %4866 = vmatprep.subr.bf16.mxu0 0
  %4867 = vmatpush1.bf16.msra.mxu0 0
  %4868 = vmatprep.subr.bf16.mxu0 0
  %4869 = vmatpush1.bf16.msra.mxu0 0
  %4870 = vmatprep.subr.bf16.mxu0 0
  %4871 = vmatpush1.bf16.msra.mxu0 0
  %4872 = vmatprep.subr.bf16.mxu0 0
  %4873 = vmatpush1.bf16.msra.mxu0 0
  %4874 = vmatprep.subr.bf16.mxu0 0
  %4875 = vmatpush1.bf16.msra.mxu0 0
  %4876 = vmatprep.subr.bf16.mxu0 0
  %4877 = vmatpush1.bf16.msra.mxu0 0
  %4878 = vmatprep.subr.bf16.mxu0 0
  %4879 = vmatpush1.bf16.msra.mxu0 0
  %4880 = vmatprep.subr.bf16.mxu0 0
  %4881 = vmatpush1.bf16.msra.mxu0 0
  %4882 = vmatprep.subr.bf16.mxu0 0
  %4883 = vmatpush1.bf16.msra.mxu0 0
  %4884 = vmatprep.subr.bf16.mxu0 0
  %4885 = vmatpush1.bf16.msra.mxu0 0
  %4886 = vmatprep.subr.bf16.mxu0 0
  %4887 = vmatpush1.bf16.msra.mxu0 0
  %4888 = vmatprep.subr.bf16.mxu0 0
  %4889 = vmatpush1.bf16.msra.mxu0 0
  %4890 = vmatprep.mubr.bf16.mxu0 0
  %4891 = vmatmul.mubr.bf16.gmra.mrb[0].mxu0 %v4610
  %v4892 = vpop.f32.mrb[0].mxu0
  %v4893 = vadd.f32 %v4260, %v4892
  %v4894 = vpop.f32.mrb[0].mxu0
  %v4895 = vadd.f32 %v4264, %v4894
  %v4896 = vpop.f32.mrb[0].mxu0
  %v4897 = vpop.f32.mrb[0].mxu0
  %4898 = vdwg.mxu0
  %4899 = vmatprep.subr.bf16.mxu0 %v4496
  %4900 = vmatpush1.bf16.msra.mxu0 %v4495
  %4901 = vmatprep.subr.bf16.mxu0 %v4512
  %4902 = vmatpush1.bf16.msra.mxu0 %v4511
  %4903 = vmatprep.subr.bf16.mxu0 %v4528
  %4904 = vmatpush1.bf16.msra.mxu0 %v4527
  %4905 = vmatprep.subr.bf16.mxu0 %v4544
  %4906 = vmatpush1.bf16.msra.mxu0 %v4543
  %4907 = vmatprep.subr.bf16.mxu0 0
  %4908 = vmatpush1.bf16.msra.mxu0 0
  %4909 = vmatprep.subr.bf16.mxu0 0
  %4910 = vmatpush1.bf16.msra.mxu0 0
  %4911 = vmatprep.subr.bf16.mxu0 0
  %4912 = vmatpush1.bf16.msra.mxu0 0
  %4913 = vmatprep.subr.bf16.mxu0 0
  %4914 = vmatpush1.bf16.msra.mxu0 0
  %4915 = vmatprep.subr.bf16.mxu0 0
  %4916 = vmatpush1.bf16.msra.mxu0 0
  %4917 = vmatprep.subr.bf16.mxu0 0
  %4918 = vmatpush1.bf16.msra.mxu0 0
  %4919 = vmatprep.subr.bf16.mxu0 0
  %4920 = vmatpush1.bf16.msra.mxu0 0
  %4921 = vmatprep.subr.bf16.mxu0 0
  %4922 = vmatpush1.bf16.msra.mxu0 0
  %4923 = vmatprep.subr.bf16.mxu0 0
  %4924 = vmatpush1.bf16.msra.mxu0 0
  %4925 = vmatprep.subr.bf16.mxu0 0
  %4926 = vmatpush1.bf16.msra.mxu0 0
  %4927 = vmatprep.subr.bf16.mxu0 0
  %4928 = vmatpush1.bf16.msra.mxu0 0
  %4929 = vmatprep.subr.bf16.mxu0 0
  %4930 = vmatpush1.bf16.msra.mxu0 0
  %4931 = vmatprep.mubr.bf16.mxu0 0
  %4932 = vmatmul.mubr.bf16.gmra.mrb[0].mxu0 %v4610
  %v4933 = vpop.f32.mrb[0].mxu0
  %v4934 = vadd.f32 %v4268, %v4933
  %v4935 = vpop.f32.mrb[0].mxu0
  %v4936 = vadd.f32 %v4272, %v4935
  %v4937 = vpop.f32.mrb[0].mxu0
  %v4938 = vpop.f32.mrb[0].mxu0
  %4939 = vdwg.mxu0
  %v4940 = vmax.f32 %v4647, 0.0
  %v4941 = vmax.f32 %v4649, 0.0
  %v4942 = vmax.f32 %v4688, 0.0
  %v4943 = vmax.f32 %v4690, 0.0
  %v4944 = vmax.f32 %v4729, 0.0
  %v4945 = vmax.f32 %v4731, 0.0
  %v4946 = vmax.f32 %v4770, 0.0
  %v4947 = vmax.f32 %v4772, 0.0
  %v4948 = vmax.f32 %v4811, 0.0
  %v4949 = vmax.f32 %v4813, 0.0
  %v4950 = vmax.f32 %v4852, 0.0
  %v4951 = vmax.f32 %v4854, 0.0
  %v4952 = vmax.f32 %v4893, 0.0
  %v4953 = vmax.f32 %v4895, 0.0
  %v4954 = vmax.f32 %v4934, 0.0
  %v4955 = vmax.f32 %v4936, 0.0
  %v4956 = vpack.c.bf16 %v4940, %v4940
  %v4957 = vpack.c.bf16 %v4941, %v4941
  %v4958 = vpack.c.bf16 %v4942, %v4942
  %v4959 = vpack.c.bf16 %v4943, %v4943
  %v4960 = vpack.c.bf16 %v4944, %v4944
  %v4961 = vpack.c.bf16 %v4945, %v4945
  %v4962 = vpack.c.bf16 %v4946, %v4946
  %v4963 = vpack.c.bf16 %v4947, %v4947
  %v4964 = vpack.c.bf16 %v4948, %v4948
  %v4965 = vpack.c.bf16 %v4949, %v4949
  %v4966 = vpack.c.bf16 %v4950, %v4950
  %v4967 = vpack.c.bf16 %v4951, %v4951
  %v4968 = vpack.c.bf16 %v4952, %v4952
  %v4969 = vpack.c.bf16 %v4953, %v4953
  %v4970 = vpack.c.bf16 %v4954, %v4954
  %v4971 = vpack.c.bf16 %v4955, %v4955
  %s4972 = scalar_lea.vmem %s13, 1024
  %v4973 = vld [vmem:[%s4972] sm:$0xf]
  %v4974 = vld [vmem:[%s4972 + $0x4] sm:$0xf]
  %v4975 = vld [vmem:[%s4972 + $0x8] sm:$0xf]
  %v4976 = vld [vmem:[%s4972 + $0xc] sm:$0xf]
  %v4977 = vld [vmem:[%s4972 + $0x10] sm:$0xf]
  %v4978 = vld [vmem:[%s4972 + $0x14] sm:$0xf]
  %v4979 = vld [vmem:[%s4972 + $0x18] sm:$0xf]
  %v4980 = vld [vmem:[%s4972 + $0x1c] sm:$0xf]
  %v4981 = vld [vmem:[%s4972 + $0x20] sm:$0xf]
  %v4982 = vld [vmem:[%s4972 + $0x24] sm:$0xf]
  %v4983 = vld [vmem:[%s4972 + $0x28] sm:$0xf]
  %v4984 = vld [vmem:[%s4972 + $0x2c] sm:$0xf]
  %v4985 = vld [vmem:[%s4972 + $0x30] sm:$0xf]
  %v4986 = vld [vmem:[%s4972 + $0x34] sm:$0xf]
  %v4987 = vld [vmem:[%s4972 + $0x38] sm:$0xf]
  %v4988 = vld [vmem:[%s4972 + $0x3c] sm:$0xf]
  %v4989 = vld [vmem:[%s4972 + $0x40] sm:$0xf]
  %v4990 = vld [vmem:[%s4972 + $0x44] sm:$0xf]
  %v4991 = vld [vmem:[%s4972 + $0x48] sm:$0xf]
  %v4992 = vld [vmem:[%s4972 + $0x4c] sm:$0xf]
  %v4993 = vld [vmem:[%s4972 + $0x50] sm:$0xf]
  %v4994 = vld [vmem:[%s4972 + $0x54] sm:$0xf]
  %v4995 = vld [vmem:[%s4972 + $0x58] sm:$0xf]
  %v4996 = vld [vmem:[%s4972 + $0x5c] sm:$0xf]
  %v4997 = vld [vmem:[%s4972 + $0x60] sm:$0xf]
  %v4998 = vld [vmem:[%s4972 + $0x64] sm:$0xf]
  %v4999 = vld [vmem:[%s4972 + $0x68] sm:$0xf]
  %v5000 = vld [vmem:[%s4972 + $0x6c] sm:$0xf]
  %v5001 = vld [vmem:[%s4972 + $0x70] sm:$0xf]
  %v5002 = vld [vmem:[%s4972 + $0x74] sm:$0xf]
  %v5003 = vld [vmem:[%s4972 + $0x78] sm:$0xf]
  %v5004 = vld [vmem:[%s4972 + $0x7c] sm:$0xf]
  %v5005 = vld [vmem:[%s4972 + $0x80] sm:$0xf]
  %v5006 = vld [vmem:[%s4972 + $0x84] sm:$0xf]
  %v5007 = vld [vmem:[%s4972 + $0x88] sm:$0xf]
  %v5008 = vld [vmem:[%s4972 + $0x8c] sm:$0xf]
  %v5009 = vld [vmem:[%s4972 + $0x90] sm:$0xf]
  %v5010 = vld [vmem:[%s4972 + $0x94] sm:$0xf]
  %v5011 = vld [vmem:[%s4972 + $0x98] sm:$0xf]
  %v5012 = vld [vmem:[%s4972 + $0x9c] sm:$0xf]
  %v5013 = vld [vmem:[%s4972 + $0xa0] sm:$0xf]
  %v5014 = vld [vmem:[%s4972 + $0xa4] sm:$0xf]
  %v5015 = vld [vmem:[%s4972 + $0xa8] sm:$0xf]
  %v5016 = vld [vmem:[%s4972 + $0xac] sm:$0xf]
  %v5017 = vld [vmem:[%s4972 + $0xb0] sm:$0xf]
  %v5018 = vld [vmem:[%s4972 + $0xb4] sm:$0xf]
  %v5019 = vld [vmem:[%s4972 + $0xb8] sm:$0xf]
  %v5020 = vld [vmem:[%s4972 + $0xbc] sm:$0xf]
  %v5021 = vld [vmem:[%s4972 + $0xc0] sm:$0xf]
  %v5022 = vld [vmem:[%s4972 + $0xc4] sm:$0xf]
  %v5023 = vld [vmem:[%s4972 + $0xc8] sm:$0xf]
  %v5024 = vld [vmem:[%s4972 + $0xcc] sm:$0xf]
  %v5025 = vld [vmem:[%s4972 + $0xd0] sm:$0xf]
  %v5026 = vld [vmem:[%s4972 + $0xd4] sm:$0xf]
  %v5027 = vld [vmem:[%s4972 + $0xd8] sm:$0xf]
  %v5028 = vld [vmem:[%s4972 + $0xdc] sm:$0xf]
  %v5029 = vld [vmem:[%s4972 + $0xe0] sm:$0xf]
  %v5030 = vld [vmem:[%s4972 + $0xe4] sm:$0xf]
  %v5031 = vld [vmem:[%s4972 + $0xe8] sm:$0xf]
  %v5032 = vld [vmem:[%s4972 + $0xec] sm:$0xf]
  %v5033 = vld [vmem:[%s4972 + $0xf0] sm:$0xf]
  %v5034 = vld [vmem:[%s4972 + $0xf4] sm:$0xf]
  %v5035 = vld [vmem:[%s4972 + $0xf8] sm:$0xf]
  %v5036 = vld [vmem:[%s4972 + $0xfc] sm:$0xf]
  %v5037 = vld [vmem:[%s4972 + $0x100] sm:$0xf]
  %v5038 = vld [vmem:[%s4972 + $0x104] sm:$0xf]
  %v5039 = vld [vmem:[%s4972 + $0x108] sm:$0xf]
  %v5040 = vld [vmem:[%s4972 + $0x10c] sm:$0xf]
  %v5041 = vld [vmem:[%s4972 + $0x110] sm:$0xf]
  %v5042 = vld [vmem:[%s4972 + $0x114] sm:$0xf]
  %v5043 = vld [vmem:[%s4972 + $0x118] sm:$0xf]
  %v5044 = vld [vmem:[%s4972 + $0x11c] sm:$0xf]
  %v5045 = vld [vmem:[%s4972 + $0x120] sm:$0xf]
  %v5046 = vld [vmem:[%s4972 + $0x124] sm:$0xf]
  %v5047 = vld [vmem:[%s4972 + $0x128] sm:$0xf]
  %v5048 = vld [vmem:[%s4972 + $0x12c] sm:$0xf]
  %v5049 = vld [vmem:[%s4972 + $0x130] sm:$0xf]
  %v5050 = vld [vmem:[%s4972 + $0x134] sm:$0xf]
  %v5051 = vld [vmem:[%s4972 + $0x138] sm:$0xf]
  %v5052 = vld [vmem:[%s4972 + $0x13c] sm:$0xf]
  %v5053 = vld [vmem:[%s4972 + $0x140] sm:$0xf]
  %v5054 = vld [vmem:[%s4972 + $0x144] sm:$0xf]
  %v5055 = vld [vmem:[%s4972 + $0x148] sm:$0xf]
  %v5056 = vld [vmem:[%s4972 + $0x14c] sm:$0xf]
  %v5057 = vld [vmem:[%s4972 + $0x150] sm:$0xf]
  %v5058 = vld [vmem:[%s4972 + $0x154] sm:$0xf]
  %v5059 = vld [vmem:[%s4972 + $0x158] sm:$0xf]
  %v5060 = vld [vmem:[%s4972 + $0x15c] sm:$0xf]
  %v5061 = vld [vmem:[%s4972 + $0x160] sm:$0xf]
  %v5062 = vld [vmem:[%s4972 + $0x164] sm:$0xf]
  %v5063 = vld [vmem:[%s4972 + $0x168] sm:$0xf]
  %v5064 = vld [vmem:[%s4972 + $0x16c] sm:$0xf]
  %v5065 = vld [vmem:[%s4972 + $0x170] sm:$0xf]
  %v5066 = vld [vmem:[%s4972 + $0x174] sm:$0xf]
  %v5067 = vld [vmem:[%s4972 + $0x178] sm:$0xf]
  %v5068 = vld [vmem:[%s4972 + $0x17c] sm:$0xf]
  %v5069 = vld [vmem:[%s4972 + $0x180] sm:$0xf]
  %v5070 = vld [vmem:[%s4972 + $0x184] sm:$0xf]
  %v5071 = vld [vmem:[%s4972 + $0x188] sm:$0xf]
  %v5072 = vld [vmem:[%s4972 + $0x18c] sm:$0xf]
  %v5073 = vld [vmem:[%s4972 + $0x190] sm:$0xf]
  %v5074 = vld [vmem:[%s4972 + $0x194] sm:$0xf]
  %v5075 = vld [vmem:[%s4972 + $0x198] sm:$0xf]
  %v5076 = vld [vmem:[%s4972 + $0x19c] sm:$0xf]
  %v5077 = vld [vmem:[%s4972 + $0x1a0] sm:$0xf]
  %v5078 = vld [vmem:[%s4972 + $0x1a4] sm:$0xf]
  %v5079 = vld [vmem:[%s4972 + $0x1a8] sm:$0xf]
  %v5080 = vld [vmem:[%s4972 + $0x1ac] sm:$0xf]
  %v5081 = vld [vmem:[%s4972 + $0x1b0] sm:$0xf]
  %v5082 = vld [vmem:[%s4972 + $0x1b4] sm:$0xf]
  %v5083 = vld [vmem:[%s4972 + $0x1b8] sm:$0xf]
  %v5084 = vld [vmem:[%s4972 + $0x1bc] sm:$0xf]
  %v5085 = vld [vmem:[%s4972 + $0x1c0] sm:$0xf]
  %v5086 = vld [vmem:[%s4972 + $0x1c4] sm:$0xf]
  %v5087 = vld [vmem:[%s4972 + $0x1c8] sm:$0xf]
  %v5088 = vld [vmem:[%s4972 + $0x1cc] sm:$0xf]
  %v5089 = vld [vmem:[%s4972 + $0x1d0] sm:$0xf]
  %v5090 = vld [vmem:[%s4972 + $0x1d4] sm:$0xf]
  %v5091 = vld [vmem:[%s4972 + $0x1d8] sm:$0xf]
  %v5092 = vld [vmem:[%s4972 + $0x1dc] sm:$0xf]
  %v5093 = vld [vmem:[%s4972 + $0x1e0] sm:$0xf]
  %v5094 = vld [vmem:[%s4972 + $0x1e4] sm:$0xf]
  %v5095 = vld [vmem:[%s4972 + $0x1e8] sm:$0xf]
  %v5096 = vld [vmem:[%s4972 + $0x1ec] sm:$0xf]
  %v5097 = vld [vmem:[%s4972 + $0x1f0] sm:$0xf]
  %v5098 = vld [vmem:[%s4972 + $0x1f4] sm:$0xf]
  %v5099 = vld [vmem:[%s4972 + $0x1f8] sm:$0xf]
  %v5100 = vld [vmem:[%s4972 + $0x1fc] sm:$0xf]
  %v5101 = vld [vmem:[%s4972 + $0x200] sm:$0xf]
  %v5102 = vld [vmem:[%s4972 + $0x204] sm:$0xf]
  %v5103 = vld [vmem:[%s4972 + $0x208] sm:$0xf]
  %v5104 = vld [vmem:[%s4972 + $0x20c] sm:$0xf]
  %v5105 = vld [vmem:[%s4972 + $0x210] sm:$0xf]
  %v5106 = vld [vmem:[%s4972 + $0x214] sm:$0xf]
  %v5107 = vld [vmem:[%s4972 + $0x218] sm:$0xf]
  %v5108 = vld [vmem:[%s4972 + $0x21c] sm:$0xf]
  %v5109 = vld [vmem:[%s4972 + $0x220] sm:$0xf]
  %v5110 = vld [vmem:[%s4972 + $0x224] sm:$0xf]
  %v5111 = vld [vmem:[%s4972 + $0x228] sm:$0xf]
  %v5112 = vld [vmem:[%s4972 + $0x22c] sm:$0xf]
  %v5113 = vld [vmem:[%s4972 + $0x230] sm:$0xf]
  %v5114 = vld [vmem:[%s4972 + $0x234] sm:$0xf]
  %v5115 = vld [vmem:[%s4972 + $0x238] sm:$0xf]
  %v5116 = vld [vmem:[%s4972 + $0x23c] sm:$0xf]
  %v5117 = vld [vmem:[%s4972 + $0x240] sm:$0xf]
  %v5118 = vld [vmem:[%s4972 + $0x244] sm:$0xf]
  %v5119 = vld [vmem:[%s4972 + $0x248] sm:$0xf]
  %v5120 = vld [vmem:[%s4972 + $0x24c] sm:$0xf]
  %v5121 = vld [vmem:[%s4972 + $0x250] sm:$0xf]
  %v5122 = vld [vmem:[%s4972 + $0x254] sm:$0xf]
  %v5123 = vld [vmem:[%s4972 + $0x258] sm:$0xf]
  %v5124 = vld [vmem:[%s4972 + $0x25c] sm:$0xf]
  %v5125 = vld [vmem:[%s4972 + $0x260] sm:$0xf]
  %v5126 = vld [vmem:[%s4972 + $0x264] sm:$0xf]
  %v5127 = vld [vmem:[%s4972 + $0x268] sm:$0xf]
  %v5128 = vld [vmem:[%s4972 + $0x26c] sm:$0xf]
  %v5129 = vld [vmem:[%s4972 + $0x270] sm:$0xf]
  %v5130 = vld [vmem:[%s4972 + $0x274] sm:$0xf]
  %v5131 = vld [vmem:[%s4972 + $0x278] sm:$0xf]
  %v5132 = vld [vmem:[%s4972 + $0x27c] sm:$0xf]
  %v5133 = vld [vmem:[%s4972 + $0x280] sm:$0xf]
  %v5134 = vld [vmem:[%s4972 + $0x284] sm:$0xf]
  %v5135 = vld [vmem:[%s4972 + $0x288] sm:$0xf]
  %v5136 = vld [vmem:[%s4972 + $0x28c] sm:$0xf]
  %v5137 = vld [vmem:[%s4972 + $0x290] sm:$0xf]
  %v5138 = vld [vmem:[%s4972 + $0x294] sm:$0xf]
  %v5139 = vld [vmem:[%s4972 + $0x298] sm:$0xf]
  %v5140 = vld [vmem:[%s4972 + $0x29c] sm:$0xf]
  %v5141 = vld [vmem:[%s4972 + $0x2a0] sm:$0xf]
  %v5142 = vld [vmem:[%s4972 + $0x2a4] sm:$0xf]
  %v5143 = vld [vmem:[%s4972 + $0x2a8] sm:$0xf]
  %v5144 = vld [vmem:[%s4972 + $0x2ac] sm:$0xf]
  %v5145 = vld [vmem:[%s4972 + $0x2b0] sm:$0xf]
  %v5146 = vld [vmem:[%s4972 + $0x2b4] sm:$0xf]
  %v5147 = vld [vmem:[%s4972 + $0x2b8] sm:$0xf]
  %v5148 = vld [vmem:[%s4972 + $0x2bc] sm:$0xf]
  %v5149 = vld [vmem:[%s4972 + $0x2c0] sm:$0xf]
  %v5150 = vld [vmem:[%s4972 + $0x2c4] sm:$0xf]
  %v5151 = vld [vmem:[%s4972 + $0x2c8] sm:$0xf]
  %v5152 = vld [vmem:[%s4972 + $0x2cc] sm:$0xf]
  %v5153 = vld [vmem:[%s4972 + $0x2d0] sm:$0xf]
  %v5154 = vld [vmem:[%s4972 + $0x2d4] sm:$0xf]
  %v5155 = vld [vmem:[%s4972 + $0x2d8] sm:$0xf]
  %v5156 = vld [vmem:[%s4972 + $0x2dc] sm:$0xf]
  %v5157 = vld [vmem:[%s4972 + $0x2e0] sm:$0xf]
  %v5158 = vld [vmem:[%s4972 + $0x2e4] sm:$0xf]
  %v5159 = vld [vmem:[%s4972 + $0x2e8] sm:$0xf]
  %v5160 = vld [vmem:[%s4972 + $0x2ec] sm:$0xf]
  %v5161 = vld [vmem:[%s4972 + $0x2f0] sm:$0xf]
  %v5162 = vld [vmem:[%s4972 + $0x2f4] sm:$0xf]
  %v5163 = vld [vmem:[%s4972 + $0x2f8] sm:$0xf]
  %v5164 = vld [vmem:[%s4972 + $0x2fc] sm:$0xf]
  %v5165 = vld [vmem:[%s4972 + $0x300] sm:$0xf]
  %v5166 = vld [vmem:[%s4972 + $0x304] sm:$0xf]
  %v5167 = vld [vmem:[%s4972 + $0x308] sm:$0xf]
  %v5168 = vld [vmem:[%s4972 + $0x30c] sm:$0xf]
  %v5169 = vld [vmem:[%s4972 + $0x310] sm:$0xf]
  %v5170 = vld [vmem:[%s4972 + $0x314] sm:$0xf]
  %v5171 = vld [vmem:[%s4972 + $0x318] sm:$0xf]
  %v5172 = vld [vmem:[%s4972 + $0x31c] sm:$0xf]
  %v5173 = vld [vmem:[%s4972 + $0x320] sm:$0xf]
  %v5174 = vld [vmem:[%s4972 + $0x324] sm:$0xf]
  %v5175 = vld [vmem:[%s4972 + $0x328] sm:$0xf]
  %v5176 = vld [vmem:[%s4972 + $0x32c] sm:$0xf]
  %v5177 = vld [vmem:[%s4972 + $0x330] sm:$0xf]
  %v5178 = vld [vmem:[%s4972 + $0x334] sm:$0xf]
  %v5179 = vld [vmem:[%s4972 + $0x338] sm:$0xf]
  %v5180 = vld [vmem:[%s4972 + $0x33c] sm:$0xf]
  %v5181 = vld [vmem:[%s4972 + $0x340] sm:$0xf]
  %v5182 = vld [vmem:[%s4972 + $0x344] sm:$0xf]
  %v5183 = vld [vmem:[%s4972 + $0x348] sm:$0xf]
  %v5184 = vld [vmem:[%s4972 + $0x34c] sm:$0xf]
  %v5185 = vld [vmem:[%s4972 + $0x350] sm:$0xf]
  %v5186 = vld [vmem:[%s4972 + $0x354] sm:$0xf]
  %v5187 = vld [vmem:[%s4972 + $0x358] sm:$0xf]
  %v5188 = vld [vmem:[%s4972 + $0x35c] sm:$0xf]
  %v5189 = vld [vmem:[%s4972 + $0x360] sm:$0xf]
  %v5190 = vld [vmem:[%s4972 + $0x364] sm:$0xf]
  %v5191 = vld [vmem:[%s4972 + $0x368] sm:$0xf]
  %v5192 = vld [vmem:[%s4972 + $0x36c] sm:$0xf]
  %v5193 = vld [vmem:[%s4972 + $0x370] sm:$0xf]
  %v5194 = vld [vmem:[%s4972 + $0x374] sm:$0xf]
  %v5195 = vld [vmem:[%s4972 + $0x378] sm:$0xf]
  %v5196 = vld [vmem:[%s4972 + $0x37c] sm:$0xf]
  %v5197 = vld [vmem:[%s4972 + $0x380] sm:$0xf]
  %v5198 = vld [vmem:[%s4972 + $0x384] sm:$0xf]
  %v5199 = vld [vmem:[%s4972 + $0x388] sm:$0xf]
  %v5200 = vld [vmem:[%s4972 + $0x38c] sm:$0xf]
  %v5201 = vld [vmem:[%s4972 + $0x390] sm:$0xf]
  %v5202 = vld [vmem:[%s4972 + $0x394] sm:$0xf]
  %v5203 = vld [vmem:[%s4972 + $0x398] sm:$0xf]
  %v5204 = vld [vmem:[%s4972 + $0x39c] sm:$0xf]
  %v5205 = vld [vmem:[%s4972 + $0x3a0] sm:$0xf]
  %v5206 = vld [vmem:[%s4972 + $0x3a4] sm:$0xf]
  %v5207 = vld [vmem:[%s4972 + $0x3a8] sm:$0xf]
  %v5208 = vld [vmem:[%s4972 + $0x3ac] sm:$0xf]
  %v5209 = vld [vmem:[%s4972 + $0x3b0] sm:$0xf]
  %v5210 = vld [vmem:[%s4972 + $0x3b4] sm:$0xf]
  %v5211 = vld [vmem:[%s4972 + $0x3b8] sm:$0xf]
  %v5212 = vld [vmem:[%s4972 + $0x3bc] sm:$0xf]
  %v5213 = vld [vmem:[%s4972 + $0x3c0] sm:$0xf]
  %v5214 = vld [vmem:[%s4972 + $0x3c4] sm:$0xf]
  %v5215 = vld [vmem:[%s4972 + $0x3c8] sm:$0xf]
  %v5216 = vld [vmem:[%s4972 + $0x3cc] sm:$0xf]
  %v5217 = vld [vmem:[%s4972 + $0x3d0] sm:$0xf]
  %v5218 = vld [vmem:[%s4972 + $0x3d4] sm:$0xf]
  %v5219 = vld [vmem:[%s4972 + $0x3d8] sm:$0xf]
  %v5220 = vld [vmem:[%s4972 + $0x3dc] sm:$0xf]
  %v5221 = vld [vmem:[%s4972 + $0x3e0] sm:$0xf]
  %v5222 = vld [vmem:[%s4972 + $0x3e4] sm:$0xf]
  %v5223 = vld [vmem:[%s4972 + $0x3e8] sm:$0xf]
  %v5224 = vld [vmem:[%s4972 + $0x3ec] sm:$0xf]
  %v5225 = vld [vmem:[%s4972 + $0x3f0] sm:$0xf]
  %v5226 = vld [vmem:[%s4972 + $0x3f4] sm:$0xf]
  %v5227 = vld [vmem:[%s4972 + $0x3f8] sm:$0xf]
  %v5228 = vld [vmem:[%s4972 + $0x3fc] sm:$0xf]
  %s5229 = scalar_lea.vmem %s14, 1
  %v5230 = vld [vmem:[%s5229] sm:$0x1]
  %v5232 = vlaneseq
  %v5233 = vshrl.u32 %v5232, 7
  %v5234 = vsub.s32 0, %v5233
  %v5235 = vrot.slane %v5230, %v5234
  %v5493 = vunpack.c.l.b16 %v4973
  %v5494 = vunpack.c.l.b16 %v4974
  %v5495 = vunpack.c.l.b16 %v4975
  %v5496 = vunpack.c.l.b16 %v4976
  %v5497 = vunpack.c.l.b16 %v4977
  %v5498 = vunpack.c.l.b16 %v4978
  %v5499 = vunpack.c.l.b16 %v4979
  %v5500 = vunpack.c.l.b16 %v4980
  %v5501 = vunpack.c.l.b16 %v4981
  %v5502 = vunpack.c.l.b16 %v4982
  %v5503 = vunpack.c.l.b16 %v4983
  %v5504 = vunpack.c.l.b16 %v4984
  %v5505 = vunpack.c.l.b16 %v4985
  %v5506 = vunpack.c.l.b16 %v4986
  %v5507 = vunpack.c.l.b16 %v4987
  %v5508 = vunpack.c.l.b16 %v4988
  %v5509 = vunpack.c.l.b16 %v4989
  %v5510 = vunpack.c.l.b16 %v4990
  %v5511 = vunpack.c.l.b16 %v4991
  %v5512 = vunpack.c.l.b16 %v4992
  %v5513 = vunpack.c.l.b16 %v4993
  %v5514 = vunpack.c.l.b16 %v4994
  %v5515 = vunpack.c.l.b16 %v4995
  %v5516 = vunpack.c.l.b16 %v4996
  %v5517 = vunpack.c.l.b16 %v4997
  %v5518 = vunpack.c.l.b16 %v4998
  %v5519 = vunpack.c.l.b16 %v4999
  %v5520 = vunpack.c.l.b16 %v5000
  %v5521 = vunpack.c.l.b16 %v5001
  %v5522 = vunpack.c.l.b16 %v5002
  %v5523 = vunpack.c.l.b16 %v5003
  %v5524 = vunpack.c.l.b16 %v5004
  %v5525 = vunpack.c.l.b16 %v5005
  %v5526 = vunpack.c.l.b16 %v5006
  %v5527 = vunpack.c.l.b16 %v5007
  %v5528 = vunpack.c.l.b16 %v5008
  %v5529 = vunpack.c.l.b16 %v5009
  %v5530 = vunpack.c.l.b16 %v5010
  %v5531 = vunpack.c.l.b16 %v5011
  %v5532 = vunpack.c.l.b16 %v5012
  %v5533 = vunpack.c.l.b16 %v5013
  %v5534 = vunpack.c.l.b16 %v5014
  %v5535 = vunpack.c.l.b16 %v5015
  %v5536 = vunpack.c.l.b16 %v5016
  %v5537 = vunpack.c.l.b16 %v5017
  %v5538 = vunpack.c.l.b16 %v5018
  %v5539 = vunpack.c.l.b16 %v5019
  %v5540 = vunpack.c.l.b16 %v5020
  %v5541 = vunpack.c.l.b16 %v5021
  %v5542 = vunpack.c.l.b16 %v5022
  %v5543 = vunpack.c.l.b16 %v5023
  %v5544 = vunpack.c.l.b16 %v5024
  %v5545 = vunpack.c.l.b16 %v5025
  %v5546 = vunpack.c.l.b16 %v5026
  %v5547 = vunpack.c.l.b16 %v5027
  %v5548 = vunpack.c.l.b16 %v5028
  %v5549 = vunpack.c.l.b16 %v5029
  %v5550 = vunpack.c.l.b16 %v5030
  %v5551 = vunpack.c.l.b16 %v5031
  %v5552 = vunpack.c.l.b16 %v5032
  %v5553 = vunpack.c.l.b16 %v5033
  %v5554 = vunpack.c.l.b16 %v5034
  %v5555 = vunpack.c.l.b16 %v5035
  %v5556 = vunpack.c.l.b16 %v5036
  %v5557 = vunpack.c.l.b16 %v5037
  %v5558 = vunpack.c.l.b16 %v5038
  %v5559 = vunpack.c.l.b16 %v5039
  %v5560 = vunpack.c.l.b16 %v5040
  %v5561 = vunpack.c.l.b16 %v5041
  %v5562 = vunpack.c.l.b16 %v5042
  %v5563 = vunpack.c.l.b16 %v5043
  %v5564 = vunpack.c.l.b16 %v5044
  %v5565 = vunpack.c.l.b16 %v5045
  %v5566 = vunpack.c.l.b16 %v5046
  %v5567 = vunpack.c.l.b16 %v5047
  %v5568 = vunpack.c.l.b16 %v5048
  %v5569 = vunpack.c.l.b16 %v5049
  %v5570 = vunpack.c.l.b16 %v5050
  %v5571 = vunpack.c.l.b16 %v5051
  %v5572 = vunpack.c.l.b16 %v5052
  %v5573 = vunpack.c.l.b16 %v5053
  %v5574 = vunpack.c.l.b16 %v5054
  %v5575 = vunpack.c.l.b16 %v5055
  %v5576 = vunpack.c.l.b16 %v5056
  %v5577 = vunpack.c.l.b16 %v5057
  %v5578 = vunpack.c.l.b16 %v5058
  %v5579 = vunpack.c.l.b16 %v5059
  %v5580 = vunpack.c.l.b16 %v5060
  %v5581 = vunpack.c.l.b16 %v5061
  %v5582 = vunpack.c.l.b16 %v5062
  %v5583 = vunpack.c.l.b16 %v5063
  %v5584 = vunpack.c.l.b16 %v5064
  %v5585 = vunpack.c.l.b16 %v5065
  %v5586 = vunpack.c.l.b16 %v5066
  %v5587 = vunpack.c.l.b16 %v5067
  %v5588 = vunpack.c.l.b16 %v5068
  %v5589 = vunpack.c.l.b16 %v5069
  %v5590 = vunpack.c.l.b16 %v5070
  %v5591 = vunpack.c.l.b16 %v5071
  %v5592 = vunpack.c.l.b16 %v5072
  %v5593 = vunpack.c.l.b16 %v5073
  %v5594 = vunpack.c.l.b16 %v5074
  %v5595 = vunpack.c.l.b16 %v5075
  %v5596 = vunpack.c.l.b16 %v5076
  %v5597 = vunpack.c.l.b16 %v5077
  %v5598 = vunpack.c.l.b16 %v5078
  %v5599 = vunpack.c.l.b16 %v5079
  %v5600 = vunpack.c.l.b16 %v5080
  %v5601 = vunpack.c.l.b16 %v5081
  %v5602 = vunpack.c.l.b16 %v5082
  %v5603 = vunpack.c.l.b16 %v5083
  %v5604 = vunpack.c.l.b16 %v5084
  %v5605 = vunpack.c.l.b16 %v5085
  %v5606 = vunpack.c.l.b16 %v5086
  %v5607 = vunpack.c.l.b16 %v5087
  %v5608 = vunpack.c.l.b16 %v5088
  %v5609 = vunpack.c.l.b16 %v5089
  %v5610 = vunpack.c.l.b16 %v5090
  %v5611 = vunpack.c.l.b16 %v5091
  %v5612 = vunpack.c.l.b16 %v5092
  %v5613 = vunpack.c.l.b16 %v5093
  %v5614 = vunpack.c.l.b16 %v5094
  %v5615 = vunpack.c.l.b16 %v5095
  %v5616 = vunpack.c.l.b16 %v5096
  %v5617 = vunpack.c.l.b16 %v5097
  %v5618 = vunpack.c.l.b16 %v5098
  %v5619 = vunpack.c.l.b16 %v5099
  %v5620 = vunpack.c.l.b16 %v5100
  %v5621 = vunpack.c.l.b16 %v5101
  %v5622 = vunpack.c.l.b16 %v5102
  %v5623 = vunpack.c.l.b16 %v5103
  %v5624 = vunpack.c.l.b16 %v5104
  %v5625 = vunpack.c.l.b16 %v5105
  %v5626 = vunpack.c.l.b16 %v5106
  %v5627 = vunpack.c.l.b16 %v5107
  %v5628 = vunpack.c.l.b16 %v5108
  %v5629 = vunpack.c.l.b16 %v5109
  %v5630 = vunpack.c.l.b16 %v5110
  %v5631 = vunpack.c.l.b16 %v5111
  %v5632 = vunpack.c.l.b16 %v5112
  %v5633 = vunpack.c.l.b16 %v5113
  %v5634 = vunpack.c.l.b16 %v5114
  %v5635 = vunpack.c.l.b16 %v5115
  %v5636 = vunpack.c.l.b16 %v5116
  %v5637 = vunpack.c.l.b16 %v5117
  %v5638 = vunpack.c.l.b16 %v5118
  %v5639 = vunpack.c.l.b16 %v5119
  %v5640 = vunpack.c.l.b16 %v5120
  %v5641 = vunpack.c.l.b16 %v5121
  %v5642 = vunpack.c.l.b16 %v5122
  %v5643 = vunpack.c.l.b16 %v5123
  %v5644 = vunpack.c.l.b16 %v5124
  %v5645 = vunpack.c.l.b16 %v5125
  %v5646 = vunpack.c.l.b16 %v5126
  %v5647 = vunpack.c.l.b16 %v5127
  %v5648 = vunpack.c.l.b16 %v5128
  %v5649 = vunpack.c.l.b16 %v5129
  %v5650 = vunpack.c.l.b16 %v5130
  %v5651 = vunpack.c.l.b16 %v5131
  %v5652 = vunpack.c.l.b16 %v5132
  %v5653 = vunpack.c.l.b16 %v5133
  %v5654 = vunpack.c.l.b16 %v5134
  %v5655 = vunpack.c.l.b16 %v5135
  %v5656 = vunpack.c.l.b16 %v5136
  %v5657 = vunpack.c.l.b16 %v5137
  %v5658 = vunpack.c.l.b16 %v5138
  %v5659 = vunpack.c.l.b16 %v5139
  %v5660 = vunpack.c.l.b16 %v5140
  %v5661 = vunpack.c.l.b16 %v5141
  %v5662 = vunpack.c.l.b16 %v5142
  %v5663 = vunpack.c.l.b16 %v5143
  %v5664 = vunpack.c.l.b16 %v5144
  %v5665 = vunpack.c.l.b16 %v5145
  %v5666 = vunpack.c.l.b16 %v5146
  %v5667 = vunpack.c.l.b16 %v5147
  %v5668 = vunpack.c.l.b16 %v5148
  %v5669 = vunpack.c.l.b16 %v5149
  %v5670 = vunpack.c.l.b16 %v5150
  %v5671 = vunpack.c.l.b16 %v5151
  %v5672 = vunpack.c.l.b16 %v5152
  %v5673 = vunpack.c.l.b16 %v5153
  %v5674 = vunpack.c.l.b16 %v5154
  %v5675 = vunpack.c.l.b16 %v5155
  %v5676 = vunpack.c.l.b16 %v5156
  %v5677 = vunpack.c.l.b16 %v5157
  %v5678 = vunpack.c.l.b16 %v5158
  %v5679 = vunpack.c.l.b16 %v5159
  %v5680 = vunpack.c.l.b16 %v5160
  %v5681 = vunpack.c.l.b16 %v5161
  %v5682 = vunpack.c.l.b16 %v5162
  %v5683 = vunpack.c.l.b16 %v5163
  %v5684 = vunpack.c.l.b16 %v5164
  %v5685 = vunpack.c.l.b16 %v5165
  %v5686 = vunpack.c.l.b16 %v5166
  %v5687 = vunpack.c.l.b16 %v5167
  %v5688 = vunpack.c.l.b16 %v5168
  %v5689 = vunpack.c.l.b16 %v5169
  %v5690 = vunpack.c.l.b16 %v5170
  %v5691 = vunpack.c.l.b16 %v5171
  %v5692 = vunpack.c.l.b16 %v5172
  %v5693 = vunpack.c.l.b16 %v5173
  %v5694 = vunpack.c.l.b16 %v5174
  %v5695 = vunpack.c.l.b16 %v5175
  %v5696 = vunpack.c.l.b16 %v5176
  %v5697 = vunpack.c.l.b16 %v5177
  %v5698 = vunpack.c.l.b16 %v5178
  %v5699 = vunpack.c.l.b16 %v5179
  %v5700 = vunpack.c.l.b16 %v5180
  %v5701 = vunpack.c.l.b16 %v5181
  %v5702 = vunpack.c.l.b16 %v5182
  %v5703 = vunpack.c.l.b16 %v5183
  %v5704 = vunpack.c.l.b16 %v5184
  %v5705 = vunpack.c.l.b16 %v5185
  %v5706 = vunpack.c.l.b16 %v5186
  %v5707 = vunpack.c.l.b16 %v5187
  %v5708 = vunpack.c.l.b16 %v5188
  %v5709 = vunpack.c.l.b16 %v5189
  %v5710 = vunpack.c.l.b16 %v5190
  %v5711 = vunpack.c.l.b16 %v5191
  %v5712 = vunpack.c.l.b16 %v5192
  %v5713 = vunpack.c.l.b16 %v5193
  %v5714 = vunpack.c.l.b16 %v5194
  %v5715 = vunpack.c.l.b16 %v5195
  %v5716 = vunpack.c.l.b16 %v5196
  %v5717 = vunpack.c.l.b16 %v5197
  %v5718 = vunpack.c.l.b16 %v5198
  %v5719 = vunpack.c.l.b16 %v5199
  %v5720 = vunpack.c.l.b16 %v5200
  %v5721 = vunpack.c.l.b16 %v5201
  %v5722 = vunpack.c.l.b16 %v5202
  %v5723 = vunpack.c.l.b16 %v5203
  %v5724 = vunpack.c.l.b16 %v5204
  %v5725 = vunpack.c.l.b16 %v5205
  %v5726 = vunpack.c.l.b16 %v5206
  %v5727 = vunpack.c.l.b16 %v5207
  %v5728 = vunpack.c.l.b16 %v5208
  %v5729 = vunpack.c.l.b16 %v5209
  %v5730 = vunpack.c.l.b16 %v5210
  %v5731 = vunpack.c.l.b16 %v5211
  %v5732 = vunpack.c.l.b16 %v5212
  %v5733 = vunpack.c.l.b16 %v5213
  %v5734 = vunpack.c.l.b16 %v5214
  %v5735 = vunpack.c.l.b16 %v5215
  %v5736 = vunpack.c.l.b16 %v5216
  %v5737 = vunpack.c.l.b16 %v5217
  %v5738 = vunpack.c.l.b16 %v5218
  %v5739 = vunpack.c.l.b16 %v5219
  %v5740 = vunpack.c.l.b16 %v5220
  %v5741 = vunpack.c.l.b16 %v5221
  %v5742 = vunpack.c.l.b16 %v5222
  %v5743 = vunpack.c.l.b16 %v5223
  %v5744 = vunpack.c.l.b16 %v5224
  %v5745 = vunpack.c.l.b16 %v5225
  %v5746 = vunpack.c.l.b16 %v5226
  %v5747 = vunpack.c.l.b16 %v5227
  %v5748 = vunpack.c.l.b16 %v5228
  %v5749 = vpack.c.b16 %v5494, %v5493
  %v5750 = vpack.c.b16 %v5496, %v5495
  %v5751 = vpack.c.b16 %v5498, %v5497
  %v5752 = vpack.c.b16 %v5500, %v5499
  %v5753 = vpack.c.b16 %v5502, %v5501
  %v5754 = vpack.c.b16 %v5504, %v5503
  %v5755 = vpack.c.b16 %v5506, %v5505
  %v5756 = vpack.c.b16 %v5508, %v5507
  %v5757 = vpack.c.b16 %v5510, %v5509
  %v5758 = vpack.c.b16 %v5512, %v5511
  %v5759 = vpack.c.b16 %v5514, %v5513
  %v5760 = vpack.c.b16 %v5516, %v5515
  %v5761 = vpack.c.b16 %v5518, %v5517
  %v5762 = vpack.c.b16 %v5520, %v5519
  %v5763 = vpack.c.b16 %v5522, %v5521
  %v5764 = vpack.c.b16 %v5524, %v5523
  %v5765 = vpack.c.b16 %v5526, %v5525
  %v5766 = vpack.c.b16 %v5528, %v5527
  %v5767 = vpack.c.b16 %v5530, %v5529
  %v5768 = vpack.c.b16 %v5532, %v5531
  %v5769 = vpack.c.b16 %v5534, %v5533
  %v5770 = vpack.c.b16 %v5536, %v5535
  %v5771 = vpack.c.b16 %v5538, %v5537
  %v5772 = vpack.c.b16 %v5540, %v5539
  %v5773 = vpack.c.b16 %v5542, %v5541
  %v5774 = vpack.c.b16 %v5544, %v5543
  %v5775 = vpack.c.b16 %v5546, %v5545
  %v5776 = vpack.c.b16 %v5548, %v5547
  %v5777 = vpack.c.b16 %v5550, %v5549
  %v5778 = vpack.c.b16 %v5552, %v5551
  %v5779 = vpack.c.b16 %v5554, %v5553
  %v5780 = vpack.c.b16 %v5556, %v5555
  %v5781 = vpack.c.b16 %v5558, %v5557
  %v5782 = vpack.c.b16 %v5560, %v5559
  %v5783 = vpack.c.b16 %v5562, %v5561
  %v5784 = vpack.c.b16 %v5564, %v5563
  %v5785 = vpack.c.b16 %v5566, %v5565
  %v5786 = vpack.c.b16 %v5568, %v5567
  %v5787 = vpack.c.b16 %v5570, %v5569
  %v5788 = vpack.c.b16 %v5572, %v5571
  %v5789 = vpack.c.b16 %v5574, %v5573
  %v5790 = vpack.c.b16 %v5576, %v5575
  %v5791 = vpack.c.b16 %v5578, %v5577
  %v5792 = vpack.c.b16 %v5580, %v5579
  %v5793 = vpack.c.b16 %v5582, %v5581
  %v5794 = vpack.c.b16 %v5584, %v5583
  %v5795 = vpack.c.b16 %v5586, %v5585
  %v5796 = vpack.c.b16 %v5588, %v5587
  %v5797 = vpack.c.b16 %v5590, %v5589
  %v5798 = vpack.c.b16 %v5592, %v5591
  %v5799 = vpack.c.b16 %v5594, %v5593
  %v5800 = vpack.c.b16 %v5596, %v5595
  %v5801 = vpack.c.b16 %v5598, %v5597
  %v5802 = vpack.c.b16 %v5600, %v5599
  %v5803 = vpack.c.b16 %v5602, %v5601
  %v5804 = vpack.c.b16 %v5604, %v5603
  %v5805 = vpack.c.b16 %v5606, %v5605
  %v5806 = vpack.c.b16 %v5608, %v5607
  %v5807 = vpack.c.b16 %v5610, %v5609
  %v5808 = vpack.c.b16 %v5612, %v5611
  %v5809 = vpack.c.b16 %v5614, %v5613
  %v5810 = vpack.c.b16 %v5616, %v5615
  %v5811 = vpack.c.b16 %v5618, %v5617
  %v5812 = vpack.c.b16 %v5620, %v5619
  %v5813 = vpack.c.b16 %v5622, %v5621
  %v5814 = vpack.c.b16 %v5624, %v5623
  %v5815 = vpack.c.b16 %v5626, %v5625
  %v5816 = vpack.c.b16 %v5628, %v5627
  %v5817 = vpack.c.b16 %v5630, %v5629
  %v5818 = vpack.c.b16 %v5632, %v5631
  %v5819 = vpack.c.b16 %v5634, %v5633
  %v5820 = vpack.c.b16 %v5636, %v5635
  %v5821 = vpack.c.b16 %v5638, %v5637
  %v5822 = vpack.c.b16 %v5640, %v5639
  %v5823 = vpack.c.b16 %v5642, %v5641
  %v5824 = vpack.c.b16 %v5644, %v5643
  %v5825 = vpack.c.b16 %v5646, %v5645
  %v5826 = vpack.c.b16 %v5648, %v5647
  %v5827 = vpack.c.b16 %v5650, %v5649
  %v5828 = vpack.c.b16 %v5652, %v5651
  %v5829 = vpack.c.b16 %v5654, %v5653
  %v5830 = vpack.c.b16 %v5656, %v5655
  %v5831 = vpack.c.b16 %v5658, %v5657
  %v5832 = vpack.c.b16 %v5660, %v5659
  %v5833 = vpack.c.b16 %v5662, %v5661
  %v5834 = vpack.c.b16 %v5664, %v5663
  %v5835 = vpack.c.b16 %v5666, %v5665
  %v5836 = vpack.c.b16 %v5668, %v5667
  %v5837 = vpack.c.b16 %v5670, %v5669
  %v5838 = vpack.c.b16 %v5672, %v5671
  %v5839 = vpack.c.b16 %v5674, %v5673
  %v5840 = vpack.c.b16 %v5676, %v5675
  %v5841 = vpack.c.b16 %v5678, %v5677
  %v5842 = vpack.c.b16 %v5680, %v5679
  %v5843 = vpack.c.b16 %v5682, %v5681
  %v5844 = vpack.c.b16 %v5684, %v5683
  %v5845 = vpack.c.b16 %v5686, %v5685
  %v5846 = vpack.c.b16 %v5688, %v5687
  %v5847 = vpack.c.b16 %v5690, %v5689
  %v5848 = vpack.c.b16 %v5692, %v5691
  %v5849 = vpack.c.b16 %v5694, %v5693
  %v5850 = vpack.c.b16 %v5696, %v5695
  %v5851 = vpack.c.b16 %v5698, %v5697
  %v5852 = vpack.c.b16 %v5700, %v5699
  %v5853 = vpack.c.b16 %v5702, %v5701
  %v5854 = vpack.c.b16 %v5704, %v5703
  %v5855 = vpack.c.b16 %v5706, %v5705
  %v5856 = vpack.c.b16 %v5708, %v5707
  %v5857 = vpack.c.b16 %v5710, %v5709
  %v5858 = vpack.c.b16 %v5712, %v5711
  %v5859 = vpack.c.b16 %v5714, %v5713
  %v5860 = vpack.c.b16 %v5716, %v5715
  %v5861 = vpack.c.b16 %v5718, %v5717
  %v5862 = vpack.c.b16 %v5720, %v5719
  %v5863 = vpack.c.b16 %v5722, %v5721
  %v5864 = vpack.c.b16 %v5724, %v5723
  %v5865 = vpack.c.b16 %v5726, %v5725
  %v5866 = vpack.c.b16 %v5728, %v5727
  %v5867 = vpack.c.b16 %v5730, %v5729
  %v5868 = vpack.c.b16 %v5732, %v5731
  %v5869 = vpack.c.b16 %v5734, %v5733
  %v5870 = vpack.c.b16 %v5736, %v5735
  %v5871 = vpack.c.b16 %v5738, %v5737
  %v5872 = vpack.c.b16 %v5740, %v5739
  %v5873 = vpack.c.b16 %v5742, %v5741
  %v5874 = vpack.c.b16 %v5744, %v5743
  %v5875 = vpack.c.b16 %v5746, %v5745
  %v5876 = vpack.c.b16 %v5748, %v5747
  %6005 = vmatprep.subr.bf16.mxu0 0
  %6006 = vmatpush1.bf16.msra.mxu0 %v5749
  %6007 = vmatprep.subr.bf16.mxu0 0
  %6008 = vmatpush1.bf16.msra.mxu0 %v5750
  %6009 = vmatprep.subr.bf16.mxu0 0
  %6010 = vmatpush1.bf16.msra.mxu0 %v5751
  %6011 = vmatprep.subr.bf16.mxu0 0
  %6012 = vmatpush1.bf16.msra.mxu0 %v5752
  %6013 = vmatprep.subr.bf16.mxu0 0
  %6014 = vmatpush1.bf16.msra.mxu0 %v5753
  %6015 = vmatprep.subr.bf16.mxu0 0
  %6016 = vmatpush1.bf16.msra.mxu0 %v5754
  %6017 = vmatprep.subr.bf16.mxu0 0
  %6018 = vmatpush1.bf16.msra.mxu0 %v5755
  %6019 = vmatprep.subr.bf16.mxu0 0
  %6020 = vmatpush1.bf16.msra.mxu0 %v5756
  %6021 = vmatprep.subr.bf16.mxu0 0
  %6022 = vmatpush1.bf16.msra.mxu0 %v5757
  %6023 = vmatprep.subr.bf16.mxu0 0
  %6024 = vmatpush1.bf16.msra.mxu0 %v5758
  %6025 = vmatprep.subr.bf16.mxu0 0
  %6026 = vmatpush1.bf16.msra.mxu0 %v5759
  %6027 = vmatprep.subr.bf16.mxu0 0
  %6028 = vmatpush1.bf16.msra.mxu0 %v5760
  %6029 = vmatprep.subr.bf16.mxu0 0
  %6030 = vmatpush1.bf16.msra.mxu0 %v5761
  %6031 = vmatprep.subr.bf16.mxu0 0
  %6032 = vmatpush1.bf16.msra.mxu0 %v5762
  %6033 = vmatprep.subr.bf16.mxu0 0
  %6034 = vmatpush1.bf16.msra.mxu0 %v5763
  %6035 = vmatprep.subr.bf16.mxu0 0
  %6036 = vmatpush1.bf16.msra.mxu0 %v5764
  %6037 = vmatprep.mubr.bf16.mxu0 %v4957
  %6038 = vmatmul.mubr.bf16.gmra.mrb[0].mxu0 %v4956
  %v6039 = vpop.f32.mrb[0].mxu0
  %v6040 = vadd.f32 %v5235, %v6039
  %v6041 = vpop.f32.mrb[0].mxu0
  %v6042 = vpop.f32.mrb[0].mxu0
  %v6043 = vpop.f32.mrb[0].mxu0
  %6044 = vdwg.mxu0
  %6045 = vmatprep.subr.bf16.mxu0 0
  %6046 = vmatpush1.bf16.msra.mxu0 %v5765
  %6047 = vmatprep.subr.bf16.mxu0 0
  %6048 = vmatpush1.bf16.msra.mxu0 %v5766
  %6049 = vmatprep.subr.bf16.mxu0 0
  %6050 = vmatpush1.bf16.msra.mxu0 %v5767
  %6051 = vmatprep.subr.bf16.mxu0 0
  %6052 = vmatpush1.bf16.msra.mxu0 %v5768
  %6053 = vmatprep.subr.bf16.mxu0 0
  %6054 = vmatpush1.bf16.msra.mxu0 %v5769
  %6055 = vmatprep.subr.bf16.mxu0 0
  %6056 = vmatpush1.bf16.msra.mxu0 %v5770
  %6057 = vmatprep.subr.bf16.mxu0 0
  %6058 = vmatpush1.bf16.msra.mxu0 %v5771
  %6059 = vmatprep.subr.bf16.mxu0 0
  %6060 = vmatpush1.bf16.msra.mxu0 %v5772
  %6061 = vmatprep.subr.bf16.mxu0 0
  %6062 = vmatpush1.bf16.msra.mxu0 %v5773
  %6063 = vmatprep.subr.bf16.mxu0 0
  %6064 = vmatpush1.bf16.msra.mxu0 %v5774
  %6065 = vmatprep.subr.bf16.mxu0 0
  %6066 = vmatpush1.bf16.msra.mxu0 %v5775
  %6067 = vmatprep.subr.bf16.mxu0 0
  %6068 = vmatpush1.bf16.msra.mxu0 %v5776
  %6069 = vmatprep.subr.bf16.mxu0 0
  %6070 = vmatpush1.bf16.msra.mxu0 %v5777
  %6071 = vmatprep.subr.bf16.mxu0 0
  %6072 = vmatpush1.bf16.msra.mxu0 %v5778
  %6073 = vmatprep.subr.bf16.mxu0 0
  %6074 = vmatpush1.bf16.msra.mxu0 %v5779
  %6075 = vmatprep.subr.bf16.mxu0 0
  %6076 = vmatpush1.bf16.msra.mxu0 %v5780
  %6077 = vmatprep.mubr.bf16.mxu0 %v4959
  %6078 = vmatmul.mubr.bf16.gmra.mrb[0].mxu0 %v4958
  %v6079 = vpop.f32.mrb[0].mxu0
  %v6080 = vadd.f32 %v6040, %v6079
  %v6081 = vpop.f32.mrb[0].mxu0
  %v6082 = vpop.f32.mrb[0].mxu0
  %v6083 = vpop.f32.mrb[0].mxu0
  %6084 = vdwg.mxu0
  %6085 = vmatprep.subr.bf16.mxu0 0
  %6086 = vmatpush1.bf16.msra.mxu0 %v5781
  %6087 = vmatprep.subr.bf16.mxu0 0
  %6088 = vmatpush1.bf16.msra.mxu0 %v5782
  %6089 = vmatprep.subr.bf16.mxu0 0
  %6090 = vmatpush1.bf16.msra.mxu0 %v5783
  %6091 = vmatprep.subr.bf16.mxu0 0
  %6092 = vmatpush1.bf16.msra.mxu0 %v5784
  %6093 = vmatprep.subr.bf16.mxu0 0
  %6094 = vmatpush1.bf16.msra.mxu0 %v5785
  %6095 = vmatprep.subr.bf16.mxu0 0
  %6096 = vmatpush1.bf16.msra.mxu0 %v5786
  %6097 = vmatprep.subr.bf16.mxu0 0
  %6098 = vmatpush1.bf16.msra.mxu0 %v5787
  %6099 = vmatprep.subr.bf16.mxu0 0
  %6100 = vmatpush1.bf16.msra.mxu0 %v5788
  %6101 = vmatprep.subr.bf16.mxu0 0
  %6102 = vmatpush1.bf16.msra.mxu0 %v5789
  %6103 = vmatprep.subr.bf16.mxu0 0
  %6104 = vmatpush1.bf16.msra.mxu0 %v5790
  %6105 = vmatprep.subr.bf16.mxu0 0
  %6106 = vmatpush1.bf16.msra.mxu0 %v5791
  %6107 = vmatprep.subr.bf16.mxu0 0
  %6108 = vmatpush1.bf16.msra.mxu0 %v5792
  %6109 = vmatprep.subr.bf16.mxu0 0
  %6110 = vmatpush1.bf16.msra.mxu0 %v5793
  %6111 = vmatprep.subr.bf16.mxu0 0
  %6112 = vmatpush1.bf16.msra.mxu0 %v5794
  %6113 = vmatprep.subr.bf16.mxu0 0
  %6114 = vmatpush1.bf16.msra.mxu0 %v5795
  %6115 = vmatprep.subr.bf16.mxu0 0
  %6116 = vmatpush1.bf16.msra.mxu0 %v5796
  %6117 = vmatprep.mubr.bf16.mxu0 %v4961
  %6118 = vmatmul.mubr.bf16.gmra.mrb[0].mxu0 %v4960
  %v6119 = vpop.f32.mrb[0].mxu0
  %v6120 = vadd.f32 %v6080, %v6119
  %v6121 = vpop.f32.mrb[0].mxu0
  %v6122 = vpop.f32.mrb[0].mxu0
  %v6123 = vpop.f32.mrb[0].mxu0
  %6124 = vdwg.mxu0
  %6125 = vmatprep.subr.bf16.mxu0 0
  %6126 = vmatpush1.bf16.msra.mxu0 %v5797
  %6127 = vmatprep.subr.bf16.mxu0 0
  %6128 = vmatpush1.bf16.msra.mxu0 %v5798
  %6129 = vmatprep.subr.bf16.mxu0 0
  %6130 = vmatpush1.bf16.msra.mxu0 %v5799
  %6131 = vmatprep.subr.bf16.mxu0 0
  %6132 = vmatpush1.bf16.msra.mxu0 %v5800
  %6133 = vmatprep.subr.bf16.mxu0 0
  %6134 = vmatpush1.bf16.msra.mxu0 %v5801
  %6135 = vmatprep.subr.bf16.mxu0 0
  %6136 = vmatpush1.bf16.msra.mxu0 %v5802
  %6137 = vmatprep.subr.bf16.mxu0 0
  %6138 = vmatpush1.bf16.msra.mxu0 %v5803
  %6139 = vmatprep.subr.bf16.mxu0 0
  %6140 = vmatpush1.bf16.msra.mxu0 %v5804
  %6141 = vmatprep.subr.bf16.mxu0 0
  %6142 = vmatpush1.bf16.msra.mxu0 %v5805
  %6143 = vmatprep.subr.bf16.mxu0 0
  %6144 = vmatpush1.bf16.msra.mxu0 %v5806
  %6145 = vmatprep.subr.bf16.mxu0 0
  %6146 = vmatpush1.bf16.msra.mxu0 %v5807
  %6147 = vmatprep.subr.bf16.mxu0 0
  %6148 = vmatpush1.bf16.msra.mxu0 %v5808
  %6149 = vmatprep.subr.bf16.mxu0 0
  %6150 = vmatpush1.bf16.msra.mxu0 %v5809
  %6151 = vmatprep.subr.bf16.mxu0 0
  %6152 = vmatpush1.bf16.msra.mxu0 %v5810
  %6153 = vmatprep.subr.bf16.mxu0 0
  %6154 = vmatpush1.bf16.msra.mxu0 %v5811
  %6155 = vmatprep.subr.bf16.mxu0 0
  %6156 = vmatpush1.bf16.msra.mxu0 %v5812
  %6157 = vmatprep.mubr.bf16.mxu0 %v4963
  %6158 = vmatmul.mubr.bf16.gmra.mrb[0].mxu0 %v4962
  %v6159 = vpop.f32.mrb[0].mxu0
  %v6160 = vadd.f32 %v6120, %v6159
  %v6161 = vpop.f32.mrb[0].mxu0
  %v6162 = vpop.f32.mrb[0].mxu0
  %v6163 = vpop.f32.mrb[0].mxu0
  %6164 = vdwg.mxu0
  %6165 = vmatprep.subr.bf16.mxu0 0
  %6166 = vmatpush1.bf16.msra.mxu0 %v5813
  %6167 = vmatprep.subr.bf16.mxu0 0
  %6168 = vmatpush1.bf16.msra.mxu0 %v5814
  %6169 = vmatprep.subr.bf16.mxu0 0
  %6170 = vmatpush1.bf16.msra.mxu0 %v5815
  %6171 = vmatprep.subr.bf16.mxu0 0
  %6172 = vmatpush1.bf16.msra.mxu0 %v5816
  %6173 = vmatprep.subr.bf16.mxu0 0
  %6174 = vmatpush1.bf16.msra.mxu0 %v5817
  %6175 = vmatprep.subr.bf16.mxu0 0
  %6176 = vmatpush1.bf16.msra.mxu0 %v5818
  %6177 = vmatprep.subr.bf16.mxu0 0
  %6178 = vmatpush1.bf16.msra.mxu0 %v5819
  %6179 = vmatprep.subr.bf16.mxu0 0
  %6180 = vmatpush1.bf16.msra.mxu0 %v5820
  %6181 = vmatprep.subr.bf16.mxu0 0
  %6182 = vmatpush1.bf16.msra.mxu0 %v5821
  %6183 = vmatprep.subr.bf16.mxu0 0
  %6184 = vmatpush1.bf16.msra.mxu0 %v5822
  %6185 = vmatprep.subr.bf16.mxu0 0
  %6186 = vmatpush1.bf16.msra.mxu0 %v5823
  %6187 = vmatprep.subr.bf16.mxu0 0
  %6188 = vmatpush1.bf16.msra.mxu0 %v5824
  %6189 = vmatprep.subr.bf16.mxu0 0
  %6190 = vmatpush1.bf16.msra.mxu0 %v5825
  %6191 = vmatprep.subr.bf16.mxu0 0
  %6192 = vmatpush1.bf16.msra.mxu0 %v5826
  %6193 = vmatprep.subr.bf16.mxu0 0
  %6194 = vmatpush1.bf16.msra.mxu0 %v5827
  %6195 = vmatprep.subr.bf16.mxu0 0
  %6196 = vmatpush1.bf16.msra.mxu0 %v5828
  %6197 = vmatprep.mubr.bf16.mxu0 %v4965
  %6198 = vmatmul.mubr.bf16.gmra.mrb[0].mxu0 %v4964
  %v6199 = vpop.f32.mrb[0].mxu0
  %v6200 = vadd.f32 %v6160, %v6199
  %v6201 = vpop.f32.mrb[0].mxu0
  %v6202 = vpop.f32.mrb[0].mxu0
  %v6203 = vpop.f32.mrb[0].mxu0
  %6204 = vdwg.mxu0
  %6205 = vmatprep.subr.bf16.mxu0 0
  %6206 = vmatpush1.bf16.msra.mxu0 %v5829
  %6207 = vmatprep.subr.bf16.mxu0 0
  %6208 = vmatpush1.bf16.msra.mxu0 %v5830
  %6209 = vmatprep.subr.bf16.mxu0 0
  %6210 = vmatpush1.bf16.msra.mxu0 %v5831
  %6211 = vmatprep.subr.bf16.mxu0 0
  %6212 = vmatpush1.bf16.msra.mxu0 %v5832
  %6213 = vmatprep.subr.bf16.mxu0 0
  %6214 = vmatpush1.bf16.msra.mxu0 %v5833
  %6215 = vmatprep.subr.bf16.mxu0 0
  %6216 = vmatpush1.bf16.msra.mxu0 %v5834
  %6217 = vmatprep.subr.bf16.mxu0 0
  %6218 = vmatpush1.bf16.msra.mxu0 %v5835
  %6219 = vmatprep.subr.bf16.mxu0 0
  %6220 = vmatpush1.bf16.msra.mxu0 %v5836
  %6221 = vmatprep.subr.bf16.mxu0 0
  %6222 = vmatpush1.bf16.msra.mxu0 %v5837
  %6223 = vmatprep.subr.bf16.mxu0 0
  %6224 = vmatpush1.bf16.msra.mxu0 %v5838
  %6225 = vmatprep.subr.bf16.mxu0 0
  %6226 = vmatpush1.bf16.msra.mxu0 %v5839
  %6227 = vmatprep.subr.bf16.mxu0 0
  %6228 = vmatpush1.bf16.msra.mxu0 %v5840
  %6229 = vmatprep.subr.bf16.mxu0 0
  %6230 = vmatpush1.bf16.msra.mxu0 %v5841
  %6231 = vmatprep.subr.bf16.mxu0 0
  %6232 = vmatpush1.bf16.msra.mxu0 %v5842
  %6233 = vmatprep.subr.bf16.mxu0 0
  %6234 = vmatpush1.bf16.msra.mxu0 %v5843
  %6235 = vmatprep.subr.bf16.mxu0 0
  %6236 = vmatpush1.bf16.msra.mxu0 %v5844
  %6237 = vmatprep.mubr.bf16.mxu0 %v4967
  %6238 = vmatmul.mubr.bf16.gmra.mrb[0].mxu0 %v4966
  %v6239 = vpop.f32.mrb[0].mxu0
  %v6240 = vadd.f32 %v6200, %v6239
  %v6241 = vpop.f32.mrb[0].mxu0
  %v6242 = vpop.f32.mrb[0].mxu0
  %v6243 = vpop.f32.mrb[0].mxu0
  %6244 = vdwg.mxu0
  %6245 = vmatprep.subr.bf16.mxu0 0
  %6246 = vmatpush1.bf16.msra.mxu0 %v5845
  %6247 = vmatprep.subr.bf16.mxu0 0
  %6248 = vmatpush1.bf16.msra.mxu0 %v5846
  %6249 = vmatprep.subr.bf16.mxu0 0
  %6250 = vmatpush1.bf16.msra.mxu0 %v5847
  %6251 = vmatprep.subr.bf16.mxu0 0
  %6252 = vmatpush1.bf16.msra.mxu0 %v5848
  %6253 = vmatprep.subr.bf16.mxu0 0
  %6254 = vmatpush1.bf16.msra.mxu0 %v5849
  %6255 = vmatprep.subr.bf16.mxu0 0
  %6256 = vmatpush1.bf16.msra.mxu0 %v5850
  %6257 = vmatprep.subr.bf16.mxu0 0
  %6258 = vmatpush1.bf16.msra.mxu0 %v5851
  %6259 = vmatprep.subr.bf16.mxu0 0
  %6260 = vmatpush1.bf16.msra.mxu0 %v5852
  %6261 = vmatprep.subr.bf16.mxu0 0
  %6262 = vmatpush1.bf16.msra.mxu0 %v5853
  %6263 = vmatprep.subr.bf16.mxu0 0
  %6264 = vmatpush1.bf16.msra.mxu0 %v5854
  %6265 = vmatprep.subr.bf16.mxu0 0
  %6266 = vmatpush1.bf16.msra.mxu0 %v5855
  %6267 = vmatprep.subr.bf16.mxu0 0
  %6268 = vmatpush1.bf16.msra.mxu0 %v5856
  %6269 = vmatprep.subr.bf16.mxu0 0
  %6270 = vmatpush1.bf16.msra.mxu0 %v5857
  %6271 = vmatprep.subr.bf16.mxu0 0
  %6272 = vmatpush1.bf16.msra.mxu0 %v5858
  %6273 = vmatprep.subr.bf16.mxu0 0
  %6274 = vmatpush1.bf16.msra.mxu0 %v5859
  %6275 = vmatprep.subr.bf16.mxu0 0
  %6276 = vmatpush1.bf16.msra.mxu0 %v5860
  %6277 = vmatprep.mubr.bf16.mxu0 %v4969
  %6278 = vmatmul.mubr.bf16.gmra.mrb[0].mxu0 %v4968
  %v6279 = vpop.f32.mrb[0].mxu0
  %v6280 = vadd.f32 %v6240, %v6279
  %v6281 = vpop.f32.mrb[0].mxu0
  %v6282 = vpop.f32.mrb[0].mxu0
  %v6283 = vpop.f32.mrb[0].mxu0
  %6284 = vdwg.mxu0
  %6285 = vmatprep.subr.bf16.mxu0 0
  %6286 = vmatpush1.bf16.msra.mxu0 %v5861
  %6287 = vmatprep.subr.bf16.mxu0 0
  %6288 = vmatpush1.bf16.msra.mxu0 %v5862
  %6289 = vmatprep.subr.bf16.mxu0 0
  %6290 = vmatpush1.bf16.msra.mxu0 %v5863
  %6291 = vmatprep.subr.bf16.mxu0 0
  %6292 = vmatpush1.bf16.msra.mxu0 %v5864
  %6293 = vmatprep.subr.bf16.mxu0 0
  %6294 = vmatpush1.bf16.msra.mxu0 %v5865
  %6295 = vmatprep.subr.bf16.mxu0 0
  %6296 = vmatpush1.bf16.msra.mxu0 %v5866
  %6297 = vmatprep.subr.bf16.mxu0 0
  %6298 = vmatpush1.bf16.msra.mxu0 %v5867
  %6299 = vmatprep.subr.bf16.mxu0 0
  %6300 = vmatpush1.bf16.msra.mxu0 %v5868
  %6301 = vmatprep.subr.bf16.mxu0 0
  %6302 = vmatpush1.bf16.msra.mxu0 %v5869
  %6303 = vmatprep.subr.bf16.mxu0 0
  %6304 = vmatpush1.bf16.msra.mxu0 %v5870
  %6305 = vmatprep.subr.bf16.mxu0 0
  %6306 = vmatpush1.bf16.msra.mxu0 %v5871
  %6307 = vmatprep.subr.bf16.mxu0 0
  %6308 = vmatpush1.bf16.msra.mxu0 %v5872
  %6309 = vmatprep.subr.bf16.mxu0 0
  %6310 = vmatpush1.bf16.msra.mxu0 %v5873
  %6311 = vmatprep.subr.bf16.mxu0 0
  %6312 = vmatpush1.bf16.msra.mxu0 %v5874
  %6313 = vmatprep.subr.bf16.mxu0 0
  %6314 = vmatpush1.bf16.msra.mxu0 %v5875
  %6315 = vmatprep.subr.bf16.mxu0 0
  %6316 = vmatpush1.bf16.msra.mxu0 %v5876
  %6317 = vmatprep.mubr.bf16.mxu0 %v4971
  %6318 = vmatmul.mubr.bf16.gmra.mrb[0].mxu0 %v4970
  %v6319 = vpop.f32.mrb[0].mxu0
  %v6320 = vadd.f32 %v6280, %v6319
  %v6321 = vpop.f32.mrb[0].mxu0
  %v6322 = vpop.f32.mrb[0].mxu0
  %v6323 = vpop.f32.mrb[0].mxu0
  %6324 = vdwg.mxu0
  %v6325 = vadd.f32 %v4137, %v6320
  %s6326 = scalar_lea.vmem %s9, 1
  %v6327 = vld [vmem:[%s6326] sm:$0x1]
  %s6328 = scalar_lea.vmem %s10, 1
  %v6329 = vld [vmem:[%s6328] sm:$0x1]
  %v6330 = vsel %vm187, %v6325, 0.0
  %6331 = vadd.xlane.f32.xlu0 %v6330
  %v6332 = vpop.xlane.xlu0 %6331
  %v6333 = vmul.f32 %v6332, %v1000
  %v6334 = vsub.f32 %v6325, %v6333
  %v6335 = vmul.f32 %v6334, %v6334
  %v6336 = vsel %vm187, %v6335, 0.0
  %6337 = vadd.xlane.f32.xlu0 %v6336
  %v6338 = vpop.xlane.xlu0 %6337
  %v6339 = vmul.f32 %v6338, %v1000
  %v6340 = vadd.f32 %v6339, 1e-05
  %v6341 = vrsqrt.pop %v6340
  %v6342 = vmul.f32 %v6334, %v6341
  %v6344 = vlaneseq
  %v6345 = vshrl.u32 %v6344, 7
  %v6346 = vsub.s32 0, %v6345
  %v6347 = vrot.slane %v6327, %v6346
  %v6349 = vmul.f32 %v6342, %v6347
  %v6351 = vlaneseq
  %v6352 = vshrl.u32 %v6351, 7
  %v6353 = vsub.s32 0, %v6352
  %v6354 = vrot.slane %v6329, %v6353
  %v6356 = vadd.f32 %v6349, %v6354
  %v6357 = vpack.c.bf16 %v6356, %v6356
  %v6358 = vld [vmem:[%s15] sm:$0xf]
  %v6359 = vld [vmem:[%s15 + $0x4] sm:$0xf]
  %v6360 = vld [vmem:[%s15 + $0x8] sm:$0xf]
  %v6361 = vld [vmem:[%s15 + $0xc] sm:$0xf]
  %v6362 = vld [vmem:[%s15 + $0x10] sm:$0xf]
  %v6363 = vld [vmem:[%s15 + $0x14] sm:$0xf]
  %v6364 = vld [vmem:[%s15 + $0x18] sm:$0xf]
  %v6365 = vld [vmem:[%s15 + $0x1c] sm:$0xf]
  %v6366 = vld [vmem:[%s16] sm:$0x1]
  %v6368 = vlaneseq
  %v6369 = vshrl.u32 %v6368, 7
  %v6370 = vsub.s32 0, %v6369
  %v6371 = vrot.slane %v6366, %v6370
  %v6381 = vunpack.c.l.b16 %v6358
  %v6382 = vunpack.c.l.b16 %v6359
  %v6383 = vunpack.c.l.b16 %v6360
  %v6384 = vunpack.c.l.b16 %v6361
  %v6385 = vunpack.c.l.b16 %v6362
  %v6386 = vunpack.c.l.b16 %v6363
  %v6387 = vunpack.c.l.b16 %v6364
  %v6388 = vunpack.c.l.b16 %v6365
  %v6389 = vpack.c.b16 %v6382, %v6381
  %v6390 = vpack.c.b16 %v6384, %v6383
  %v6391 = vpack.c.b16 %v6386, %v6385
  %v6392 = vpack.c.b16 %v6388, %v6387
  %v6398 = vsel %vm187, %v6357, 0
  %6400 = vmatprep.subr.bf16.mxu0 0
  %6401 = vmatpush1.bf16.msra.mxu0 %v6389
  %6402 = vmatprep.subr.bf16.mxu0 0
  %6403 = vmatpush1.bf16.msra.mxu0 %v6390
  %6404 = vmatprep.subr.bf16.mxu0 0
  %6405 = vmatpush1.bf16.msra.mxu0 %v6391
  %6406 = vmatprep.subr.bf16.mxu0 0
  %6407 = vmatpush1.bf16.msra.mxu0 %v6392
  %6408 = vmatprep.subr.bf16.mxu0 0
  %6409 = vmatpush1.bf16.msra.mxu0 0
  %6410 = vmatprep.subr.bf16.mxu0 0
  %6411 = vmatpush1.bf16.msra.mxu0 0
  %6412 = vmatprep.subr.bf16.mxu0 0
  %6413 = vmatpush1.bf16.msra.mxu0 0
  %6414 = vmatprep.subr.bf16.mxu0 0
  %6415 = vmatpush1.bf16.msra.mxu0 0
  %6416 = vmatprep.subr.bf16.mxu0 0
  %6417 = vmatpush1.bf16.msra.mxu0 0
  %6418 = vmatprep.subr.bf16.mxu0 0
  %6419 = vmatpush1.bf16.msra.mxu0 0
  %6420 = vmatprep.subr.bf16.mxu0 0
  %6421 = vmatpush1.bf16.msra.mxu0 0
  %6422 = vmatprep.subr.bf16.mxu0 0
  %6423 = vmatpush1.bf16.msra.mxu0 0
  %6424 = vmatprep.subr.bf16.mxu0 0
  %6425 = vmatpush1.bf16.msra.mxu0 0
  %6426 = vmatprep.subr.bf16.mxu0 0
  %6427 = vmatpush1.bf16.msra.mxu0 0
  %6428 = vmatprep.subr.bf16.mxu0 0
  %6429 = vmatpush1.bf16.msra.mxu0 0
  %6430 = vmatprep.subr.bf16.mxu0 0
  %6431 = vmatpush1.bf16.msra.mxu0 0
  %6432 = vmatprep.mubr.bf16.mxu0 0
  %6433 = vmatmul.mubr.bf16.gmra.mrb[0].mxu0 %v6398
  %v6434 = vpop.f32.mrb[0].mxu0
  %v6435 = vadd.f32 %v6371, %v6434
  %v6436 = vpop.f32.mrb[0].mxu0
  %v6437 = vpop.f32.mrb[0].mxu0
  %v6438 = vpop.f32.mrb[0].mxu0
  %6439 = vdwg.mxu0
  %vm6440 = vcmask 23552
  %6441 = vst.msk [vmem:[%s17] sm:$0xff] %vm6440, %v6435
  // Predicated region
  $region70: #{tpu_custom_call.1} parent=0 // pred_check
    _
  $region71: #{tpu_custom_call.1} parent=0 // pred_check_branch
    %6443 = sbr.rel (0) target = $region73
  $region72: #{tpu_custom_call.1} parent=0 // pred_region
    _
  $region73: #{tpu_custom_call.1} parent=0 // pred_fallthru
    _
  // Predicated region
  $region74: #{tpu_custom_call.1} parent=0 // pred_check
    _
  $region75: #{tpu_custom_call.1} parent=0 // pred_check_branch
    %6445 = sbr.rel (0) target = $region77
  $region76: #{tpu_custom_call.1} parent=0 // pred_region
    _
  $region77: #{tpu_custom_call.1} parent=0 // pred_fallthru
    _

</llo_original>
